<compile_context>
chip_gen: v7x
topology: tpu7x:2x2x1
jax: 0.10.0
libtpu: 0.0.40
codegen_flags: <defaults>
</compile_context>

<pallas_src>
import math
import functools

import jax
import jax.numpy as jnp
from jax.experimental import pallas as pl
from jax.experimental.pallas import tpu as pltpu


def _sine_pos_kernel(mask_ref, inv_dim_t_ref, phase_ref, out_ref, *,
                     H, W, D, batch_tile, normalize, scale):
    """Channel-major sine position embedding kernel.

    mask block      : (Bt, 1, H*W)   float32 (flattened mask, lane-dense)
    inv_dim_t block : (2*D, 1)       float32 (1 / dim_t, x-part then y-part)
    phase block     : (2*D, 1)       float32 (0 or pi/2: cos == sin(.+pi/2))
    out block       : (Bt, 2*D, H*W) float32 (channels on sublanes, HW lanes)
    """
    HW = H * W

    # ---- per-step constants --------------------------------------------
    inv_dim_t = inv_dim_t_ref[...]                       # (2D, 1)
    phase = phase_ref[...]                               # (2D, 1)
    ch = jax.lax.broadcasted_iota(jnp.int32, (2 * D, 1), 0)
    is_x = ch < D                                        # x-channels first

    # Flattened-position (h, w) coordinates via float iota (no int div/mod):
    # floor((p + 0.5) / W) == p // W exactly for these magnitudes.
    fi = jax.lax.broadcasted_iota(jnp.int32, (HW, HW), 0).astype(jnp.float32)
    fj = jax.lax.broadcasted_iota(jnp.int32, (HW, HW), 1).astype(jnp.float32)
    inv_w = 1.0 / float(W)
    row_i = jnp.floor((fi + 0.5) * inv_w)
    row_j = jnp.floor((fj + 0.5) * inv_w)
    col_i = fi - row_i * float(W)
    col_j = fj - row_j * float(W)
    same_row = row_i == row_j
    same_col = col_i == col_j

    # Cumsum-as-matmul selector matrices (0/1), applied from the right:
    #   x_embed[p] = sum_{p'} m[p'] * mx[p', p]  (cumsum along W within a row)
    #   y_embed[p] = sum_{p'} m[p'] * my[p', p]  (cumsum along H within a col)
    mx = (same_row & (col_i <= col_j)).astype(jnp.float32)
    my = (same_col & (row_i <= row_j)).astype(jnp.float32)
    if normalize:
        cx = same_row.astype(jnp.float32)                # row totals (last col)
        cy = same_col.astype(jnp.float32)                # col totals (last row)

    for b in range(batch_tile):                          # static unroll (small)
        m = mask_ref[b]                                  # (1, HW)

        x_embed = jnp.dot(m, mx, preferred_element_type=jnp.float32)
        y_embed = jnp.dot(m, my, preferred_element_type=jnp.float32)

        if normalize:
            den_x = jnp.dot(m, cx, preferred_element_type=jnp.float32)
            den_y = jnp.dot(m, cy, preferred_element_type=jnp.float32)
            # Same op order as PyTorch: embed / (denom + eps) * scale.
            x_embed = x_embed / (den_x + 1e-6) * scale
            y_embed = y_embed / (den_y + 1e-6) * scale

        # Fused lane-dense pass: one sin over the full (2D, HW) tile and one
        # unmasked full-tile store per batch element.
        emb = jnp.where(is_x, x_embed, y_embed)          # (2D, HW)
        out_ref[b] = jnp.sin(emb * inv_dim_t + phase).astype(out_ref.dtype)


def _pick_batch_tile(batch, max_tile=8):
    """Largest divisor of `batch` that keeps >= 2 grid steps (so several
    TensorCores get work) and stays <= max_tile."""
    if batch <= 1:
        return 1
    best = 1
    for bt in range(1, min(batch // 2, max_tile) + 1):
        if batch % bt == 0:
            best = bt
    return best


def detr_sine_position_embedding(pixel_values, pixel_mask, *,
                                 embedding_dim=64, temperature=10000,
                                 normalize=False, scale=None,
                                 batch_tile=None):
    """Matches DetrSinePositionEmbedding.forward.

    pixel_values: (B, C, H, W) -- only used by PyTorch for device/dtype.
    pixel_mask  : (B, H, W) binary mask.
    Returns     : (B, 2*embedding_dim, H, W) float32 (NCHW, like PyTorch).
    """
    if pixel_mask is None:
        raise ValueError("No pixel mask provided.")
    if scale is None:
        scale = 2 * math.pi
    B, H, W = pixel_mask.shape
    D = embedding_dim
    HW = H * W

    if batch_tile is None:
        batch_tile = _pick_batch_tile(B)
    assert B % batch_tile == 0

    # Flattened, lane-dense mask (free, contiguous reshape).
    mask_f32 = pixel_mask.astype(jnp.float32).reshape(B, 1, HW)

    # dim_t with EXACTLY the reference formula (computed once on D scalars);
    # channel layout is [x: d=0..D-1, y: d=0..D-1], phase 0 / pi/2 turns the
    # odd-channel cos into a sin.
    d = jnp.arange(D, dtype=jnp.float32)
    dim_t = temperature ** (2.0 * jnp.floor(d / 2.0) / D)          # (D,)
    inv_dim_t = (1.0 / dim_t).reshape(D, 1)
    inv_dim_t_full = jnp.concatenate([inv_dim_t, inv_dim_t], axis=0)  # (2D, 1)
    phase = (d % 2.0).reshape(D, 1) * (math.pi / 2.0)
    phase_full = jnp.concatenate([phase, phase], axis=0)              # (2D, 1)

    kernel = functools.partial(
        _sine_pos_kernel, H=H, W=W, D=D, batch_tile=batch_tile,
        normalize=normalize, scale=float(scale))

    out_flat = pl.pallas_call(
        kernel,
        out_shape=jax.ShapeDtypeStruct((B, 2 * D, HW), jnp.float32),
        grid_spec=pltpu.PrefetchScalarGridSpec(
            num_scalar_prefetch=0,
            grid=(B // batch_tile,),
            in_specs=[
                pl.BlockSpec((batch_tile, 1, HW), lambda i: (i, 0, 0)),
                pl.BlockSpec((2 * D, 1), lambda i: (0, 0)),
                pl.BlockSpec((2 * D, 1), lambda i: (0, 0)),
            ],
            out_specs=pl.BlockSpec((batch_tile, 2 * D, HW),
                                   lambda i: (i, 0, 0)),
        ),
        compiler_params=pltpu.CompilerParams(
            dimension_semantics=("parallel",)),
    )(mask_f32, inv_dim_t_full, phase_full)

    # (B, 2D, H*W) -> (B, 2D, H, W): contiguous row-major reshape, free.
    return out_flat.reshape(B, 2 * D, H, W)


def _reference(pixel_mask, D, temperature, normalize, scale):
    """Pure-JAX port of the PyTorch forward for verification."""
    m = pixel_mask.astype(jnp.float32)
    y_embed = jnp.cumsum(m, axis=1)
    x_embed = jnp.cumsum(m, axis=2)
    if normalize:
        y_embed = y_embed / (y_embed[:, -1:, :] + 1e-6) * scale
        x_embed = x_embed / (x_embed[:, :, -1:] + 1e-6) * scale
    dim_t = jnp.arange(D, dtype=jnp.float32)
    dim_t = temperature ** (2 * jnp.floor(dim_t / 2) / D)
    pos_x = x_embed[..., None] / dim_t
    pos_y = y_embed[..., None] / dim_t
    B, H, W = pixel_mask.shape
    pos_x = jnp.stack((jnp.sin(pos_x[..., 0::2]), jnp.cos(pos_x[..., 1::2])),
                      axis=-1).reshape(B, H, W, -1)
    pos_y = jnp.stack((jnp.sin(pos_y[..., 0::2]), jnp.cos(pos_y[..., 1::2])),
                      axis=-1).reshape(B, H, W, -1)
    pos = jnp.concatenate((pos_x, pos_y), axis=3).transpose(0, 3, 1, 2)
    return pos


if __name__ == "__main__":
    key = jax.random.PRNGKey(0)
    B, C, H, W = 2, 4, 16, 16
    D = 64
    k1, k2 = jax.random.split(key)
    pixel_values = jax.random.normal(k1, (B, C, H, W), dtype=jnp.float32)
    pixel_mask = (jax.random.uniform(k2, (B, H, W)) > 0.3).astype(jnp.int32)

    ok = True
    for normalize in (False, True):
        out = detr_sine_position_embedding(
            pixel_values, pixel_mask, embedding_dim=D,
            temperature=10000, normalize=normalize)
        out = jax.block_until_ready(out)
        ref = _reference(pixel_mask, D, 10000, normalize, 2 * math.pi)
        if out.shape != (B, 2 * D, H, W):
            ok = False
        if not jnp.allclose(out, ref, atol=2e-5, rtol=2e-5):
            ok = False

    if ok:
        print("KERNEL_OK")
    else:
        print("KERNEL_MISMATCH")
</pallas_src>

<mosaic_0001>
module attributes {stable_mosaic.version = 11 : i64} {
  func.func @_sine_pos_kernel(%arg0: i32, %arg1: memref<1x1x256xf32, #tpu.memory_space<vmem>>, %arg2: memref<128x1xf32, #tpu.memory_space<vmem>>, %arg3: memref<128x1xf32, #tpu.memory_space<vmem>>, %arg4: memref<1x128x256xf32, #tpu.memory_space<vmem>>) attributes {dimension_semantics = [#tpu.dimension_semantics<parallel>], iteration_bounds = array<i64: 2>, scalar_prefetch = 0 : i64, scratch_operands = 0 : i64, tpu.core_type = #tpu.core_type<tc>, window_params = [{transform_indices = @transform_0, window_bounds = array<i64: 1, 1, 256>}, {pipeline_mode = #tpu.pipeline_mode<synchronous>, transform_indices = @transform_1, window_bounds = array<i64: 128, 1>}, {pipeline_mode = #tpu.pipeline_mode<synchronous>, transform_indices = @transform_2, window_bounds = array<i64: 128, 1>}, {transform_indices = @transform_3, window_bounds = array<i64: 1, 128, 256>}]} {
    %c0 = arith.constant 0 : index
    %c0_0 = arith.constant 0 : index
    %0 = vector.load %arg2[%c0, %c0_0] : memref<128x1xf32, #tpu.memory_space<vmem>>, vector<128x1xf32>
    %c0_1 = arith.constant 0 : index
    %c0_2 = arith.constant 0 : index
    %1 = vector.load %arg3[%c0_1, %c0_2] : memref<128x1xf32, #tpu.memory_space<vmem>>, vector<128x1xf32>
    %2 = tpu.iota {dimensions = array<i32: 0>} : vector<128x1xi32>
    %c64_i32 = arith.constant 64 : i32
    %3 = vector.broadcast %c64_i32 : i32 to vector<128x1xi32>
    %4 = arith.cmpi slt, %2, %3 : vector<128x1xi32>
    %5 = tpu.iota {dimensions = array<i32: 0>} : vector<256x256xi32>
    %6 = arith.sitofp %5 : vector<256x256xi32> to vector<256x256xf32>
    %7 = tpu.iota {dimensions = array<i32: 1>} : vector<256x256xi32>
    %8 = arith.sitofp %7 : vector<256x256xi32> to vector<256x256xf32>
    %cst = arith.constant 5.000000e-01 : f32
    %9 = vector.broadcast %cst : f32 to vector<256x256xf32>
    %10 = arith.addf %6, %9 : vector<256x256xf32>
    %cst_3 = arith.constant 6.250000e-02 : f32
    %11 = vector.broadcast %cst_3 : f32 to vector<256x256xf32>
    %12 = arith.mulf %10, %11 : vector<256x256xf32>
    %13 = math.floor %12 : vector<256x256xf32>
    %cst_4 = arith.constant 5.000000e-01 : f32
    %14 = vector.broadcast %cst_4 : f32 to vector<256x256xf32>
    %15 = arith.addf %8, %14 : vector<256x256xf32>
    %cst_5 = arith.constant 6.250000e-02 : f32
    %16 = vector.broadcast %cst_5 : f32 to vector<256x256xf32>
    %17 = arith.mulf %15, %16 : vector<256x256xf32>
    %18 = math.floor %17 : vector<256x256xf32>
    %cst_6 = arith.constant 1.600000e+01 : f32
    %19 = vector.broadcast %cst_6 : f32 to vector<256x256xf32>
    %20 = arith.mulf %13, %19 : vector<256x256xf32>
    %21 = arith.subf %6, %20 : vector<256x256xf32>
    %cst_7 = arith.constant 1.600000e+01 : f32
    %22 = vector.broadcast %cst_7 : f32 to vector<256x256xf32>
    %23 = arith.mulf %18, %22 : vector<256x256xf32>
    %24 = arith.subf %8, %23 : vector<256x256xf32>
    %25 = arith.cmpf oeq, %13, %18 : vector<256x256xf32>
    %26 = arith.cmpf oeq, %21, %24 : vector<256x256xf32>
    %27 = arith.cmpf ole, %21, %24 : vector<256x256xf32>
    %28 = arith.andi %25, %27 : vector<256x256xi1>
    %29 = arith.extui %28 : vector<256x256xi1> to vector<256x256xi32>
    %30 = arith.sitofp %29 : vector<256x256xi32> to vector<256x256xf32>
    %31 = arith.cmpf ole, %13, %18 : vector<256x256xf32>
    %32 = arith.andi %26, %31 : vector<256x256xi1>
    %33 = arith.extui %32 : vector<256x256xi1> to vector<256x256xi32>
    %34 = arith.sitofp %33 : vector<256x256xi32> to vector<256x256xf32>
    %c0_8 = arith.constant 0 : index
    %c0_9 = arith.constant 0 : index
    %c0_10 = arith.constant 0 : index
    %35 = vector.load %arg1[%c0_8, %c0_9, %c0_10] : memref<1x1x256xf32, #tpu.memory_space<vmem>>, vector<1x1x256xf32>
    %36 = vector.shape_cast %35 : vector<1x1x256xf32> to vector<1x256xf32>
    %cst_11 = arith.constant dense<0.000000e+00> : vector<1x256xf32>
    %37 = tpu.matmul %36, %30, %cst_11 {dimension_numbers = #tpu.dot_dimension_numbers<[1], [0], [0], [1], [0, 0, 1, 1], [], []>} : vector<1x256xf32>, vector<256x256xf32>, vector<1x256xf32> -> vector<1x256xf32>
    %cst_12 = arith.constant dense<0.000000e+00> : vector<1x256xf32>
    %38 = tpu.matmul %36, %34, %cst_12 {dimension_numbers = #tpu.dot_dimension_numbers<[1], [0], [0], [1], [0, 0, 1, 1], [], []>} : vector<1x256xf32>, vector<256x256xf32>, vector<1x256xf32> -> vector<1x256xf32>
    %39 = vector.shape_cast %4 : vector<128x1xi1> to vector<128x1xi1>
    %40 = vector.broadcast %39 : vector<128x1xi1> to vector<128x256xi1>
    %41 = vector.shape_cast %37 : vector<1x256xf32> to vector<1x256xf32>
    %42 = vector.broadcast %41 : vector<1x256xf32> to vector<128x256xf32>
    %43 = vector.shape_cast %38 : vector<1x256xf32> to vector<1x256xf32>
    %44 = vector.broadcast %43 : vector<1x256xf32> to vector<128x256xf32>
    %45 = arith.select %40, %42, %44 : vector<128x256xi1>, vector<128x256xf32>
    %46 = vector.broadcast %0 : vector<128x1xf32> to vector<128x256xf32>
    %47 = arith.mulf %45, %46 : vector<128x256xf32>
    %48 = vector.broadcast %1 : vector<128x1xf32> to vector<128x256xf32>
    %49 = arith.addf %47, %48 : vector<128x256xf32>
    %50 = math.sin %49 : vector<128x256xf32>
    %c0_13 = arith.constant 0 : index
    %c0_14 = arith.constant 0 : index
    %c0_15 = arith.constant 0 : index
    %51 = vector.load %arg4[%c0_13, %c0_14, %c0_15] : memref<1x128x256xf32, #tpu.memory_space<vmem>>, vector<1x128x256xf32>
    %52 = vector.shape_cast %51 : vector<1x128x256xf32> to vector<128x256xf32>
    %53 = vector.shape_cast %50 : vector<128x256xf32> to vector<1x128x256xf32>
    tpu.vector_store %arg4[%c0_13, %c0_14, %c0_15], %53 {strides = array<i32>} : memref<1x128x256xf32, #tpu.memory_space<vmem>>, vector<1x128x256xf32>,
    return
  }
  func.func @transform_0(%arg0: i32) -> (i32, i32, i32) {
    %c0_i32 = arith.constant 0 : i32
    %c0_i32_0 = arith.constant 0 : i32
    %c0_i32_1 = arith.constant 0 : i32
    return %arg0, %c0_i32, %c0_i32_0 : i32, i32, i32
  }
  func.func @transform_1(%arg0: i32) -> (i32, i32) {
    %c0_i32 = arith.constant 0 : i32
    %c0_i32_0 = arith.constant 0 : i32
    %c0_i32_1 = arith.constant 0 : i32
    return %c0_i32, %c0_i32_0 : i32, i32
  }
  func.func @transform_2(%arg0: i32) -> (i32, i32) {
    %c0_i32 = arith.constant 0 : i32
    %c0_i32_0 = arith.constant 0 : i32
    %c0_i32_1 = arith.constant 0 : i32
    return %c0_i32, %c0_i32_0 : i32, i32
  }
  func.func @transform_3(%arg0: i32) -> (i32, i32, i32) {
    %c0_i32 = arith.constant 0 : i32
    %c0_i32_0 = arith.constant 0 : i32
    %c0_i32_1 = arith.constant 0 : i32
    return %arg0, %c0_i32, %c0_i32_0 : i32, i32, i32
  }
}

</mosaic_0001>

<llo_original>
// kernel: tpu_custom_call.1
$region0: #{tpu_custom_call.1}
  #allocation0 [shape = 'u32[]', space=smem, size = 0x4, offset = 0x4, fixed_abs, tag = 'smem constant byte address 0x4 - core index']
  #allocation1 [shape = 'u32[144,128]{1,0:T(1,128)}', space=vmem, size = 0x12000, scoped, tag = 'internal scratch']
  %s0 = inlined_call_operand.vmem [shape: f32[2,1,256], index: 0, kind: input, shape index: {}]
  %s1 = inlined_call_operand.vmem [shape: f32[128,1], index: 1, kind: input, shape index: {}]
  %s2 = inlined_call_operand.vmem [shape: f32[128,1], index: 2, kind: input, shape index: {}]
  %s3 = inlined_call_operand.hbm [shape: f32[2,128,256], index: 3, kind: output, shape index: {}]
  %s4 = sld [smem:[#allocation0]]
  $region45: #{tpu_custom_call.1} parent=0
    _
  %s6 = ssub.s32 1, %s4
  %s7 = scalar_select 0, %s6, %s4
  $region1: #{tpu_custom_call.1} parent=0
    #allocation2 [shape = 'u8[262144]{0}', space=vmem, size = 0x40000, scoped, tag = 'output window, operand 0']
    #allocation3 [shape = 's32[2]{0}', space=sflag, size = 0x8, scoped, tag = 'scoped memory for tpu_custom_call.1']
    %8 = vsyncpa [#allocation3], 0
    %s9 = scalar_lea.sflag [#allocation3], 1
    %10 = vsyncpa %s9, 0
    loop: start=0, step=1, limit=4
    $region2: #{tpu_custom_call.1} parent=1 // loop_pre_header
      _
    $region3: #{tpu_custom_call.1} parent=1 // loop_header
      %s12 = sphi 0, %s16
      %p13 = scmp.ge.s32.totalorder %s12, 4
      %s22 = sphi 0, %s24
      %s25 = sphi 0, %s22
      %s26 = sphi 0, %s25
      %s42 = sphi 0, %s26
      %s46 = sphi 0, %s46
      %s48 = sphi 0, %s46
      %s49 = sphi 0, %s48
      %s63 = sphi 0, %s49
      %s67 = sphi 0, %s67
      %s69 = sphi 0, %s67
      %s70 = sphi 0, %s69
      %s84 = sphi 0, %s70
      %s90 = sphi 0, %s92
      %s93 = sphi 0, %s90
      %s94 = sphi 0, %s93
      %s110 = sphi 0, %s94
    $region4: #{tpu_custom_call.1} parent=1 // loop_header_branch
      %15 = sbr.rel (%p13) target = $region8
    $region5: #{tpu_custom_call.1} parent=1 // loop_body
      %s17 = ssub.s32 %s12, 1
      %s18 = ssub.s32 %s12, 2
      %s19 = sadd.s32 %s12, 1
      %s20 = ssub.s32 %s12, %s19
      %p21 = scmp.eq.s32.totalorder %s20, 0
      %s23 = sadd.s32 %s22, 1
      %s24 = scalar_select %p21, %s22, %s23
      %p27 = pneg %p21
      %p28 = scmp.eq.s32.totalorder %s12, 1
      %p29 = por %p27, %p28
      %p30 = scmp.ne.s32.totalorder %s22, %s25
      %p31 = scmp.eq.s32.totalorder %s12, 0
      %p32 = por %p30, %p31
      %p33 = scmp.ne.s32.totalorder %s22, %s25
      %p34 = scmp.eq.s32.totalorder %s17, 1
      %p35 = por %p33, %p34
      %p36 = scmp.ne.s32.totalorder %s25, %s26
      %p37 = scmp.eq.s32.totalorder %s17, 0
      %p38 = por %p36, %p37
      %p39 = scmp.ne.s32.totalorder %s25, %s26
      %p40 = scmp.eq.s32.totalorder %s18, 1
      %p41 = por %p39, %p40
      %p43 = scmp.ne.s32.totalorder %s26, %s42
      %p44 = scmp.eq.s32.totalorder %s18, 0
      %p45 = por %p43, %p44
      %s47 = sadd.s32 %s46, 1
      %p50 = scmp.eq.s32.totalorder %s12, 1
      %p51 = scmp.ne.s32.totalorder %s46, %s48
      %p52 = scmp.eq.s32.totalorder %s12, 0
      %p53 = por %p51, %p52
      %p54 = scmp.ne.s32.totalorder %s46, %s48
      %p55 = scmp.eq.s32.totalorder %s17, 1
      %p56 = por %p54, %p55
      %p57 = scmp.ne.s32.totalorder %s48, %s49
      %p58 = scmp.eq.s32.totalorder %s17, 0
      %p59 = por %p57, %p58
      %p60 = scmp.ne.s32.totalorder %s48, %s49
      %p61 = scmp.eq.s32.totalorder %s18, 1
      %p62 = por %p60, %p61
      %p64 = scmp.ne.s32.totalorder %s49, %s63
      %p65 = scmp.eq.s32.totalorder %s18, 0
      %p66 = por %p64, %p65
      %s68 = sadd.s32 %s67, 1
      %p71 = scmp.eq.s32.totalorder %s12, 1
      %p72 = scmp.ne.s32.totalorder %s67, %s69
      %p73 = scmp.eq.s32.totalorder %s12, 0
      %p74 = por %p72, %p73
      %p75 = scmp.ne.s32.totalorder %s67, %s69
      %p76 = scmp.eq.s32.totalorder %s17, 1
      %p77 = por %p75, %p76
      %p78 = scmp.ne.s32.totalorder %s69, %s70
      %p79 = scmp.eq.s32.totalorder %s17, 0
      %p80 = por %p78, %p79
      %p81 = scmp.ne.s32.totalorder %s69, %s70
      %p82 = scmp.eq.s32.totalorder %s18, 1
      %p83 = por %p81, %p82
      %p85 = scmp.ne.s32.totalorder %s70, %s84
      %p86 = scmp.eq.s32.totalorder %s18, 0
      %p87 = por %p85, %p86
      %s88 = ssub.s32 %s12, %s19
      %p89 = scmp.eq.s32.totalorder %s88, 0
      %s91 = sadd.s32 %s90, 1
      %s92 = scalar_select %p89, %s90, %s91
      %p95 = pneg %p89
      %p96 = scmp.eq.s32.totalorder %s12, 1
      %p97 = por %p95, %p96
      %p98 = scmp.ne.s32.totalorder %s90, %s93
      %p99 = scmp.eq.s32.totalorder %s12, 0
      %p100 = por %p98, %p99
      %p101 = scmp.ne.s32.totalorder %s90, %s93
      %p102 = scmp.eq.s32.totalorder %s17, 1
      %p103 = por %p101, %p102
      %p104 = scmp.ne.s32.totalorder %s93, %s94
      %p105 = scmp.eq.s32.totalorder %s17, 0
      %p106 = por %p104, %p105
      %p107 = scmp.ne.s32.totalorder %s93, %s94
      %p108 = scmp.eq.s32.totalorder %s18, 1
      %p109 = por %p107, %p108
      %p111 = scmp.ne.s32.totalorder %s94, %s110
      %p112 = scmp.eq.s32.totalorder %s18, 0
      %p113 = por %p111, %p112
      %p114 = scmp.le.s32.totalorder 1, %s12
      %p115 = scmp.lt.s32.totalorder %s12, 3
      %p116 = pnand %p114, %p115
      %p117 = pneg %p116
      // Predicated region
      $region9: #{tpu_custom_call.1} parent=5 // pred_check
        _
      $region10: #{tpu_custom_call.1} parent=5 // pred_check_branch
        %119 = sbr.rel (%p116) target = $region12
      $region11: #{tpu_custom_call.1} parent=5 // pred_region
        %s120 = ssub.s32 %s12, 1
        // Predicated region
        $region13: #{tpu_custom_call.1} parent=11 // pred_check
          %p121 = pneg %p59
        $region14: #{tpu_custom_call.1} parent=11 // pred_check_branch
          %123 = sbr.rel (%p121) target = $region16
        $region15: #{tpu_custom_call.1} parent=11 // pred_region
          _
        $region16: #{tpu_custom_call.1} parent=11 // pred_fallthru
          _
        // Predicated region
        $region17: #{tpu_custom_call.1} parent=11 // pred_check
          %p124 = pneg %p80
        $region18: #{tpu_custom_call.1} parent=11 // pred_check_branch
          %126 = sbr.rel (%p124) target = $region20
        $region19: #{tpu_custom_call.1} parent=11 // pred_region
          _
        $region20: #{tpu_custom_call.1} parent=11 // pred_fallthru
          _
      $region12: #{tpu_custom_call.1} parent=5 // pred_fallthru
        _
      %p127 = scmp.lt.s32.totalorder %s12, 2
      // Predicated region
      $region21: #{tpu_custom_call.1} parent=5 // pred_check
        %p128 = pneg %p127
      $region22: #{tpu_custom_call.1} parent=5 // pred_check_branch
        %130 = sbr.rel (%p128) target = $region24
      $region23: #{tpu_custom_call.1} parent=5 // pred_region
        // Predicated region
        $region25: #{tpu_custom_call.1} parent=23 // pred_check
          %p131 = pneg %p32
        $region26: #{tpu_custom_call.1} parent=23 // pred_check_branch
          %133 = sbr.rel (%p131) target = $region28
        $region27: #{tpu_custom_call.1} parent=23 // pred_region
          %p134 = scmp.lt.s32.totalorder %s12, 1
          %s135 = scalar_select %p134, %s12, 1
          %s136 = smul.addr %s135, 2
          %s137 = scalar_lea.vmem %s0, %s136
        $region28: #{tpu_custom_call.1} parent=23 // pred_fallthru
          _
      $region24: #{tpu_custom_call.1} parent=5 // pred_fallthru
        _
      %p138 = scmp.le.s32.totalorder 1, %s12
      %p139 = scmp.lt.s32.totalorder %s12, 3
      %p140 = pnand %p138, %p139
      %p141 = pneg %p140
      // Predicated region
      $region29: #{tpu_custom_call.1} parent=5 // pred_check
        _
      $region30: #{tpu_custom_call.1} parent=5 // pred_check_branch
        %143 = sbr.rel (%p140) target = $region32
      $region31: #{tpu_custom_call.1} parent=5 // pred_region
        %s144 = ssub.s32 %s12, 1
        %p145 = scmp.lt.s32.totalorder %s17, 1
        %s146 = scalar_select %p145, %s17, 1
        %s147 = smul.addr %s146, 2
        %s148 = scalar_lea.vmem %s0, %s147
        %p149 = pneg %p38
        %p150 = pneg %p35
        %p151 = pneg %p59
        %p152 = pneg %p56
        %p153 = pneg %p80
        %p154 = pneg %p77
        %p155 = pneg %p106
        %p156 = pneg %p103
        %s157 = sand.u32 %s93, 1
        %s158 = scalar_lea.sflag [#allocation3], %s157
        %s159 = sand.u32 %s93, 1
        %s160 = smul.addr %s159, 256
        %s161 = scalar_lea.vmem [#allocation2], %s160
        %p162 = scmp.lt.s32.totalorder %s17, 1
        %s163 = scalar_select %p162, %s17, 1
        %s164 = smul.addr %s163, 2
        %s165 = scalar_lea.vmem %s0, %s164
        %v166 = vld [vmem:[%s1] sm:$0xff]
        %v167 = vld [vmem:[%s1 + $0x8] sm:$0xff]
        %v168 = vld [vmem:[%s1 + $0x10] sm:$0xff]
        %v169 = vld [vmem:[%s1 + $0x18] sm:$0xff]
        %v170 = vld [vmem:[%s1 + $0x20] sm:$0xff]
        %v171 = vld [vmem:[%s1 + $0x28] sm:$0xff]
        %v172 = vld [vmem:[%s1 + $0x30] sm:$0xff]
        %v173 = vld [vmem:[%s1 + $0x38] sm:$0xff]
        %v174 = vld [vmem:[%s1 + $0x40] sm:$0xff]
        %v175 = vld [vmem:[%s1 + $0x48] sm:$0xff]
        %v176 = vld [vmem:[%s1 + $0x50] sm:$0xff]
        %v177 = vld [vmem:[%s1 + $0x58] sm:$0xff]
        %v178 = vld [vmem:[%s1 + $0x60] sm:$0xff]
        %v179 = vld [vmem:[%s1 + $0x68] sm:$0xff]
        %v180 = vld [vmem:[%s1 + $0x70] sm:$0xff]
        %v181 = vld [vmem:[%s1 + $0x78] sm:$0xff]
        %v182 = vld [vmem:[%s2] sm:$0xff]
        %v183 = vld [vmem:[%s2 + $0x8] sm:$0xff]
        %v184 = vld [vmem:[%s2 + $0x10] sm:$0xff]
        %v185 = vld [vmem:[%s2 + $0x18] sm:$0xff]
        %v186 = vld [vmem:[%s2 + $0x20] sm:$0xff]
        %v187 = vld [vmem:[%s2 + $0x28] sm:$0xff]
        %v188 = vld [vmem:[%s2 + $0x30] sm:$0xff]
        %v189 = vld [vmem:[%s2 + $0x38] sm:$0xff]
        %v190 = vld [vmem:[%s2 + $0x40] sm:$0xff]
        %v191 = vld [vmem:[%s2 + $0x48] sm:$0xff]
        %v192 = vld [vmem:[%s2 + $0x50] sm:$0xff]
        %v193 = vld [vmem:[%s2 + $0x58] sm:$0xff]
        %v194 = vld [vmem:[%s2 + $0x60] sm:$0xff]
        %v195 = vld [vmem:[%s2 + $0x68] sm:$0xff]
        %v196 = vld [vmem:[%s2 + $0x70] sm:$0xff]
        %v197 = vld [vmem:[%s2 + $0x78] sm:$0xff]
        %v198 = vlaneseq
        %v199 = vshrl.u32 %v198, 7
        %v200 = vadd.s32 %v199, 8
        %v201 = vadd.s32 %v199, 16
        %v202 = vadd.s32 %v199, 24
        %v203 = vadd.s32 %v199, 32
        %v204 = vadd.s32 %v199, 40
        %v205 = vadd.s32 %v199, 48
        %v206 = vadd.s32 %v199, 56
        %v207 = vadd.s32 %v199, 64
        %v208 = vadd.s32 %v199, 72
        %v209 = vadd.s32 %v199, 80
        %v210 = vadd.s32 %v199, 88
        %v211 = vadd.s32 %v199, 96
        %v212 = vadd.s32 %v199, 104
        %v213 = vadd.s32 %v199, 112
        %v214 = vadd.s32 %v199, 120
        %vm215 = vcmp.lt.s32.totalorder %v199, 64
        %vm216 = vcmp.lt.s32.totalorder %v200, 64
        %vm217 = vcmp.lt.s32.totalorder %v201, 64
        %vm218 = vcmp.lt.s32.totalorder %v202, 64
        %vm219 = vcmp.lt.s32.totalorder %v203, 64
        %vm220 = vcmp.lt.s32.totalorder %v204, 64
        %vm221 = vcmp.lt.s32.totalorder %v205, 64
        %vm222 = vcmp.lt.s32.totalorder %v206, 64
        %vm223 = vcmp.lt.s32.totalorder %v207, 64
        %vm224 = vcmp.lt.s32.totalorder %v208, 64
        %vm225 = vcmp.lt.s32.totalorder %v209, 64
        %vm226 = vcmp.lt.s32.totalorder %v210, 64
        %vm227 = vcmp.lt.s32.totalorder %v211, 64
        %vm228 = vcmp.lt.s32.totalorder %v212, 64
        %vm229 = vcmp.lt.s32.totalorder %v213, 64
        %vm230 = vcmp.lt.s32.totalorder %v214, 64
        %v231 = vadd.s32 %v199, 128
        %v232 = vadd.s32 %v199, 136
        %v233 = vadd.s32 %v199, 144
        %v234 = vadd.s32 %v199, 152
        %v235 = vadd.s32 %v199, 160
        %v236 = vadd.s32 %v199, 168
        %v237 = vadd.s32 %v199, 176
        %v238 = vadd.s32 %v199, 184
        %v239 = vadd.s32 %v199, 192
        %v240 = vadd.s32 %v199, 200
        %v241 = vadd.s32 %v199, 208
        %v242 = vadd.s32 %v199, 216
        %v243 = vadd.s32 %v199, 224
        %v244 = vadd.s32 %v199, 232
        %v245 = vadd.s32 %v199, 240
        %v246 = vadd.s32 %v199, 248
        %v247 = vcvt.s32.f32 %v199
        %v248 = vcvt.s32.f32 %v200
        %v249 = vcvt.s32.f32 %v201
        %v250 = vcvt.s32.f32 %v202
        %v251 = vcvt.s32.f32 %v203
        %v252 = vcvt.s32.f32 %v204
        %v253 = vcvt.s32.f32 %v205
        %v254 = vcvt.s32.f32 %v206
        %v255 = vcvt.s32.f32 %v207
        %v256 = vcvt.s32.f32 %v208
        %v257 = vcvt.s32.f32 %v209
        %v258 = vcvt.s32.f32 %v210
        %v259 = vcvt.s32.f32 %v211
        %v260 = vcvt.s32.f32 %v212
        %v261 = vcvt.s32.f32 %v213
        %v262 = vcvt.s32.f32 %v214
        %v263 = vcvt.s32.f32 %v231
        %v264 = vcvt.s32.f32 %v232
        %v265 = vcvt.s32.f32 %v233
        %v266 = vcvt.s32.f32 %v234
        %v267 = vcvt.s32.f32 %v235
        %v268 = vcvt.s32.f32 %v236
        %v269 = vcvt.s32.f32 %v237
        %v270 = vcvt.s32.f32 %v238
        %v271 = vcvt.s32.f32 %v239
        %v272 = vcvt.s32.f32 %v240
        %v273 = vcvt.s32.f32 %v241
        %v274 = vcvt.s32.f32 %v242
        %v275 = vcvt.s32.f32 %v243
        %v276 = vcvt.s32.f32 %v244
        %v277 = vcvt.s32.f32 %v245
        %v278 = vcvt.s32.f32 %v246
        %v279 = vlaneseq
        %v280 = vand.u32 %v279, 127
        %v281 = vadd.s32 %v280, 128
        %v282 = vcvt.s32.f32 %v280
        %v283 = vcvt.s32.f32 %v281
        %v284 = vadd.f32 %v247, 0.5
        %v285 = vadd.f32 %v248, 0.5
        %v286 = vadd.f32 %v249, 0.5
        %v287 = vadd.f32 %v250, 0.5
        %v288 = vadd.f32 %v251, 0.5
        %v289 = vadd.f32 %v252, 0.5
        %v290 = vadd.f32 %v253, 0.5
        %v291 = vadd.f32 %v254, 0.5
        %v292 = vadd.f32 %v255, 0.5
        %v293 = vadd.f32 %v256, 0.5
        %v294 = vadd.f32 %v257, 0.5
        %v295 = vadd.f32 %v258, 0.5
        %v296 = vadd.f32 %v259, 0.5
        %v297 = vadd.f32 %v260, 0.5
        %v298 = vadd.f32 %v261, 0.5
        %v299 = vadd.f32 %v262, 0.5
        %v300 = vadd.f32 %v263, 0.5
        %v301 = vadd.f32 %v264, 0.5
        %v302 = vadd.f32 %v265, 0.5
        %v303 = vadd.f32 %v266, 0.5
        %v304 = vadd.f32 %v267, 0.5
        %v305 = vadd.f32 %v268, 0.5
        %v306 = vadd.f32 %v269, 0.5
        %v307 = vadd.f32 %v270, 0.5
        %v308 = vadd.f32 %v271, 0.5
        %v309 = vadd.f32 %v272, 0.5
        %v310 = vadd.f32 %v273, 0.5
        %v311 = vadd.f32 %v274, 0.5
        %v312 = vadd.f32 %v275, 0.5
        %v313 = vadd.f32 %v276, 0.5
        %v314 = vadd.f32 %v277, 0.5
        %v315 = vadd.f32 %v278, 0.5
        %v316 = vmul.f32 %v284, 0.0625
        %v317 = vmul.f32 %v285, 0.0625
        %v318 = vmul.f32 %v286, 0.0625
        %v319 = vmul.f32 %v287, 0.0625
        %v320 = vmul.f32 %v288, 0.0625
        %v321 = vmul.f32 %v289, 0.0625
        %v322 = vmul.f32 %v290, 0.0625
        %v323 = vmul.f32 %v291, 0.0625
        %v324 = vmul.f32 %v292, 0.0625
        %v325 = vmul.f32 %v293, 0.0625
        %v326 = vmul.f32 %v294, 0.0625
        %v327 = vmul.f32 %v295, 0.0625
        %v328 = vmul.f32 %v296, 0.0625
        %v329 = vmul.f32 %v297, 0.0625
        %v330 = vmul.f32 %v298, 0.0625
        %v331 = vmul.f32 %v299, 0.0625
        %v332 = vmul.f32 %v300, 0.0625
        %v333 = vmul.f32 %v301, 0.0625
        %v334 = vmul.f32 %v302, 0.0625
        %v335 = vmul.f32 %v303, 0.0625
        %v336 = vmul.f32 %v304, 0.0625
        %v337 = vmul.f32 %v305, 0.0625
        %v338 = vmul.f32 %v306, 0.0625
        %v339 = vmul.f32 %v307, 0.0625
        %v340 = vmul.f32 %v308, 0.0625
        %v341 = vmul.f32 %v309, 0.0625
        %v342 = vmul.f32 %v310, 0.0625
        %v343 = vmul.f32 %v311, 0.0625
        %v344 = vmul.f32 %v312, 0.0625
        %v345 = vmul.f32 %v313, 0.0625
        %v346 = vmul.f32 %v314, 0.0625
        %v347 = vmul.f32 %v315, 0.0625
        %v348 = vfloor.f32 %v316
        %v349 = vfloor.f32 %v317
        %v350 = vfloor.f32 %v318
        %v351 = vfloor.f32 %v319
        %v352 = vfloor.f32 %v320
        %v353 = vfloor.f32 %v321
        %v354 = vfloor.f32 %v322
        %v355 = vfloor.f32 %v323
        %v356 = vfloor.f32 %v324
        %v357 = vfloor.f32 %v325
        %v358 = vfloor.f32 %v326
        %v359 = vfloor.f32 %v327
        %v360 = vfloor.f32 %v328
        %v361 = vfloor.f32 %v329
        %v362 = vfloor.f32 %v330
        %v363 = vfloor.f32 %v331
        %v364 = vfloor.f32 %v332
        %v365 = vfloor.f32 %v333
        %v366 = vfloor.f32 %v334
        %v367 = vfloor.f32 %v335
        %v368 = vfloor.f32 %v336
        %v369 = vfloor.f32 %v337
        %v370 = vfloor.f32 %v338
        %v371 = vfloor.f32 %v339
        %v372 = vfloor.f32 %v340
        %v373 = vfloor.f32 %v341
        %v374 = vfloor.f32 %v342
        %v375 = vfloor.f32 %v343
        %v376 = vfloor.f32 %v344
        %v377 = vfloor.f32 %v345
        %v378 = vfloor.f32 %v346
        %v379 = vfloor.f32 %v347
        %v380 = vadd.f32 %v282, 0.5
        %v381 = vadd.f32 %v283, 0.5
        %v382 = vmul.f32 %v380, 0.0625
        %v383 = vmul.f32 %v381, 0.0625
        %v384 = vfloor.f32 %v382
        %v385 = vfloor.f32 %v383
        %v386 = vmul.f32 %v348, 16.0
        %v387 = vmul.f32 %v349, 16.0
        %v388 = vmul.f32 %v350, 16.0
        %v389 = vmul.f32 %v351, 16.0
        %v390 = vmul.f32 %v352, 16.0
        %v391 = vmul.f32 %v353, 16.0
        %v392 = vmul.f32 %v354, 16.0
        %v393 = vmul.f32 %v355, 16.0
        %v394 = vmul.f32 %v356, 16.0
        %v395 = vmul.f32 %v357, 16.0
        %v396 = vmul.f32 %v358, 16.0
        %v397 = vmul.f32 %v359, 16.0
        %v398 = vmul.f32 %v360, 16.0
        %v399 = vmul.f32 %v361, 16.0
        %v400 = vmul.f32 %v362, 16.0
        %v401 = vmul.f32 %v363, 16.0
        %v402 = vmul.f32 %v364, 16.0
        %v403 = vmul.f32 %v365, 16.0
        %v404 = vmul.f32 %v366, 16.0
        %v405 = vmul.f32 %v367, 16.0
        %v406 = vmul.f32 %v368, 16.0
        %v407 = vmul.f32 %v369, 16.0
        %v408 = vmul.f32 %v370, 16.0
        %v409 = vmul.f32 %v371, 16.0
        %v410 = vmul.f32 %v372, 16.0
        %v411 = vmul.f32 %v373, 16.0
        %v412 = vmul.f32 %v374, 16.0
        %v413 = vmul.f32 %v375, 16.0
        %v414 = vmul.f32 %v376, 16.0
        %v415 = vmul.f32 %v377, 16.0
        %v416 = vmul.f32 %v378, 16.0
        %v417 = vmul.f32 %v379, 16.0
        %v418 = vsub.f32 %v247, %v386
        %v419 = vsub.f32 %v248, %v387
        %v420 = vsub.f32 %v249, %v388
        %v421 = vsub.f32 %v250, %v389
        %v422 = vsub.f32 %v251, %v390
        %v423 = vsub.f32 %v252, %v391
        %v424 = vsub.f32 %v253, %v392
        %v425 = vsub.f32 %v254, %v393
        %v426 = vsub.f32 %v255, %v394
        %v427 = vsub.f32 %v256, %v395
        %v428 = vsub.f32 %v257, %v396
        %v429 = vsub.f32 %v258, %v397
        %v430 = vsub.f32 %v259, %v398
        %v431 = vsub.f32 %v260, %v399
        %v432 = vsub.f32 %v261, %v400
        %v433 = vsub.f32 %v262, %v401
        %v434 = vsub.f32 %v263, %v402
        %v435 = vsub.f32 %v264, %v403
        %v436 = vsub.f32 %v265, %v404
        %v437 = vsub.f32 %v266, %v405
        %v438 = vsub.f32 %v267, %v406
        %v439 = vsub.f32 %v268, %v407
        %v440 = vsub.f32 %v269, %v408
        %v441 = vsub.f32 %v270, %v409
        %v442 = vsub.f32 %v271, %v410
        %v443 = vsub.f32 %v272, %v411
        %v444 = vsub.f32 %v273, %v412
        %v445 = vsub.f32 %v274, %v413
        %v446 = vsub.f32 %v275, %v414
        %v447 = vsub.f32 %v276, %v415
        %v448 = vsub.f32 %v277, %v416
        %v449 = vsub.f32 %v278, %v417
        %v450 = vmul.f32 %v384, 16.0
        %v451 = vmul.f32 %v385, 16.0
        %v452 = vsub.f32 %v282, %v450
        %v453 = vsub.f32 %v283, %v451
        %vm454 = vcmp.eq.f32.partialorder %v348, %v384
        %vm455 = vcmp.eq.f32.partialorder %v348, %v385
        %vm456 = vcmp.eq.f32.partialorder %v349, %v384
        %vm457 = vcmp.eq.f32.partialorder %v349, %v385
        %vm458 = vcmp.eq.f32.partialorder %v350, %v384
        %vm459 = vcmp.eq.f32.partialorder %v350, %v385
        %vm460 = vcmp.eq.f32.partialorder %v351, %v384
        %vm461 = vcmp.eq.f32.partialorder %v351, %v385
        %vm462 = vcmp.eq.f32.partialorder %v352, %v384
        %vm463 = vcmp.eq.f32.partialorder %v352, %v385
        %vm464 = vcmp.eq.f32.partialorder %v353, %v384
        %vm465 = vcmp.eq.f32.partialorder %v353, %v385
        %vm466 = vcmp.eq.f32.partialorder %v354, %v384
        %vm467 = vcmp.eq.f32.partialorder %v354, %v385
        %vm468 = vcmp.eq.f32.partialorder %v355, %v384
        %vm469 = vcmp.eq.f32.partialorder %v355, %v385
        %vm470 = vcmp.eq.f32.partialorder %v356, %v384
        %vm471 = vcmp.eq.f32.partialorder %v356, %v385
        %vm472 = vcmp.eq.f32.partialorder %v357, %v384
        %vm473 = vcmp.eq.f32.partialorder %v357, %v385
        %vm474 = vcmp.eq.f32.partialorder %v358, %v384
        %vm475 = vcmp.eq.f32.partialorder %v358, %v385
        %vm476 = vcmp.eq.f32.partialorder %v359, %v384
        %vm477 = vcmp.eq.f32.partialorder %v359, %v385
        %vm478 = vcmp.eq.f32.partialorder %v360, %v384
        %vm479 = vcmp.eq.f32.partialorder %v360, %v385
        %vm480 = vcmp.eq.f32.partialorder %v361, %v384
        %vm481 = vcmp.eq.f32.partialorder %v361, %v385
        %vm482 = vcmp.eq.f32.partialorder %v362, %v384
        %vm483 = vcmp.eq.f32.partialorder %v362, %v385
        %vm484 = vcmp.eq.f32.partialorder %v363, %v384
        %vm485 = vcmp.eq.f32.partialorder %v363, %v385
        %vm486 = vcmp.eq.f32.partialorder %v364, %v384
        %vm487 = vcmp.eq.f32.partialorder %v364, %v385
        %vm488 = vcmp.eq.f32.partialorder %v365, %v384
        %vm489 = vcmp.eq.f32.partialorder %v365, %v385
        %vm490 = vcmp.eq.f32.partialorder %v366, %v384
        %vm491 = vcmp.eq.f32.partialorder %v366, %v385
        %vm492 = vcmp.eq.f32.partialorder %v367, %v384
        %vm493 = vcmp.eq.f32.partialorder %v367, %v385
        %vm494 = vcmp.eq.f32.partialorder %v368, %v384
        %vm495 = vcmp.eq.f32.partialorder %v368, %v385
        %vm496 = vcmp.eq.f32.partialorder %v369, %v384
        %vm497 = vcmp.eq.f32.partialorder %v369, %v385
        %vm498 = vcmp.eq.f32.partialorder %v370, %v384
        %vm499 = vcmp.eq.f32.partialorder %v370, %v385
        %vm500 = vcmp.eq.f32.partialorder %v371, %v384
        %vm501 = vcmp.eq.f32.partialorder %v371, %v385
        %vm502 = vcmp.eq.f32.partialorder %v372, %v384
        %vm503 = vcmp.eq.f32.partialorder %v372, %v385
        %vm504 = vcmp.eq.f32.partialorder %v373, %v384
        %vm505 = vcmp.eq.f32.partialorder %v373, %v385
        %vm506 = vcmp.eq.f32.partialorder %v374, %v384
        %vm507 = vcmp.eq.f32.partialorder %v374, %v385
        %vm508 = vcmp.eq.f32.partialorder %v375, %v384
        %vm509 = vcmp.eq.f32.partialorder %v375, %v385
        %vm510 = vcmp.eq.f32.partialorder %v376, %v384
        %vm511 = vcmp.eq.f32.partialorder %v376, %v385
        %vm512 = vcmp.eq.f32.partialorder %v377, %v384
        %vm513 = vcmp.eq.f32.partialorder %v377, %v385
        %vm514 = vcmp.eq.f32.partialorder %v378, %v384
        %vm515 = vcmp.eq.f32.partialorder %v378, %v385
        %vm516 = vcmp.eq.f32.partialorder %v379, %v384
        %vm517 = vcmp.eq.f32.partialorder %v379, %v385
        %vm518 = vcmp.eq.f32.partialorder %v418, %v452
        %vm519 = vcmp.eq.f32.partialorder %v418, %v453
        %vm520 = vcmp.eq.f32.partialorder %v419, %v452
        %vm521 = vcmp.eq.f32.partialorder %v419, %v453
        %vm522 = vcmp.eq.f32.partialorder %v420, %v452
        %vm523 = vcmp.eq.f32.partialorder %v420, %v453
        %vm524 = vcmp.eq.f32.partialorder %v421, %v452
        %vm525 = vcmp.eq.f32.partialorder %v421, %v453
        %vm526 = vcmp.eq.f32.partialorder %v422, %v452
        %vm527 = vcmp.eq.f32.partialorder %v422, %v453
        %vm528 = vcmp.eq.f32.partialorder %v423, %v452
        %vm529 = vcmp.eq.f32.partialorder %v423, %v453
        %vm530 = vcmp.eq.f32.partialorder %v424, %v452
        %vm531 = vcmp.eq.f32.partialorder %v424, %v453
        %vm532 = vcmp.eq.f32.partialorder %v425, %v452
        %vm533 = vcmp.eq.f32.partialorder %v425, %v453
        %vm534 = vcmp.eq.f32.partialorder %v426, %v452
        %vm535 = vcmp.eq.f32.partialorder %v426, %v453
        %vm536 = vcmp.eq.f32.partialorder %v427, %v452
        %vm537 = vcmp.eq.f32.partialorder %v427, %v453
        %vm538 = vcmp.eq.f32.partialorder %v428, %v452
        %vm539 = vcmp.eq.f32.partialorder %v428, %v453
        %vm540 = vcmp.eq.f32.partialorder %v429, %v452
        %vm541 = vcmp.eq.f32.partialorder %v429, %v453
        %vm542 = vcmp.eq.f32.partialorder %v430, %v452
        %vm543 = vcmp.eq.f32.partialorder %v430, %v453
        %vm544 = vcmp.eq.f32.partialorder %v431, %v452
        %vm545 = vcmp.eq.f32.partialorder %v431, %v453
        %vm546 = vcmp.eq.f32.partialorder %v432, %v452
        %vm547 = vcmp.eq.f32.partialorder %v432, %v453
        %vm548 = vcmp.eq.f32.partialorder %v433, %v452
        %vm549 = vcmp.eq.f32.partialorder %v433, %v453
        %vm550 = vcmp.eq.f32.partialorder %v434, %v452
        %vm551 = vcmp.eq.f32.partialorder %v434, %v453
        %vm552 = vcmp.eq.f32.partialorder %v435, %v452
        %vm553 = vcmp.eq.f32.partialorder %v435, %v453
        %vm554 = vcmp.eq.f32.partialorder %v436, %v452
        %vm555 = vcmp.eq.f32.partialorder %v436, %v453
        %vm556 = vcmp.eq.f32.partialorder %v437, %v452
        %vm557 = vcmp.eq.f32.partialorder %v437, %v453
        %vm558 = vcmp.eq.f32.partialorder %v438, %v452
        %vm559 = vcmp.eq.f32.partialorder %v438, %v453
        %vm560 = vcmp.eq.f32.partialorder %v439, %v452
        %vm561 = vcmp.eq.f32.partialorder %v439, %v453
        %vm562 = vcmp.eq.f32.partialorder %v440, %v452
        %vm563 = vcmp.eq.f32.partialorder %v440, %v453
        %vm564 = vcmp.eq.f32.partialorder %v441, %v452
        %vm565 = vcmp.eq.f32.partialorder %v441, %v453
        %vm566 = vcmp.eq.f32.partialorder %v442, %v452
        %vm567 = vcmp.eq.f32.partialorder %v442, %v453
        %vm568 = vcmp.eq.f32.partialorder %v443, %v452
        %vm569 = vcmp.eq.f32.partialorder %v443, %v453
        %vm570 = vcmp.eq.f32.partialorder %v444, %v452
        %vm571 = vcmp.eq.f32.partialorder %v444, %v453
        %vm572 = vcmp.eq.f32.partialorder %v445, %v452
        %vm573 = vcmp.eq.f32.partialorder %v445, %v453
        %vm574 = vcmp.eq.f32.partialorder %v446, %v452
        %vm575 = vcmp.eq.f32.partialorder %v446, %v453
        %vm576 = vcmp.eq.f32.partialorder %v447, %v452
        %vm577 = vcmp.eq.f32.partialorder %v447, %v453
        %vm578 = vcmp.eq.f32.partialorder %v448, %v452
        %vm579 = vcmp.eq.f32.partialorder %v448, %v453
        %vm580 = vcmp.eq.f32.partialorder %v449, %v452
        %vm581 = vcmp.eq.f32.partialorder %v449, %v453
        %vm582 = vcmp.le.f32.partialorder %v418, %v452
        %vm583 = vcmp.le.f32.partialorder %v418, %v453
        %vm584 = vcmp.le.f32.partialorder %v419, %v452
        %vm585 = vcmp.le.f32.partialorder %v419, %v453
        %vm586 = vcmp.le.f32.partialorder %v420, %v452
        %vm587 = vcmp.le.f32.partialorder %v420, %v453
        %vm588 = vcmp.le.f32.partialorder %v421, %v452
        %vm589 = vcmp.le.f32.partialorder %v421, %v453
        %vm590 = vcmp.le.f32.partialorder %v422, %v452
        %vm591 = vcmp.le.f32.partialorder %v422, %v453
        %vm592 = vcmp.le.f32.partialorder %v423, %v452
        %vm593 = vcmp.le.f32.partialorder %v423, %v453
        %vm594 = vcmp.le.f32.partialorder %v424, %v452
        %vm595 = vcmp.le.f32.partialorder %v424, %v453
        %vm596 = vcmp.le.f32.partialorder %v425, %v452
        %vm597 = vcmp.le.f32.partialorder %v425, %v453
        %vm598 = vcmp.le.f32.partialorder %v426, %v452
        %vm599 = vcmp.le.f32.partialorder %v426, %v453
        %vm600 = vcmp.le.f32.partialorder %v427, %v452
        %vm601 = vcmp.le.f32.partialorder %v427, %v453
        %vm602 = vcmp.le.f32.partialorder %v428, %v452
        %vm603 = vcmp.le.f32.partialorder %v428, %v453
        %vm604 = vcmp.le.f32.partialorder %v429, %v452
        %vm605 = vcmp.le.f32.partialorder %v429, %v453
        %vm606 = vcmp.le.f32.partialorder %v430, %v452
        %vm607 = vcmp.le.f32.partialorder %v430, %v453
        %vm608 = vcmp.le.f32.partialorder %v431, %v452
        %vm609 = vcmp.le.f32.partialorder %v431, %v453
        %vm610 = vcmp.le.f32.partialorder %v432, %v452
        %vm611 = vcmp.le.f32.partialorder %v432, %v453
        %vm612 = vcmp.le.f32.partialorder %v433, %v452
        %vm613 = vcmp.le.f32.partialorder %v433, %v453
        %vm614 = vcmp.le.f32.partialorder %v434, %v452
        %vm615 = vcmp.le.f32.partialorder %v434, %v453
        %vm616 = vcmp.le.f32.partialorder %v435, %v452
        %vm617 = vcmp.le.f32.partialorder %v435, %v453
        %vm618 = vcmp.le.f32.partialorder %v436, %v452
        %vm619 = vcmp.le.f32.partialorder %v436, %v453
        %vm620 = vcmp.le.f32.partialorder %v437, %v452
        %vm621 = vcmp.le.f32.partialorder %v437, %v453
        %vm622 = vcmp.le.f32.partialorder %v438, %v452
        %vm623 = vcmp.le.f32.partialorder %v438, %v453
        %vm624 = vcmp.le.f32.partialorder %v439, %v452
        %vm625 = vcmp.le.f32.partialorder %v439, %v453
        %vm626 = vcmp.le.f32.partialorder %v440, %v452
        %vm627 = vcmp.le.f32.partialorder %v440, %v453
        %vm628 = vcmp.le.f32.partialorder %v441, %v452
        %vm629 = vcmp.le.f32.partialorder %v441, %v453
        %vm630 = vcmp.le.f32.partialorder %v442, %v452
        %vm631 = vcmp.le.f32.partialorder %v442, %v453
        %vm632 = vcmp.le.f32.partialorder %v443, %v452
        %vm633 = vcmp.le.f32.partialorder %v443, %v453
        %vm634 = vcmp.le.f32.partialorder %v444, %v452
        %vm635 = vcmp.le.f32.partialorder %v444, %v453
        %vm636 = vcmp.le.f32.partialorder %v445, %v452
        %vm637 = vcmp.le.f32.partialorder %v445, %v453
        %vm638 = vcmp.le.f32.partialorder %v446, %v452
        %vm639 = vcmp.le.f32.partialorder %v446, %v453
        %vm640 = vcmp.le.f32.partialorder %v447, %v452
        %vm641 = vcmp.le.f32.partialorder %v447, %v453
        %vm642 = vcmp.le.f32.partialorder %v448, %v452
        %vm643 = vcmp.le.f32.partialorder %v448, %v453
        %vm644 = vcmp.le.f32.partialorder %v449, %v452
        %vm645 = vcmp.le.f32.partialorder %v449, %v453
        %vm646 = vmand %vm454, %vm582
        %vm647 = vmand %vm455, %vm583
        %vm648 = vmand %vm456, %vm584
        %vm649 = vmand %vm457, %vm585
        %vm650 = vmand %vm458, %vm586
        %vm651 = vmand %vm459, %vm587
        %vm652 = vmand %vm460, %vm588
        %vm653 = vmand %vm461, %vm589
        %vm654 = vmand %vm462, %vm590
        %vm655 = vmand %vm463, %vm591
        %vm656 = vmand %vm464, %vm592
        %vm657 = vmand %vm465, %vm593
        %vm658 = vmand %vm466, %vm594
        %vm659 = vmand %vm467, %vm595
        %vm660 = vmand %vm468, %vm596
        %vm661 = vmand %vm469, %vm597
        %vm662 = vmand %vm470, %vm598
        %vm663 = vmand %vm471, %vm599
        %vm664 = vmand %vm472, %vm600
        %vm665 = vmand %vm473, %vm601
        %vm666 = vmand %vm474, %vm602
        %vm667 = vmand %vm475, %vm603
        %vm668 = vmand %vm476, %vm604
        %vm669 = vmand %vm477, %vm605
        %vm670 = vmand %vm478, %vm606
        %vm671 = vmand %vm479, %vm607
        %vm672 = vmand %vm480, %vm608
        %vm673 = vmand %vm481, %vm609
        %vm674 = vmand %vm482, %vm610
        %vm675 = vmand %vm483, %vm611
        %vm676 = vmand %vm484, %vm612
        %vm677 = vmand %vm485, %vm613
        %vm678 = vmand %vm486, %vm614
        %vm679 = vmand %vm487, %vm615
        %vm680 = vmand %vm488, %vm616
        %vm681 = vmand %vm489, %vm617
        %vm682 = vmand %vm490, %vm618
        %vm683 = vmand %vm491, %vm619
        %vm684 = vmand %vm492, %vm620
        %vm685 = vmand %vm493, %vm621
        %vm686 = vmand %vm494, %vm622
        %vm687 = vmand %vm495, %vm623
        %vm688 = vmand %vm496, %vm624
        %vm689 = vmand %vm497, %vm625
        %vm690 = vmand %vm498, %vm626
        %vm691 = vmand %vm499, %vm627
        %vm692 = vmand %vm500, %vm628
        %vm693 = vmand %vm501, %vm629
        %vm694 = vmand %vm502, %vm630
        %vm695 = vmand %vm503, %vm631
        %vm696 = vmand %vm504, %vm632
        %vm697 = vmand %vm505, %vm633
        %vm698 = vmand %vm506, %vm634
        %vm699 = vmand %vm507, %vm635
        %vm700 = vmand %vm508, %vm636
        %vm701 = vmand %vm509, %vm637
        %vm702 = vmand %vm510, %vm638
        %vm703 = vmand %vm511, %vm639
        %vm704 = vmand %vm512, %vm640
        %vm705 = vmand %vm513, %vm641
        %vm706 = vmand %vm514, %vm642
        %vm707 = vmand %vm515, %vm643
        %vm708 = vmand %vm516, %vm644
        %vm709 = vmand %vm517, %vm645
        %v710 = vsel %vm646, 1, 0
        %v711 = vsel %vm647, 1, 0
        %v712 = vsel %vm648, 1, 0
        %v713 = vsel %vm649, 1, 0
        %v714 = vsel %vm650, 1, 0
        %v715 = vsel %vm651, 1, 0
        %v716 = vsel %vm652, 1, 0
        %v717 = vsel %vm653, 1, 0
        %v718 = vsel %vm654, 1, 0
        %v719 = vsel %vm655, 1, 0
        %v720 = vsel %vm656, 1, 0
        %v721 = vsel %vm657, 1, 0
        %v722 = vsel %vm658, 1, 0
        %v723 = vsel %vm659, 1, 0
        %v724 = vsel %vm660, 1, 0
        %v725 = vsel %vm661, 1, 0
        %v726 = vsel %vm662, 1, 0
        %v727 = vsel %vm663, 1, 0
        %v728 = vsel %vm664, 1, 0
        %v729 = vsel %vm665, 1, 0
        %v730 = vsel %vm666, 1, 0
        %v731 = vsel %vm667, 1, 0
        %v732 = vsel %vm668, 1, 0
        %v733 = vsel %vm669, 1, 0
        %v734 = vsel %vm670, 1, 0
        %v735 = vsel %vm671, 1, 0
        %v736 = vsel %vm672, 1, 0
        %v737 = vsel %vm673, 1, 0
        %v738 = vsel %vm674, 1, 0
        %v739 = vsel %vm675, 1, 0
        %v740 = vsel %vm676, 1, 0
        %v741 = vsel %vm677, 1, 0
        %v742 = vsel %vm678, 1, 0
        %v743 = vsel %vm679, 1, 0
        %v744 = vsel %vm680, 1, 0
        %v745 = vsel %vm681, 1, 0
        %v746 = vsel %vm682, 1, 0
        %v747 = vsel %vm683, 1, 0
        %v748 = vsel %vm684, 1, 0
        %v749 = vsel %vm685, 1, 0
        %v750 = vsel %vm686, 1, 0
        %v751 = vsel %vm687, 1, 0
        %v752 = vsel %vm688, 1, 0
        %v753 = vsel %vm689, 1, 0
        %v754 = vsel %vm690, 1, 0
        %v755 = vsel %vm691, 1, 0
        %v756 = vsel %vm692, 1, 0
        %v757 = vsel %vm693, 1, 0
        %v758 = vsel %vm694, 1, 0
        %v759 = vsel %vm695, 1, 0
        %v760 = vsel %vm696, 1, 0
        %v761 = vsel %vm697, 1, 0
        %v762 = vsel %vm698, 1, 0
        %v763 = vsel %vm699, 1, 0
        %v764 = vsel %vm700, 1, 0
        %v765 = vsel %vm701, 1, 0
        %v766 = vsel %vm702, 1, 0
        %v767 = vsel %vm703, 1, 0
        %v768 = vsel %vm704, 1, 0
        %v769 = vsel %vm705, 1, 0
        %v770 = vsel %vm706, 1, 0
        %v771 = vsel %vm707, 1, 0
        %v772 = vsel %vm708, 1, 0
        %v773 = vsel %vm709, 1, 0
        %v774 = vcvt.s32.f32 %v710
        %v775 = vcvt.s32.f32 %v711
        %v776 = vcvt.s32.f32 %v712
        %v777 = vcvt.s32.f32 %v713
        %v778 = vcvt.s32.f32 %v714
        %v779 = vcvt.s32.f32 %v715
        %v780 = vcvt.s32.f32 %v716
        %v781 = vcvt.s32.f32 %v717
        %v782 = vcvt.s32.f32 %v718
        %v783 = vcvt.s32.f32 %v719
        %v784 = vcvt.s32.f32 %v720
        %v785 = vcvt.s32.f32 %v721
        %v786 = vcvt.s32.f32 %v722
        %v787 = vcvt.s32.f32 %v723
        %v788 = vcvt.s32.f32 %v724
        %v789 = vcvt.s32.f32 %v725
        %v790 = vcvt.s32.f32 %v726
        %v791 = vcvt.s32.f32 %v727
        %v792 = vcvt.s32.f32 %v728
        %v793 = vcvt.s32.f32 %v729
        %v794 = vcvt.s32.f32 %v730
        %v795 = vcvt.s32.f32 %v731
        %v796 = vcvt.s32.f32 %v732
        %v797 = vcvt.s32.f32 %v733
        %v798 = vcvt.s32.f32 %v734
        %v799 = vcvt.s32.f32 %v735
        %v800 = vcvt.s32.f32 %v736
        %v801 = vcvt.s32.f32 %v737
        %v802 = vcvt.s32.f32 %v738
        %v803 = vcvt.s32.f32 %v739
        %v804 = vcvt.s32.f32 %v740
        %v805 = vcvt.s32.f32 %v741
        %v806 = vcvt.s32.f32 %v742
        %v807 = vcvt.s32.f32 %v743
        %v808 = vcvt.s32.f32 %v744
        %v809 = vcvt.s32.f32 %v745
        %v810 = vcvt.s32.f32 %v746
        %v811 = vcvt.s32.f32 %v747
        %v812 = vcvt.s32.f32 %v748
        %v813 = vcvt.s32.f32 %v749
        %v814 = vcvt.s32.f32 %v750
        %v815 = vcvt.s32.f32 %v751
        %v816 = vcvt.s32.f32 %v752
        %v817 = vcvt.s32.f32 %v753
        %v818 = vcvt.s32.f32 %v754
        %v819 = vcvt.s32.f32 %v755
        %v820 = vcvt.s32.f32 %v756
        %v821 = vcvt.s32.f32 %v757
        %v822 = vcvt.s32.f32 %v758
        %v823 = vcvt.s32.f32 %v759
        %v824 = vcvt.s32.f32 %v760
        %v825 = vcvt.s32.f32 %v761
        %v826 = vcvt.s32.f32 %v762
        %v827 = vcvt.s32.f32 %v763
        %v828 = vcvt.s32.f32 %v764
        %v829 = vcvt.s32.f32 %v765
        %v830 = vcvt.s32.f32 %v766
        %v831 = vcvt.s32.f32 %v767
        %v832 = vcvt.s32.f32 %v768
        %v833 = vcvt.s32.f32 %v769
        %v834 = vcvt.s32.f32 %v770
        %v835 = vcvt.s32.f32 %v771
        %v836 = vcvt.s32.f32 %v772
        %v837 = vcvt.s32.f32 %v773
        %vm838 = vcmp.le.f32.partialorder %v348, %v384
        %vm839 = vcmp.le.f32.partialorder %v348, %v385
        %vm840 = vcmp.le.f32.partialorder %v349, %v384
        %vm841 = vcmp.le.f32.partialorder %v349, %v385
        %vm842 = vcmp.le.f32.partialorder %v350, %v384
        %vm843 = vcmp.le.f32.partialorder %v350, %v385
        %vm844 = vcmp.le.f32.partialorder %v351, %v384
        %vm845 = vcmp.le.f32.partialorder %v351, %v385
        %vm846 = vcmp.le.f32.partialorder %v352, %v384
        %vm847 = vcmp.le.f32.partialorder %v352, %v385
        %vm848 = vcmp.le.f32.partialorder %v353, %v384
        %vm849 = vcmp.le.f32.partialorder %v353, %v385
        %vm850 = vcmp.le.f32.partialorder %v354, %v384
        %vm851 = vcmp.le.f32.partialorder %v354, %v385
        %vm852 = vcmp.le.f32.partialorder %v355, %v384
        %vm853 = vcmp.le.f32.partialorder %v355, %v385
        %vm854 = vcmp.le.f32.partialorder %v356, %v384
        %vm855 = vcmp.le.f32.partialorder %v356, %v385
        %vm856 = vcmp.le.f32.partialorder %v357, %v384
        %vm857 = vcmp.le.f32.partialorder %v357, %v385
        %vm858 = vcmp.le.f32.partialorder %v358, %v384
        %vm859 = vcmp.le.f32.partialorder %v358, %v385
        %vm860 = vcmp.le.f32.partialorder %v359, %v384
        %vm861 = vcmp.le.f32.partialorder %v359, %v385
        %vm862 = vcmp.le.f32.partialorder %v360, %v384
        %vm863 = vcmp.le.f32.partialorder %v360, %v385
        %vm864 = vcmp.le.f32.partialorder %v361, %v384
        %vm865 = vcmp.le.f32.partialorder %v361, %v385
        %vm866 = vcmp.le.f32.partialorder %v362, %v384
        %vm867 = vcmp.le.f32.partialorder %v362, %v385
        %vm868 = vcmp.le.f32.partialorder %v363, %v384
        %vm869 = vcmp.le.f32.partialorder %v363, %v385
        %vm870 = vcmp.le.f32.partialorder %v364, %v384
        %vm871 = vcmp.le.f32.partialorder %v364, %v385
        %vm872 = vcmp.le.f32.partialorder %v365, %v384
        %vm873 = vcmp.le.f32.partialorder %v365, %v385
        %vm874 = vcmp.le.f32.partialorder %v366, %v384
        %vm875 = vcmp.le.f32.partialorder %v366, %v385
        %vm876 = vcmp.le.f32.partialorder %v367, %v384
        %vm877 = vcmp.le.f32.partialorder %v367, %v385
        %vm878 = vcmp.le.f32.partialorder %v368, %v384
        %vm879 = vcmp.le.f32.partialorder %v368, %v385
        %vm880 = vcmp.le.f32.partialorder %v369, %v384
        %vm881 = vcmp.le.f32.partialorder %v369, %v385
        %vm882 = vcmp.le.f32.partialorder %v370, %v384
        %vm883 = vcmp.le.f32.partialorder %v370, %v385
        %vm884 = vcmp.le.f32.partialorder %v371, %v384
        %vm885 = vcmp.le.f32.partialorder %v371, %v385
        %vm886 = vcmp.le.f32.partialorder %v372, %v384
        %vm887 = vcmp.le.f32.partialorder %v372, %v385
        %vm888 = vcmp.le.f32.partialorder %v373, %v384
        %vm889 = vcmp.le.f32.partialorder %v373, %v385
        %vm890 = vcmp.le.f32.partialorder %v374, %v384
        %vm891 = vcmp.le.f32.partialorder %v374, %v385
        %vm892 = vcmp.le.f32.partialorder %v375, %v384
        %vm893 = vcmp.le.f32.partialorder %v375, %v385
        %vm894 = vcmp.le.f32.partialorder %v376, %v384
        %vm895 = vcmp.le.f32.partialorder %v376, %v385
        %vm896 = vcmp.le.f32.partialorder %v377, %v384
        %vm897 = vcmp.le.f32.partialorder %v377, %v385
        %vm898 = vcmp.le.f32.partialorder %v378, %v384
        %vm899 = vcmp.le.f32.partialorder %v378, %v385
        %vm900 = vcmp.le.f32.partialorder %v379, %v384
        %vm901 = vcmp.le.f32.partialorder %v379, %v385
        %vm902 = vmand %vm518, %vm838
        %vm903 = vmand %vm519, %vm839
        %vm904 = vmand %vm520, %vm840
        %vm905 = vmand %vm521, %vm841
        %vm906 = vmand %vm522, %vm842
        %vm907 = vmand %vm523, %vm843
        %vm908 = vmand %vm524, %vm844
        %vm909 = vmand %vm525, %vm845
        %vm910 = vmand %vm526, %vm846
        %vm911 = vmand %vm527, %vm847
        %vm912 = vmand %vm528, %vm848
        %vm913 = vmand %vm529, %vm849
        %vm914 = vmand %vm530, %vm850
        %vm915 = vmand %vm531, %vm851
        %vm916 = vmand %vm532, %vm852
        %vm917 = vmand %vm533, %vm853
        %vm918 = vmand %vm534, %vm854
        %vm919 = vmand %vm535, %vm855
        %vm920 = vmand %vm536, %vm856
        %vm921 = vmand %vm537, %vm857
        %vm922 = vmand %vm538, %vm858
        %vm923 = vmand %vm539, %vm859
        %vm924 = vmand %vm540, %vm860
        %vm925 = vmand %vm541, %vm861
        %vm926 = vmand %vm542, %vm862
        %vm927 = vmand %vm543, %vm863
        %vm928 = vmand %vm544, %vm864
        %vm929 = vmand %vm545, %vm865
        %vm930 = vmand %vm546, %vm866
        %vm931 = vmand %vm547, %vm867
        %vm932 = vmand %vm548, %vm868
        %vm933 = vmand %vm549, %vm869
        %vm934 = vmand %vm550, %vm870
        %vm935 = vmand %vm551, %vm871
        %vm936 = vmand %vm552, %vm872
        %vm937 = vmand %vm553, %vm873
        %vm938 = vmand %vm554, %vm874
        %vm939 = vmand %vm555, %vm875
        %vm940 = vmand %vm556, %vm876
        %vm941 = vmand %vm557, %vm877
        %vm942 = vmand %vm558, %vm878
        %vm943 = vmand %vm559, %vm879
        %vm944 = vmand %vm560, %vm880
        %vm945 = vmand %vm561, %vm881
        %vm946 = vmand %vm562, %vm882
        %vm947 = vmand %vm563, %vm883
        %vm948 = vmand %vm564, %vm884
        %vm949 = vmand %vm565, %vm885
        %vm950 = vmand %vm566, %vm886
        %vm951 = vmand %vm567, %vm887
        %vm952 = vmand %vm568, %vm888
        %vm953 = vmand %vm569, %vm889
        %vm954 = vmand %vm570, %vm890
        %vm955 = vmand %vm571, %vm891
        %vm956 = vmand %vm572, %vm892
        %vm957 = vmand %vm573, %vm893
        %vm958 = vmand %vm574, %vm894
        %vm959 = vmand %vm575, %vm895
        %vm960 = vmand %vm576, %vm896
        %vm961 = vmand %vm577, %vm897
        %vm962 = vmand %vm578, %vm898
        %vm963 = vmand %vm579, %vm899
        %vm964 = vmand %vm580, %vm900
        %vm965 = vmand %vm581, %vm901
        %v966 = vsel %vm902, 1, 0
        %v967 = vsel %vm903, 1, 0
        %v968 = vsel %vm904, 1, 0
        %v969 = vsel %vm905, 1, 0
        %v970 = vsel %vm906, 1, 0
        %v971 = vsel %vm907, 1, 0
        %v972 = vsel %vm908, 1, 0
        %v973 = vsel %vm909, 1, 0
        %v974 = vsel %vm910, 1, 0
        %v975 = vsel %vm911, 1, 0
        %v976 = vsel %vm912, 1, 0
        %v977 = vsel %vm913, 1, 0
        %v978 = vsel %vm914, 1, 0
        %v979 = vsel %vm915, 1, 0
        %v980 = vsel %vm916, 1, 0
        %v981 = vsel %vm917, 1, 0
        %v982 = vsel %vm918, 1, 0
        %v983 = vsel %vm919, 1, 0
        %v984 = vsel %vm920, 1, 0
        %v985 = vsel %vm921, 1, 0
        %v986 = vsel %vm922, 1, 0
        %v987 = vsel %vm923, 1, 0
        %v988 = vsel %vm924, 1, 0
        %v989 = vsel %vm925, 1, 0
        %v990 = vsel %vm926, 1, 0
        %v991 = vsel %vm927, 1, 0
        %v992 = vsel %vm928, 1, 0
        %v993 = vsel %vm929, 1, 0
        %v994 = vsel %vm930, 1, 0
        %v995 = vsel %vm931, 1, 0
        %v996 = vsel %vm932, 1, 0
        %v997 = vsel %vm933, 1, 0
        %v998 = vsel %vm934, 1, 0
        %v999 = vsel %vm935, 1, 0
        %v1000 = vsel %vm936, 1, 0
        %v1001 = vsel %vm937, 1, 0
        %v1002 = vsel %vm938, 1, 0
        %v1003 = vsel %vm939, 1, 0
        %v1004 = vsel %vm940, 1, 0
        %v1005 = vsel %vm941, 1, 0
        %v1006 = vsel %vm942, 1, 0
        %v1007 = vsel %vm943, 1, 0
        %v1008 = vsel %vm944, 1, 0
        %v1009 = vsel %vm945, 1, 0
        %v1010 = vsel %vm946, 1, 0
        %v1011 = vsel %vm947, 1, 0
        %v1012 = vsel %vm948, 1, 0
        %v1013 = vsel %vm949, 1, 0
        %v1014 = vsel %vm950, 1, 0
        %v1015 = vsel %vm951, 1, 0
        %v1016 = vsel %vm952, 1, 0
        %v1017 = vsel %vm953, 1, 0
        %v1018 = vsel %vm954, 1, 0
        %v1019 = vsel %vm955, 1, 0
        %v1020 = vsel %vm956, 1, 0
        %v1021 = vsel %vm957, 1, 0
        %v1022 = vsel %vm958, 1, 0
        %v1023 = vsel %vm959, 1, 0
        %v1024 = vsel %vm960, 1, 0
        %v1025 = vsel %vm961, 1, 0
        %v1026 = vsel %vm962, 1, 0
        %v1027 = vsel %vm963, 1, 0
        %v1028 = vsel %vm964, 1, 0
        %v1029 = vsel %vm965, 1, 0
        %v1030 = vcvt.s32.f32 %v966
        %v1031 = vcvt.s32.f32 %v967
        %v1032 = vcvt.s32.f32 %v968
        %v1033 = vcvt.s32.f32 %v969
        %v1034 = vcvt.s32.f32 %v970
        %v1035 = vcvt.s32.f32 %v971
        %v1036 = vcvt.s32.f32 %v972
        %v1037 = vcvt.s32.f32 %v973
        %v1038 = vcvt.s32.f32 %v974
        %v1039 = vcvt.s32.f32 %v975
        %v1040 = vcvt.s32.f32 %v976
        %v1041 = vcvt.s32.f32 %v977
        %v1042 = vcvt.s32.f32 %v978
        %v1043 = vcvt.s32.f32 %v979
        %v1044 = vcvt.s32.f32 %v980
        %v1045 = vcvt.s32.f32 %v981
        %v1046 = vcvt.s32.f32 %v982
        %v1047 = vcvt.s32.f32 %v983
        %v1048 = vcvt.s32.f32 %v984
        %v1049 = vcvt.s32.f32 %v985
        %v1050 = vcvt.s32.f32 %v986
        %v1051 = vcvt.s32.f32 %v987
        %v1052 = vcvt.s32.f32 %v988
        %v1053 = vcvt.s32.f32 %v989
        %v1054 = vcvt.s32.f32 %v990
        %v1055 = vcvt.s32.f32 %v991
        %v1056 = vcvt.s32.f32 %v992
        %v1057 = vcvt.s32.f32 %v993
        %v1058 = vcvt.s32.f32 %v994
        %v1059 = vcvt.s32.f32 %v995
        %v1060 = vcvt.s32.f32 %v996
        %v1061 = vcvt.s32.f32 %v997
        %v1062 = vcvt.s32.f32 %v998
        %v1063 = vcvt.s32.f32 %v999
        %v1064 = vcvt.s32.f32 %v1000
        %v1065 = vcvt.s32.f32 %v1001
        %v1066 = vcvt.s32.f32 %v1002
        %v1067 = vcvt.s32.f32 %v1003
        %v1068 = vcvt.s32.f32 %v1004
        %v1069 = vcvt.s32.f32 %v1005
        %v1070 = vcvt.s32.f32 %v1006
        %v1071 = vcvt.s32.f32 %v1007
        %v1072 = vcvt.s32.f32 %v1008
        %v1073 = vcvt.s32.f32 %v1009
        %v1074 = vcvt.s32.f32 %v1010
        %v1075 = vcvt.s32.f32 %v1011
        %v1076 = vcvt.s32.f32 %v1012
        %v1077 = vcvt.s32.f32 %v1013
        %v1078 = vcvt.s32.f32 %v1014
        %v1079 = vcvt.s32.f32 %v1015
        %v1080 = vcvt.s32.f32 %v1016
        %v1081 = vcvt.s32.f32 %v1017
        %v1082 = vcvt.s32.f32 %v1018
        %v1083 = vcvt.s32.f32 %v1019
        %v1084 = vcvt.s32.f32 %v1020
        %v1085 = vcvt.s32.f32 %v1021
        %v1086 = vcvt.s32.f32 %v1022
        %v1087 = vcvt.s32.f32 %v1023
        %v1088 = vcvt.s32.f32 %v1024
        %v1089 = vcvt.s32.f32 %v1025
        %v1090 = vcvt.s32.f32 %v1026
        %v1091 = vcvt.s32.f32 %v1027
        %v1092 = vcvt.s32.f32 %v1028
        %v1093 = vcvt.s32.f32 %v1029
        %v1094 = vld [vmem:[%s165] sm:$0x3]
        %v1096 = vlaneseq
        %v1097 = vshrl.u32 %v1096, 7
        %v1098 = vsub.s32 0, %v1097
        %v1099 = vrot.slane %v1094, %v1098
        %v1100 = vlaneseq
        %v1101 = vshrl.u32 %v1100, 7
        %v1102 = vsub.s32 1, %v1101
        %v1103 = vrot.slane %v1094, %v1102
        %1106 = vmatprep.subr.mxu0 %v775
        %1107 = vmatpush1.msra.mxu0 %v774
        %1108 = vmatprep.subr.mxu0 %v777
        %1109 = vmatpush1.msra.mxu0 %v776
        %1110 = vmatprep.subr.mxu0 %v779
        %1111 = vmatpush1.msra.mxu0 %v778
        %1112 = vmatprep.subr.mxu0 %v781
        %1113 = vmatpush1.msra.mxu0 %v780
        %1114 = vmatprep.subr.mxu0 %v783
        %1115 = vmatpush1.msra.mxu0 %v782
        %1116 = vmatprep.subr.mxu0 %v785
        %1117 = vmatpush1.msra.mxu0 %v784
        %1118 = vmatprep.subr.mxu0 %v787
        %1119 = vmatpush1.msra.mxu0 %v786
        %1120 = vmatprep.subr.mxu0 %v789
        %1121 = vmatpush1.msra.mxu0 %v788
        %1122 = vmatprep.subr.mxu0 %v791
        %1123 = vmatpush1.msra.mxu0 %v790
        %1124 = vmatprep.subr.mxu0 %v793
        %1125 = vmatpush1.msra.mxu0 %v792
        %1126 = vmatprep.subr.mxu0 %v795
        %1127 = vmatpush1.msra.mxu0 %v794
        %1128 = vmatprep.subr.mxu0 %v797
        %1129 = vmatpush1.msra.mxu0 %v796
        %1130 = vmatprep.subr.mxu0 %v799
        %1131 = vmatpush1.msra.mxu0 %v798
        %1132 = vmatprep.subr.mxu0 %v801
        %1133 = vmatpush1.msra.mxu0 %v800
        %1134 = vmatprep.subr.mxu0 %v803
        %1135 = vmatpush1.msra.mxu0 %v802
        %1136 = vmatprep.subr.mxu0 %v805
        %1137 = vmatpush1.msra.mxu0 %v804
        %1138 = vmatprep.subr.mxu0 %v807
        %1139 = vmatpush1.msra.mxu0 %v806
        %1140 = vmatprep.subr.mxu0 %v809
        %1141 = vmatpush1.msra.mxu0 %v808
        %1142 = vmatprep.subr.mxu0 %v811
        %1143 = vmatpush1.msra.mxu0 %v810
        %1144 = vmatprep.subr.mxu0 %v813
        %1145 = vmatpush1.msra.mxu0 %v812
        %1146 = vmatprep.subr.mxu0 %v815
        %1147 = vmatpush1.msra.mxu0 %v814
        %1148 = vmatprep.subr.mxu0 %v817
        %1149 = vmatpush1.msra.mxu0 %v816
        %1150 = vmatprep.subr.mxu0 %v819
        %1151 = vmatpush1.msra.mxu0 %v818
        %1152 = vmatprep.subr.mxu0 %v821
        %1153 = vmatpush1.msra.mxu0 %v820
        %1154 = vmatprep.subr.mxu0 %v823
        %1155 = vmatpush1.msra.mxu0 %v822
        %1156 = vmatprep.subr.mxu0 %v825
        %1157 = vmatpush1.msra.mxu0 %v824
        %1158 = vmatprep.subr.mxu0 %v827
        %1159 = vmatpush1.msra.mxu0 %v826
        %1160 = vmatprep.subr.mxu0 %v829
        %1161 = vmatpush1.msra.mxu0 %v828
        %1162 = vmatprep.subr.mxu0 %v831
        %1163 = vmatpush1.msra.mxu0 %v830
        %1164 = vmatprep.subr.mxu0 %v833
        %1165 = vmatpush1.msra.mxu0 %v832
        %1166 = vmatprep.subr.mxu0 %v835
        %1167 = vmatpush1.msra.mxu0 %v834
        %1168 = vmatprep.subr.mxu0 %v837
        %1169 = vmatpush1.msra.mxu0 %v836
        %1170 = vmatprep.mubr.f32.mxu0 %v1103
        %1171 = vmatmul.mubr.f32.gmra.mrb[0].mxu0 %v1099
        %v1172 = vpop.f32.mrb[0].mxu0
        %v1173 = vadd.f32 0.0, %v1172
        %v1174 = vpop.f32.mrb[0].mxu0
        %v1175 = vadd.f32 0.0, %v1174
        %1176 = vdwg.mxu0
        %1177 = vmatprep.subr.mxu0 %v1031
        %1178 = vmatpush1.msra.mxu0 %v1030
        %1179 = vmatprep.subr.mxu0 %v1033
        %1180 = vmatpush1.msra.mxu0 %v1032
        %1181 = vmatprep.subr.mxu0 %v1035
        %1182 = vmatpush1.msra.mxu0 %v1034
        %1183 = vmatprep.subr.mxu0 %v1037
        %1184 = vmatpush1.msra.mxu0 %v1036
        %1185 = vmatprep.subr.mxu0 %v1039
        %1186 = vmatpush1.msra.mxu0 %v1038
        %1187 = vmatprep.subr.mxu0 %v1041
        %1188 = vmatpush1.msra.mxu0 %v1040
        %1189 = vmatprep.subr.mxu0 %v1043
        %1190 = vmatpush1.msra.mxu0 %v1042
        %1191 = vmatprep.subr.mxu0 %v1045
        %1192 = vmatpush1.msra.mxu0 %v1044
        %1193 = vmatprep.subr.mxu0 %v1047
        %1194 = vmatpush1.msra.mxu0 %v1046
        %1195 = vmatprep.subr.mxu0 %v1049
        %1196 = vmatpush1.msra.mxu0 %v1048
        %1197 = vmatprep.subr.mxu0 %v1051
        %1198 = vmatpush1.msra.mxu0 %v1050
        %1199 = vmatprep.subr.mxu0 %v1053
        %1200 = vmatpush1.msra.mxu0 %v1052
        %1201 = vmatprep.subr.mxu0 %v1055
        %1202 = vmatpush1.msra.mxu0 %v1054
        %1203 = vmatprep.subr.mxu0 %v1057
        %1204 = vmatpush1.msra.mxu0 %v1056
        %1205 = vmatprep.subr.mxu0 %v1059
        %1206 = vmatpush1.msra.mxu0 %v1058
        %1207 = vmatprep.subr.mxu0 %v1061
        %1208 = vmatpush1.msra.mxu0 %v1060
        %1209 = vmatprep.subr.mxu0 %v1063
        %1210 = vmatpush1.msra.mxu0 %v1062
        %1211 = vmatprep.subr.mxu0 %v1065
        %1212 = vmatpush1.msra.mxu0 %v1064
        %1213 = vmatprep.subr.mxu0 %v1067
        %1214 = vmatpush1.msra.mxu0 %v1066
        %1215 = vmatprep.subr.mxu0 %v1069
        %1216 = vmatpush1.msra.mxu0 %v1068
        %1217 = vmatprep.subr.mxu0 %v1071
        %1218 = vmatpush1.msra.mxu0 %v1070
        %1219 = vmatprep.subr.mxu0 %v1073
        %1220 = vmatpush1.msra.mxu0 %v1072
        %1221 = vmatprep.subr.mxu0 %v1075
        %1222 = vmatpush1.msra.mxu0 %v1074
        %1223 = vmatprep.subr.mxu0 %v1077
        %1224 = vmatpush1.msra.mxu0 %v1076
        %1225 = vmatprep.subr.mxu0 %v1079
        %1226 = vmatpush1.msra.mxu0 %v1078
        %1227 = vmatprep.subr.mxu0 %v1081
        %1228 = vmatpush1.msra.mxu0 %v1080
        %1229 = vmatprep.subr.mxu0 %v1083
        %1230 = vmatpush1.msra.mxu0 %v1082
        %1231 = vmatprep.subr.mxu0 %v1085
        %1232 = vmatpush1.msra.mxu0 %v1084
        %1233 = vmatprep.subr.mxu0 %v1087
        %1234 = vmatpush1.msra.mxu0 %v1086
        %1235 = vmatprep.subr.mxu0 %v1089
        %1236 = vmatpush1.msra.mxu0 %v1088
        %1237 = vmatprep.subr.mxu0 %v1091
        %1238 = vmatpush1.msra.mxu0 %v1090
        %1239 = vmatprep.subr.mxu0 %v1093
        %1240 = vmatpush1.msra.mxu0 %v1092
        %1241 = vmatprep.mubr.f32.mxu0 %v1103
        %1242 = vmatmul.mubr.f32.gmra.mrb[0].mxu0 %v1099
        %v1243 = vpop.f32.mrb[0].mxu0
        %v1244 = vadd.f32 0.0, %v1243
        %v1245 = vpop.f32.mrb[0].mxu0
        %v1246 = vadd.f32 0.0, %v1245
        %1247 = vdwg.mxu0
        %v1248 = vsel %vm215, 1, 0
        %v1249 = vsel %vm216, 1, 0
        %v1250 = vsel %vm217, 1, 0
        %v1251 = vsel %vm218, 1, 0
        %v1252 = vsel %vm219, 1, 0
        %v1253 = vsel %vm220, 1, 0
        %v1254 = vsel %vm221, 1, 0
        %v1255 = vsel %vm222, 1, 0
        %v1256 = vsel %vm223, 1, 0
        %v1257 = vsel %vm224, 1, 0
        %v1258 = vsel %vm225, 1, 0
        %v1259 = vsel %vm226, 1, 0
        %v1260 = vsel %vm227, 1, 0
        %v1261 = vsel %vm228, 1, 0
        %v1262 = vsel %vm229, 1, 0
        %v1263 = vsel %vm230, 1, 0
        %vm1264 = vcmp.eq.s32.totalorder %v1248, 1
        %vm1265 = vcmp.eq.s32.totalorder %v1249, 1
        %vm1266 = vcmp.eq.s32.totalorder %v1250, 1
        %vm1267 = vcmp.eq.s32.totalorder %v1251, 1
        %vm1268 = vcmp.eq.s32.totalorder %v1252, 1
        %vm1269 = vcmp.eq.s32.totalorder %v1253, 1
        %vm1270 = vcmp.eq.s32.totalorder %v1254, 1
        %vm1271 = vcmp.eq.s32.totalorder %v1255, 1
        %vm1272 = vcmp.eq.s32.totalorder %v1256, 1
        %vm1273 = vcmp.eq.s32.totalorder %v1257, 1
        %vm1274 = vcmp.eq.s32.totalorder %v1258, 1
        %vm1275 = vcmp.eq.s32.totalorder %v1259, 1
        %vm1276 = vcmp.eq.s32.totalorder %v1260, 1
        %vm1277 = vcmp.eq.s32.totalorder %v1261, 1
        %vm1278 = vcmp.eq.s32.totalorder %v1262, 1
        %vm1279 = vcmp.eq.s32.totalorder %v1263, 1
        %v1280 = vlaneseq
        %v1281 = vshrl.u32 %v1280, 7
        %v1282 = vsub.s32 0, %v1281
        %v1283 = vrot.slane %v1173, %v1282
        %v1284 = vlaneseq
        %v1285 = vshrl.u32 %v1284, 7
        %v1286 = vsub.s32 0, %v1285
        %v1287 = vrot.slane %v1175, %v1286
        %v1288 = vlaneseq
        %v1289 = vshrl.u32 %v1288, 7
        %v1290 = vsub.s32 0, %v1289
        %v1291 = vrot.slane %v1244, %v1290
        %v1292 = vlaneseq
        %v1293 = vshrl.u32 %v1292, 7
        %v1294 = vsub.s32 0, %v1293
        %v1295 = vrot.slane %v1246, %v1294
        %v1296 = vsel %vm1264, %v1283, %v1291
        %v1297 = vsel %vm1264, %v1287, %v1295
        %v1298 = vsel %vm1265, %v1283, %v1291
        %v1299 = vsel %vm1265, %v1287, %v1295
        %v1300 = vsel %vm1266, %v1283, %v1291
        %v1301 = vsel %vm1266, %v1287, %v1295
        %v1302 = vsel %vm1267, %v1283, %v1291
        %v1303 = vsel %vm1267, %v1287, %v1295
        %v1304 = vsel %vm1268, %v1283, %v1291
        %v1305 = vsel %vm1268, %v1287, %v1295
        %v1306 = vsel %vm1269, %v1283, %v1291
        %v1307 = vsel %vm1269, %v1287, %v1295
        %v1308 = vsel %vm1270, %v1283, %v1291
        %v1309 = vsel %vm1270, %v1287, %v1295
        %v1310 = vsel %vm1271, %v1283, %v1291
        %v1311 = vsel %vm1271, %v1287, %v1295
        %v1312 = vsel %vm1272, %v1283, %v1291
        %v1313 = vsel %vm1272, %v1287, %v1295
        %v1314 = vsel %vm1273, %v1283, %v1291
        %v1315 = vsel %vm1273, %v1287, %v1295
        %v1316 = vsel %vm1274, %v1283, %v1291
        %v1317 = vsel %vm1274, %v1287, %v1295
        %v1318 = vsel %vm1275, %v1283, %v1291
        %v1319 = vsel %vm1275, %v1287, %v1295
        %v1320 = vsel %vm1276, %v1283, %v1291
        %v1321 = vsel %vm1276, %v1287, %v1295
        %v1322 = vsel %vm1277, %v1283, %v1291
        %v1323 = vsel %vm1277, %v1287, %v1295
        %v1324 = vsel %vm1278, %v1283, %v1291
        %v1325 = vsel %vm1278, %v1287, %v1295
        %v1326 = vsel %vm1279, %v1283, %v1291
        %v1327 = vsel %vm1279, %v1287, %v1295
        %1329 = vset.pattern.permute.xlu0 0
        %1330 = vperm.xlu0 %1329, %v166
        %v1331 = vpop.permute.xlu0 %1330
        %1334 = vset.pattern.permute.xlu0 0
        %1335 = vperm.xlu0 %1334, %v167
        %v1336 = vpop.permute.xlu0 %1335
        %1339 = vset.pattern.permute.xlu0 0
        %1340 = vperm.xlu0 %1339, %v168
        %v1341 = vpop.permute.xlu0 %1340
        %1344 = vset.pattern.permute.xlu0 0
        %1345 = vperm.xlu0 %1344, %v169
        %v1346 = vpop.permute.xlu0 %1345
        %1349 = vset.pattern.permute.xlu0 0
        %1350 = vperm.xlu0 %1349, %v170
        %v1351 = vpop.permute.xlu0 %1350
        %1354 = vset.pattern.permute.xlu0 0
        %1355 = vperm.xlu0 %1354, %v171
        %v1356 = vpop.permute.xlu0 %1355
        %1359 = vset.pattern.permute.xlu0 0
        %1360 = vperm.xlu0 %1359, %v172
        %v1361 = vpop.permute.xlu0 %1360
        %1364 = vset.pattern.permute.xlu0 0
        %1365 = vperm.xlu0 %1364, %v173
        %v1366 = vpop.permute.xlu0 %1365
        %1369 = vset.pattern.permute.xlu0 0
        %1370 = vperm.xlu0 %1369, %v174
        %v1371 = vpop.permute.xlu0 %1370
        %1374 = vset.pattern.permute.xlu0 0
        %1375 = vperm.xlu0 %1374, %v175
        %v1376 = vpop.permute.xlu0 %1375
        %1379 = vset.pattern.permute.xlu0 0
        %1380 = vperm.xlu0 %1379, %v176
        %v1381 = vpop.permute.xlu0 %1380
        %1384 = vset.pattern.permute.xlu0 0
        %1385 = vperm.xlu0 %1384, %v177
        %v1386 = vpop.permute.xlu0 %1385
        %1389 = vset.pattern.permute.xlu0 0
        %1390 = vperm.xlu0 %1389, %v178
        %v1391 = vpop.permute.xlu0 %1390
        %1394 = vset.pattern.permute.xlu0 0
        %1395 = vperm.xlu0 %1394, %v179
        %v1396 = vpop.permute.xlu0 %1395
        %1399 = vset.pattern.permute.xlu0 0
        %1400 = vperm.xlu0 %1399, %v180
        %v1401 = vpop.permute.xlu0 %1400
        %1404 = vset.pattern.permute.xlu0 0
        %1405 = vperm.xlu0 %1404, %v181
        %v1406 = vpop.permute.xlu0 %1405
        %v1408 = vmul.f32 %v1296, %v1331
        %v1409 = vmul.f32 %v1297, %v1331
        %v1410 = vmul.f32 %v1298, %v1336
        %v1411 = vmul.f32 %v1299, %v1336
        %v1412 = vmul.f32 %v1300, %v1341
        %v1413 = vmul.f32 %v1301, %v1341
        %v1414 = vmul.f32 %v1302, %v1346
        %v1415 = vmul.f32 %v1303, %v1346
        %v1416 = vmul.f32 %v1304, %v1351
        %v1417 = vmul.f32 %v1305, %v1351
        %v1418 = vmul.f32 %v1306, %v1356
        %v1419 = vmul.f32 %v1307, %v1356
        %v1420 = vmul.f32 %v1308, %v1361
        %v1421 = vmul.f32 %v1309, %v1361
        %v1422 = vmul.f32 %v1310, %v1366
        %v1423 = vmul.f32 %v1311, %v1366
        %v1424 = vmul.f32 %v1312, %v1371
        %v1425 = vmul.f32 %v1313, %v1371
        %v1426 = vmul.f32 %v1314, %v1376
        %v1427 = vmul.f32 %v1315, %v1376
        %v1428 = vmul.f32 %v1316, %v1381
        %v1429 = vmul.f32 %v1317, %v1381
        %v1430 = vmul.f32 %v1318, %v1386
        %v1431 = vmul.f32 %v1319, %v1386
        %v1432 = vmul.f32 %v1320, %v1391
        %v1433 = vmul.f32 %v1321, %v1391
        %v1434 = vmul.f32 %v1322, %v1396
        %v1435 = vmul.f32 %v1323, %v1396
        %v1436 = vmul.f32 %v1324, %v1401
        %v1437 = vmul.f32 %v1325, %v1401
        %v1438 = vmul.f32 %v1326, %v1406
        %v1439 = vmul.f32 %v1327, %v1406
        %1441 = vset.pattern.permute.xlu0 0
        %1442 = vperm.xlu0 %1441, %v182
        %v1443 = vpop.permute.xlu0 %1442
        %1446 = vset.pattern.permute.xlu0 0
        %1447 = vperm.xlu0 %1446, %v183
        %v1448 = vpop.permute.xlu0 %1447
        %1451 = vset.pattern.permute.xlu0 0
        %1452 = vperm.xlu0 %1451, %v184
        %v1453 = vpop.permute.xlu0 %1452
        %1456 = vset.pattern.permute.xlu0 0
        %1457 = vperm.xlu0 %1456, %v185
        %v1458 = vpop.permute.xlu0 %1457
        %1461 = vset.pattern.permute.xlu0 0
        %1462 = vperm.xlu0 %1461, %v186
        %v1463 = vpop.permute.xlu0 %1462
        %1466 = vset.pattern.permute.xlu0 0
        %1467 = vperm.xlu0 %1466, %v187
        %v1468 = vpop.permute.xlu0 %1467
        %1471 = vset.pattern.permute.xlu0 0
        %1472 = vperm.xlu0 %1471, %v188
        %v1473 = vpop.permute.xlu0 %1472
        %1476 = vset.pattern.permute.xlu0 0
        %1477 = vperm.xlu0 %1476, %v189
        %v1478 = vpop.permute.xlu0 %1477
        %1481 = vset.pattern.permute.xlu0 0
        %1482 = vperm.xlu0 %1481, %v190
        %v1483 = vpop.permute.xlu0 %1482
        %1486 = vset.pattern.permute.xlu0 0
        %1487 = vperm.xlu0 %1486, %v191
        %v1488 = vpop.permute.xlu0 %1487
        %1491 = vset.pattern.permute.xlu0 0
        %1492 = vperm.xlu0 %1491, %v192
        %v1493 = vpop.permute.xlu0 %1492
        %1496 = vset.pattern.permute.xlu0 0
        %1497 = vperm.xlu0 %1496, %v193
        %v1498 = vpop.permute.xlu0 %1497
        %1501 = vset.pattern.permute.xlu0 0
        %1502 = vperm.xlu0 %1501, %v194
        %v1503 = vpop.permute.xlu0 %1502
        %1506 = vset.pattern.permute.xlu0 0
        %1507 = vperm.xlu0 %1506, %v195
        %v1508 = vpop.permute.xlu0 %1507
        %1511 = vset.pattern.permute.xlu0 0
        %1512 = vperm.xlu0 %1511, %v196
        %v1513 = vpop.permute.xlu0 %1512
        %1516 = vset.pattern.permute.xlu0 0
        %1517 = vperm.xlu0 %1516, %v197
        %v1518 = vpop.permute.xlu0 %1517
        %v1520 = vadd.f32 %v1408, %v1443
        %v1521 = vadd.f32 %v1409, %v1443
        %v1522 = vadd.f32 %v1410, %v1448
        %v1523 = vadd.f32 %v1411, %v1448
        %v1524 = vadd.f32 %v1412, %v1453
        %v1525 = vadd.f32 %v1413, %v1453
        %v1526 = vadd.f32 %v1414, %v1458
        %v1527 = vadd.f32 %v1415, %v1458
        %v1528 = vadd.f32 %v1416, %v1463
        %v1529 = vadd.f32 %v1417, %v1463
        %v1530 = vadd.f32 %v1418, %v1468
        %v1531 = vadd.f32 %v1419, %v1468
        %v1532 = vadd.f32 %v1420, %v1473
        %v1533 = vadd.f32 %v1421, %v1473
        %v1534 = vadd.f32 %v1422, %v1478
        %v1535 = vadd.f32 %v1423, %v1478
        %v1536 = vadd.f32 %v1424, %v1483
        %v1537 = vadd.f32 %v1425, %v1483
        %v1538 = vadd.f32 %v1426, %v1488
        %v1539 = vadd.f32 %v1427, %v1488
        %v1540 = vadd.f32 %v1428, %v1493
        %v1541 = vadd.f32 %v1429, %v1493
        %v1542 = vadd.f32 %v1430, %v1498
        %v1543 = vadd.f32 %v1431, %v1498
        %v1544 = vadd.f32 %v1432, %v1503
        %v1545 = vadd.f32 %v1433, %v1503
        %v1546 = vadd.f32 %v1434, %v1508
        %v1547 = vadd.f32 %v1435, %v1508
        %v1548 = vadd.f32 %v1436, %v1513
        %v1549 = vadd.f32 %v1437, %v1513
        %v1550 = vadd.f32 %v1438, %v1518
        %v1551 = vadd.f32 %v1439, %v1518
        %v1552 = vand.u32 2147483647, %v1520
        %vm1553 = vcmp.le.f32.partialorder %v1552, 0.7853982
        %vm1554 = vcmp.lt.s32.totalorder %v1520, 0
        %v1555 = vand.u32 %v1520, 2139095040
        %v1556 = vshrl.u32 %v1555, 23
        %v1557 = vsub.s32 %v1556, 127
        %v1558 = vand.u32 2147483647, %v1520
        %v1559 = vand.u32 %v1558, 8388607
        %v1560 = vor.u32 %v1559, 8388608
        %v1561 = vsub.s32 0, %v1560
        %v1562 = vadd.s32 %v1557, 1
        %vm1563 = vcmp.gt.s32.totalorder %v1562, 0
        %v1564 = vsel %vm1563, %v1562, 0
        %v1565 = vshrl.u32 %v1564, 5
        %v1566 = vand.u32 %v1564, 31
        %v1567 = vsub.s32 32, %v1566
        %v1568 = vshrl.u32 683565275, %v1567
        %v1569 = vshll.u32 683565275, %v1566
        %v1570 = vshrl.u32 2475754826, %v1567
        %v1571 = vor.u32 %v1569, %v1570
        %v1572 = vshll.u32 2475754826, %v1566
        %v1573 = vshrl.u32 2131351028, %v1567
        %v1574 = vor.u32 %v1572, %v1573
        %v1575 = vshll.u32 2131351028, %v1566
        %v1576 = vshrl.u32 2102212464, %v1567
        %v1577 = vor.u32 %v1575, %v1576
        %v1578 = vshll.u32 2102212464, %v1566
        %v1579 = vshrl.u32 920167782, %v1567
        %v1580 = vor.u32 %v1578, %v1579
        %v1581 = vshll.u32 920167782, %v1566
        %v1582 = vshrl.u32 1326507024, %v1567
        %v1583 = vor.u32 %v1581, %v1582
        %vm1584 = vcmp.lt.s32.totalorder %v1565, 1
        %vm1585 = vcmp.lt.s32.totalorder %v1565, 2
        %vm1586 = vcmp.lt.s32.totalorder %v1565, 3
        %vm1587 = vcmp.lt.s32.totalorder %v1565, 4
        %v1588 = vsel %vm1584, %v1568, %v1571
        %v1589 = vsel %vm1587, %v1577, 2102212464
        %v1590 = vsel %vm1586, %v1574, %v1589
        %v1591 = vsel %vm1585, %v1588, %v1590
        %v1592 = vsel %vm1584, %v1571, %v1574
        %v1593 = vsel %vm1587, %v1580, 920167782
        %v1594 = vsel %vm1586, %v1577, %v1593
        %v1595 = vsel %vm1585, %v1592, %v1594
        %v1596 = vsel %vm1584, %v1574, %v1577
        %v1597 = vsel %vm1587, %v1583, 1326507024
        %v1598 = vsel %vm1586, %v1580, %v1597
        %v1599 = vsel %vm1585, %v1596, %v1598
        %v1600 = vshll.u32 %v1560, 8
        %v1601 = vmul.u32.u64.compose %v1600, %v1599
        %v1602 = vextract.low.u32 %v1601
        %v1603 = vextract.high.u32 %v1601
        %v1604 = vmul.u32.u64.compose %v1600, %v1595
        %v1605 = vextract.low.u32 %v1604
        %v1606 = vextract.high.u32 %v1604
        %v1607 = vmul.u32 %v1600, %v1591
        %v1608 = vadd.s32 %v1603, %v1605
        %vm1609 = vc.u32 %v1603, %v1605
        %v1610 = vadd.s32 %v1606, 1
        %v1611 = vsel %vm1609, %v1610, %v1606
        %v1612 = vadd.s32 %v1607, %v1611
        %v1613 = vadd.s32 %v1612, 536870912
        %v1614 = vshrl.u32 %v1613, 30
        %v1615 = vshll.u32 %v1614, 30
        %v1616 = vsub.s32 %v1612, %v1615
        %vm1617 = vcmp.lt.s32.totalorder %v1616, 0
        %v1618 = vsub.s32 0, %v1616
        %v1619 = vsel %vm1617, %v1618, %v1616
        %v1620 = vclz %v1619
        %v1621 = vsub.s32 %v1620, 2
        %vm1622 = vcmp.gt.s32.totalorder 0, %v1621
        %v1623 = vsel %vm1622, 0, %v1621
        %v1624 = vsub.s32 32, %v1623
        %v1625 = vshll.u32 %v1616, %v1623
        %v1626 = vshrl.u32 %v1608, %v1624
        %v1627 = vor.u32 %v1625, %v1626
        %v1628 = vsub.s32 4294967266, %v1623
        %v1629 = vadd.s32 %v1628, 127
        %v1630 = vshll.u32 %v1629, 23
        %v1631 = vor.u32 4788187, %v1630
        %v1632 = vand.u32 2147483647, %v1631
        %v1634 = vcvt.s32.f32 %v1627
        %v1635 = vmul.f32 %v1634, %v1632
        %v1636 = vxor.u32 %v1635, 2147483648
        %v1637 = vsel %vm1554, %v1636, %v1635
        %v1638 = vsub.s32 4, %v1614
        %v1639 = vsel %vm1554, %v1638, %v1614
        %v1640 = vsel %vm1553, %v1520, %v1637
        %v1641 = vsel %vm1553, 0, %v1639
        %v1642 = vcosq.f32.pop %v1640
        %v1643 = vsinq.f32.pop %v1640
        %vm1644 = vweird.f32 %v1520
        %v1645 = vadd.s32 %v1641, 3
        %v1646 = vand.u32 %v1645, 3
        %vm1647 = vcmp.lt.s32.totalorder %v1646, 2
        %vm1648 = vcmp.eq.s32.totalorder %v1646, 0
        %v1649 = vxor.u32 %v1643, 2147483648
        %v1650 = vsel %vm1648, %v1642, %v1649
        %vm1651 = vcmp.eq.s32.totalorder %v1646, 2
        %v1652 = vxor.u32 %v1642, 2147483648
        %v1653 = vsel %vm1651, %v1652, %v1643
        %v1654 = vsel %vm1647, %v1650, %v1653
        %v1655 = vsel %vm1644, nan, %v1654
        %v1656 = vand.u32 2147483647, %v1521
        %vm1657 = vcmp.le.f32.partialorder %v1656, 0.7853982
        %vm1658 = vcmp.lt.s32.totalorder %v1521, 0
        %v1659 = vand.u32 %v1521, 2139095040
        %v1660 = vshrl.u32 %v1659, 23
        %v1661 = vsub.s32 %v1660, 127
        %v1662 = vand.u32 2147483647, %v1521
        %v1663 = vand.u32 %v1662, 8388607
        %v1664 = vor.u32 %v1663, 8388608
        %v1665 = vsub.s32 0, %v1664
        %v1666 = vadd.s32 %v1661, 1
        %vm1667 = vcmp.gt.s32.totalorder %v1666, 0
        %v1668 = vsel %vm1667, %v1666, 0
        %v1669 = vshrl.u32 %v1668, 5
        %v1670 = vand.u32 %v1668, 31
        %v1671 = vsub.s32 32, %v1670
        %v1672 = vshrl.u32 683565275, %v1671
        %v1673 = vshll.u32 683565275, %v1670
        %v1674 = vshrl.u32 2475754826, %v1671
        %v1675 = vor.u32 %v1673, %v1674
        %v1676 = vshll.u32 2475754826, %v1670
        %v1677 = vshrl.u32 2131351028, %v1671
        %v1678 = vor.u32 %v1676, %v1677
        %v1679 = vshll.u32 2131351028, %v1670
        %v1680 = vshrl.u32 2102212464, %v1671
        %v1681 = vor.u32 %v1679, %v1680
        %v1682 = vshll.u32 2102212464, %v1670
        %v1683 = vshrl.u32 920167782, %v1671
        %v1684 = vor.u32 %v1682, %v1683
        %v1685 = vshll.u32 920167782, %v1670
        %v1686 = vshrl.u32 1326507024, %v1671
        %v1687 = vor.u32 %v1685, %v1686
        %vm1688 = vcmp.lt.s32.totalorder %v1669, 1
        %vm1689 = vcmp.lt.s32.totalorder %v1669, 2
        %vm1690 = vcmp.lt.s32.totalorder %v1669, 3
        %vm1691 = vcmp.lt.s32.totalorder %v1669, 4
        %v1692 = vsel %vm1688, %v1672, %v1675
        %v1693 = vsel %vm1691, %v1681, 2102212464
        %v1694 = vsel %vm1690, %v1678, %v1693
        %v1695 = vsel %vm1689, %v1692, %v1694
        %v1696 = vsel %vm1688, %v1675, %v1678
        %v1697 = vsel %vm1691, %v1684, 920167782
        %v1698 = vsel %vm1690, %v1681, %v1697
        %v1699 = vsel %vm1689, %v1696, %v1698
        %v1700 = vsel %vm1688, %v1678, %v1681
        %v1701 = vsel %vm1691, %v1687, 1326507024
        %v1702 = vsel %vm1690, %v1684, %v1701
        %v1703 = vsel %vm1689, %v1700, %v1702
        %v1704 = vshll.u32 %v1664, 8
        %v1705 = vmul.u32.u64.compose %v1704, %v1703
        %v1706 = vextract.low.u32 %v1705
        %v1707 = vextract.high.u32 %v1705
        %v1708 = vmul.u32.u64.compose %v1704, %v1699
        %v1709 = vextract.low.u32 %v1708
        %v1710 = vextract.high.u32 %v1708
        %v1711 = vmul.u32 %v1704, %v1695
        %v1712 = vadd.s32 %v1707, %v1709
        %vm1713 = vc.u32 %v1707, %v1709
        %v1714 = vadd.s32 %v1710, 1
        %v1715 = vsel %vm1713, %v1714, %v1710
        %v1716 = vadd.s32 %v1711, %v1715
        %v1717 = vadd.s32 %v1716, 536870912
        %v1718 = vshrl.u32 %v1717, 30
        %v1719 = vshll.u32 %v1718, 30
        %v1720 = vsub.s32 %v1716, %v1719
        %vm1721 = vcmp.lt.s32.totalorder %v1720, 0
        %v1722 = vsub.s32 0, %v1720
        %v1723 = vsel %vm1721, %v1722, %v1720
        %v1724 = vclz %v1723
        %v1725 = vsub.s32 %v1724, 2
        %vm1726 = vcmp.gt.s32.totalorder 0, %v1725
        %v1727 = vsel %vm1726, 0, %v1725
        %v1728 = vsub.s32 32, %v1727
        %v1729 = vshll.u32 %v1720, %v1727
        %v1730 = vshrl.u32 %v1712, %v1728
        %v1731 = vor.u32 %v1729, %v1730
        %v1732 = vsub.s32 4294967266, %v1727
        %v1733 = vadd.s32 %v1732, 127
        %v1734 = vshll.u32 %v1733, 23
        %v1735 = vor.u32 4788187, %v1734
        %v1736 = vand.u32 2147483647, %v1735
        %v1738 = vcvt.s32.f32 %v1731
        %v1739 = vmul.f32 %v1738, %v1736
        %v1740 = vxor.u32 %v1739, 2147483648
        %v1741 = vsel %vm1658, %v1740, %v1739
        %v1742 = vsub.s32 4, %v1718
        %v1743 = vsel %vm1658, %v1742, %v1718
        %v1744 = vsel %vm1657, %v1521, %v1741
        %v1745 = vsel %vm1657, 0, %v1743
        %v1746 = vcosq.f32.pop %v1744
        %v1747 = vsinq.f32.pop %v1744
        %vm1748 = vweird.f32 %v1521
        %v1749 = vadd.s32 %v1745, 3
        %v1750 = vand.u32 %v1749, 3
        %vm1751 = vcmp.lt.s32.totalorder %v1750, 2
        %vm1752 = vcmp.eq.s32.totalorder %v1750, 0
        %v1753 = vxor.u32 %v1747, 2147483648
        %v1754 = vsel %vm1752, %v1746, %v1753
        %vm1755 = vcmp.eq.s32.totalorder %v1750, 2
        %v1756 = vxor.u32 %v1746, 2147483648
        %v1757 = vsel %vm1755, %v1756, %v1747
        %v1758 = vsel %vm1751, %v1754, %v1757
        %v1759 = vsel %vm1748, nan, %v1758
        %v1760 = vand.u32 2147483647, %v1522
        %vm1761 = vcmp.le.f32.partialorder %v1760, 0.7853982
        %vm1762 = vcmp.lt.s32.totalorder %v1522, 0
        %v1763 = vand.u32 %v1522, 2139095040
        %v1764 = vshrl.u32 %v1763, 23
        %v1765 = vsub.s32 %v1764, 127
        %v1766 = vand.u32 2147483647, %v1522
        %v1767 = vand.u32 %v1766, 8388607
        %v1768 = vor.u32 %v1767, 8388608
        %v1769 = vsub.s32 0, %v1768
        %v1770 = vadd.s32 %v1765, 1
        %vm1771 = vcmp.gt.s32.totalorder %v1770, 0
        %v1772 = vsel %vm1771, %v1770, 0
        %v1773 = vshrl.u32 %v1772, 5
        %v1774 = vand.u32 %v1772, 31
        %v1775 = vsub.s32 32, %v1774
        %v1776 = vshrl.u32 683565275, %v1775
        %v1777 = vshll.u32 683565275, %v1774
        %v1778 = vshrl.u32 2475754826, %v1775
        %v1779 = vor.u32 %v1777, %v1778
        %v1780 = vshll.u32 2475754826, %v1774
        %v1781 = vshrl.u32 2131351028, %v1775
        %v1782 = vor.u32 %v1780, %v1781
        %v1783 = vshll.u32 2131351028, %v1774
        %v1784 = vshrl.u32 2102212464, %v1775
        %v1785 = vor.u32 %v1783, %v1784
        %v1786 = vshll.u32 2102212464, %v1774
        %v1787 = vshrl.u32 920167782, %v1775
        %v1788 = vor.u32 %v1786, %v1787
        %v1789 = vshll.u32 920167782, %v1774
        %v1790 = vshrl.u32 1326507024, %v1775
        %v1791 = vor.u32 %v1789, %v1790
        %vm1792 = vcmp.lt.s32.totalorder %v1773, 1
        %vm1793 = vcmp.lt.s32.totalorder %v1773, 2
        %vm1794 = vcmp.lt.s32.totalorder %v1773, 3
        %vm1795 = vcmp.lt.s32.totalorder %v1773, 4
        %v1796 = vsel %vm1792, %v1776, %v1779
        %v1797 = vsel %vm1795, %v1785, 2102212464
        %v1798 = vsel %vm1794, %v1782, %v1797
        %v1799 = vsel %vm1793, %v1796, %v1798
        %v1800 = vsel %vm1792, %v1779, %v1782
        %v1801 = vsel %vm1795, %v1788, 920167782
        %v1802 = vsel %vm1794, %v1785, %v1801
        %v1803 = vsel %vm1793, %v1800, %v1802
        %v1804 = vsel %vm1792, %v1782, %v1785
        %v1805 = vsel %vm1795, %v1791, 1326507024
        %v1806 = vsel %vm1794, %v1788, %v1805
        %v1807 = vsel %vm1793, %v1804, %v1806
        %v1808 = vshll.u32 %v1768, 8
        %v1809 = vmul.u32.u64.compose %v1808, %v1807
        %v1810 = vextract.low.u32 %v1809
        %v1811 = vextract.high.u32 %v1809
        %v1812 = vmul.u32.u64.compose %v1808, %v1803
        %v1813 = vextract.low.u32 %v1812
        %v1814 = vextract.high.u32 %v1812
        %v1815 = vmul.u32 %v1808, %v1799
        %v1816 = vadd.s32 %v1811, %v1813
        %vm1817 = vc.u32 %v1811, %v1813
        %v1818 = vadd.s32 %v1814, 1
        %v1819 = vsel %vm1817, %v1818, %v1814
        %v1820 = vadd.s32 %v1815, %v1819
        %v1821 = vadd.s32 %v1820, 536870912
        %v1822 = vshrl.u32 %v1821, 30
        %v1823 = vshll.u32 %v1822, 30
        %v1824 = vsub.s32 %v1820, %v1823
        %vm1825 = vcmp.lt.s32.totalorder %v1824, 0
        %v1826 = vsub.s32 0, %v1824
        %v1827 = vsel %vm1825, %v1826, %v1824
        %v1828 = vclz %v1827
        %v1829 = vsub.s32 %v1828, 2
        %vm1830 = vcmp.gt.s32.totalorder 0, %v1829
        %v1831 = vsel %vm1830, 0, %v1829
        %v1832 = vsub.s32 32, %v1831
        %v1833 = vshll.u32 %v1824, %v1831
        %v1834 = vshrl.u32 %v1816, %v1832
        %v1835 = vor.u32 %v1833, %v1834
        %v1836 = vsub.s32 4294967266, %v1831
        %v1837 = vadd.s32 %v1836, 127
        %v1838 = vshll.u32 %v1837, 23
        %v1839 = vor.u32 4788187, %v1838
        %v1840 = vand.u32 2147483647, %v1839
        %v1842 = vcvt.s32.f32 %v1835
        %v1843 = vmul.f32 %v1842, %v1840
        %v1844 = vxor.u32 %v1843, 2147483648
        %v1845 = vsel %vm1762, %v1844, %v1843
        %v1846 = vsub.s32 4, %v1822
        %v1847 = vsel %vm1762, %v1846, %v1822
        %v1848 = vsel %vm1761, %v1522, %v1845
        %v1849 = vsel %vm1761, 0, %v1847
        %v1850 = vcosq.f32.pop %v1848
        %v1851 = vsinq.f32.pop %v1848
        %vm1852 = vweird.f32 %v1522
        %v1853 = vadd.s32 %v1849, 3
        %v1854 = vand.u32 %v1853, 3
        %vm1855 = vcmp.lt.s32.totalorder %v1854, 2
        %vm1856 = vcmp.eq.s32.totalorder %v1854, 0
        %v1857 = vxor.u32 %v1851, 2147483648
        %v1858 = vsel %vm1856, %v1850, %v1857
        %vm1859 = vcmp.eq.s32.totalorder %v1854, 2
        %v1860 = vxor.u32 %v1850, 2147483648
        %v1861 = vsel %vm1859, %v1860, %v1851
        %v1862 = vsel %vm1855, %v1858, %v1861
        %v1863 = vsel %vm1852, nan, %v1862
        %v1864 = vand.u32 2147483647, %v1523
        %vm1865 = vcmp.le.f32.partialorder %v1864, 0.7853982
        %vm1866 = vcmp.lt.s32.totalorder %v1523, 0
        %v1867 = vand.u32 %v1523, 2139095040
        %v1868 = vshrl.u32 %v1867, 23
        %v1869 = vsub.s32 %v1868, 127
        %v1870 = vand.u32 2147483647, %v1523
        %v1871 = vand.u32 %v1870, 8388607
        %v1872 = vor.u32 %v1871, 8388608
        %v1873 = vsub.s32 0, %v1872
        %v1874 = vadd.s32 %v1869, 1
        %vm1875 = vcmp.gt.s32.totalorder %v1874, 0
        %v1876 = vsel %vm1875, %v1874, 0
        %v1877 = vshrl.u32 %v1876, 5
        %v1878 = vand.u32 %v1876, 31
        %v1879 = vsub.s32 32, %v1878
        %v1880 = vshrl.u32 683565275, %v1879
        %v1881 = vshll.u32 683565275, %v1878
        %v1882 = vshrl.u32 2475754826, %v1879
        %v1883 = vor.u32 %v1881, %v1882
        %v1884 = vshll.u32 2475754826, %v1878
        %v1885 = vshrl.u32 2131351028, %v1879
        %v1886 = vor.u32 %v1884, %v1885
        %v1887 = vshll.u32 2131351028, %v1878
        %v1888 = vshrl.u32 2102212464, %v1879
        %v1889 = vor.u32 %v1887, %v1888
        %v1890 = vshll.u32 2102212464, %v1878
        %v1891 = vshrl.u32 920167782, %v1879
        %v1892 = vor.u32 %v1890, %v1891
        %v1893 = vshll.u32 920167782, %v1878
        %v1894 = vshrl.u32 1326507024, %v1879
        %v1895 = vor.u32 %v1893, %v1894
        %vm1896 = vcmp.lt.s32.totalorder %v1877, 1
        %vm1897 = vcmp.lt.s32.totalorder %v1877, 2
        %vm1898 = vcmp.lt.s32.totalorder %v1877, 3
        %vm1899 = vcmp.lt.s32.totalorder %v1877, 4
        %v1900 = vsel %vm1896, %v1880, %v1883
        %v1901 = vsel %vm1899, %v1889, 2102212464
        %v1902 = vsel %vm1898, %v1886, %v1901
        %v1903 = vsel %vm1897, %v1900, %v1902
        %v1904 = vsel %vm1896, %v1883, %v1886
        %v1905 = vsel %vm1899, %v1892, 920167782
        %v1906 = vsel %vm1898, %v1889, %v1905
        %v1907 = vsel %vm1897, %v1904, %v1906
        %v1908 = vsel %vm1896, %v1886, %v1889
        %v1909 = vsel %vm1899, %v1895, 1326507024
        %v1910 = vsel %vm1898, %v1892, %v1909
        %v1911 = vsel %vm1897, %v1908, %v1910
        %v1912 = vshll.u32 %v1872, 8
        %v1913 = vmul.u32.u64.compose %v1912, %v1911
        %v1914 = vextract.low.u32 %v1913
        %v1915 = vextract.high.u32 %v1913
        %v1916 = vmul.u32.u64.compose %v1912, %v1907
        %v1917 = vextract.low.u32 %v1916
        %v1918 = vextract.high.u32 %v1916
        %v1919 = vmul.u32 %v1912, %v1903
        %v1920 = vadd.s32 %v1915, %v1917
        %vm1921 = vc.u32 %v1915, %v1917
        %v1922 = vadd.s32 %v1918, 1
        %v1923 = vsel %vm1921, %v1922, %v1918
        %v1924 = vadd.s32 %v1919, %v1923
        %v1925 = vadd.s32 %v1924, 536870912
        %v1926 = vshrl.u32 %v1925, 30
        %v1927 = vshll.u32 %v1926, 30
        %v1928 = vsub.s32 %v1924, %v1927
        %vm1929 = vcmp.lt.s32.totalorder %v1928, 0
        %v1930 = vsub.s32 0, %v1928
        %v1931 = vsel %vm1929, %v1930, %v1928
        %v1932 = vclz %v1931
        %v1933 = vsub.s32 %v1932, 2
        %vm1934 = vcmp.gt.s32.totalorder 0, %v1933
        %v1935 = vsel %vm1934, 0, %v1933
        %v1936 = vsub.s32 32, %v1935
        %v1937 = vshll.u32 %v1928, %v1935
        %v1938 = vshrl.u32 %v1920, %v1936
        %v1939 = vor.u32 %v1937, %v1938
        %v1940 = vsub.s32 4294967266, %v1935
        %v1941 = vadd.s32 %v1940, 127
        %v1942 = vshll.u32 %v1941, 23
        %v1943 = vor.u32 4788187, %v1942
        %v1944 = vand.u32 2147483647, %v1943
        %v1946 = vcvt.s32.f32 %v1939
        %v1947 = vmul.f32 %v1946, %v1944
        %v1948 = vxor.u32 %v1947, 2147483648
        %v1949 = vsel %vm1866, %v1948, %v1947
        %v1950 = vsub.s32 4, %v1926
        %v1951 = vsel %vm1866, %v1950, %v1926
        %v1952 = vsel %vm1865, %v1523, %v1949
        %v1953 = vsel %vm1865, 0, %v1951
        %v1954 = vcosq.f32.pop %v1952
        %v1955 = vsinq.f32.pop %v1952
        %vm1956 = vweird.f32 %v1523
        %v1957 = vadd.s32 %v1953, 3
        %v1958 = vand.u32 %v1957, 3
        %vm1959 = vcmp.lt.s32.totalorder %v1958, 2
        %vm1960 = vcmp.eq.s32.totalorder %v1958, 0
        %v1961 = vxor.u32 %v1955, 2147483648
        %v1962 = vsel %vm1960, %v1954, %v1961
        %vm1963 = vcmp.eq.s32.totalorder %v1958, 2
        %v1964 = vxor.u32 %v1954, 2147483648
        %v1965 = vsel %vm1963, %v1964, %v1955
        %v1966 = vsel %vm1959, %v1962, %v1965
        %v1967 = vsel %vm1956, nan, %v1966
        %v1968 = vand.u32 2147483647, %v1524
        %vm1969 = vcmp.le.f32.partialorder %v1968, 0.7853982
        %vm1970 = vcmp.lt.s32.totalorder %v1524, 0
        %v1971 = vand.u32 %v1524, 2139095040
        %v1972 = vshrl.u32 %v1971, 23
        %v1973 = vsub.s32 %v1972, 127
        %v1974 = vand.u32 2147483647, %v1524
        %v1975 = vand.u32 %v1974, 8388607
        %v1976 = vor.u32 %v1975, 8388608
        %v1977 = vsub.s32 0, %v1976
        %v1978 = vadd.s32 %v1973, 1
        %vm1979 = vcmp.gt.s32.totalorder %v1978, 0
        %v1980 = vsel %vm1979, %v1978, 0
        %v1981 = vshrl.u32 %v1980, 5
        %v1982 = vand.u32 %v1980, 31
        %v1983 = vsub.s32 32, %v1982
        %v1984 = vshrl.u32 683565275, %v1983
        %v1985 = vshll.u32 683565275, %v1982
        %v1986 = vshrl.u32 2475754826, %v1983
        %v1987 = vor.u32 %v1985, %v1986
        %v1988 = vshll.u32 2475754826, %v1982
        %v1989 = vshrl.u32 2131351028, %v1983
        %v1990 = vor.u32 %v1988, %v1989
        %v1991 = vshll.u32 2131351028, %v1982
        %v1992 = vshrl.u32 2102212464, %v1983
        %v1993 = vor.u32 %v1991, %v1992
        %v1994 = vshll.u32 2102212464, %v1982
        %v1995 = vshrl.u32 920167782, %v1983
        %v1996 = vor.u32 %v1994, %v1995
        %v1997 = vshll.u32 920167782, %v1982
        %v1998 = vshrl.u32 1326507024, %v1983
        %v1999 = vor.u32 %v1997, %v1998
        %vm2000 = vcmp.lt.s32.totalorder %v1981, 1
        %vm2001 = vcmp.lt.s32.totalorder %v1981, 2
        %vm2002 = vcmp.lt.s32.totalorder %v1981, 3
        %vm2003 = vcmp.lt.s32.totalorder %v1981, 4
        %v2004 = vsel %vm2000, %v1984, %v1987
        %v2005 = vsel %vm2003, %v1993, 2102212464
        %v2006 = vsel %vm2002, %v1990, %v2005
        %v2007 = vsel %vm2001, %v2004, %v2006
        %v2008 = vsel %vm2000, %v1987, %v1990
        %v2009 = vsel %vm2003, %v1996, 920167782
        %v2010 = vsel %vm2002, %v1993, %v2009
        %v2011 = vsel %vm2001, %v2008, %v2010
        %v2012 = vsel %vm2000, %v1990, %v1993
        %v2013 = vsel %vm2003, %v1999, 1326507024
        %v2014 = vsel %vm2002, %v1996, %v2013
        %v2015 = vsel %vm2001, %v2012, %v2014
        %v2016 = vshll.u32 %v1976, 8
        %v2017 = vmul.u32.u64.compose %v2016, %v2015
        %v2018 = vextract.low.u32 %v2017
        %v2019 = vextract.high.u32 %v2017
        %v2020 = vmul.u32.u64.compose %v2016, %v2011
        %v2021 = vextract.low.u32 %v2020
        %v2022 = vextract.high.u32 %v2020
        %v2023 = vmul.u32 %v2016, %v2007
        %v2024 = vadd.s32 %v2019, %v2021
        %vm2025 = vc.u32 %v2019, %v2021
        %v2026 = vadd.s32 %v2022, 1
        %v2027 = vsel %vm2025, %v2026, %v2022
        %v2028 = vadd.s32 %v2023, %v2027
        %v2029 = vadd.s32 %v2028, 536870912
        %v2030 = vshrl.u32 %v2029, 30
        %v2031 = vshll.u32 %v2030, 30
        %v2032 = vsub.s32 %v2028, %v2031
        %vm2033 = vcmp.lt.s32.totalorder %v2032, 0
        %v2034 = vsub.s32 0, %v2032
        %v2035 = vsel %vm2033, %v2034, %v2032
        %v2036 = vclz %v2035
        %v2037 = vsub.s32 %v2036, 2
        %vm2038 = vcmp.gt.s32.totalorder 0, %v2037
        %v2039 = vsel %vm2038, 0, %v2037
        %v2040 = vsub.s32 32, %v2039
        %v2041 = vshll.u32 %v2032, %v2039
        %v2042 = vshrl.u32 %v2024, %v2040
        %v2043 = vor.u32 %v2041, %v2042
        %v2044 = vsub.s32 4294967266, %v2039
        %v2045 = vadd.s32 %v2044, 127
        %v2046 = vshll.u32 %v2045, 23
        %v2047 = vor.u32 4788187, %v2046
        %v2048 = vand.u32 2147483647, %v2047
        %v2050 = vcvt.s32.f32 %v2043
        %v2051 = vmul.f32 %v2050, %v2048
        %v2052 = vxor.u32 %v2051, 2147483648
        %v2053 = vsel %vm1970, %v2052, %v2051
        %v2054 = vsub.s32 4, %v2030
        %v2055 = vsel %vm1970, %v2054, %v2030
        %v2056 = vsel %vm1969, %v1524, %v2053
        %v2057 = vsel %vm1969, 0, %v2055
        %v2058 = vcosq.f32.pop %v2056
        %v2059 = vsinq.f32.pop %v2056
        %vm2060 = vweird.f32 %v1524
        %v2061 = vadd.s32 %v2057, 3
        %v2062 = vand.u32 %v2061, 3
        %vm2063 = vcmp.lt.s32.totalorder %v2062, 2
        %vm2064 = vcmp.eq.s32.totalorder %v2062, 0
        %v2065 = vxor.u32 %v2059, 2147483648
        %v2066 = vsel %vm2064, %v2058, %v2065
        %vm2067 = vcmp.eq.s32.totalorder %v2062, 2
        %v2068 = vxor.u32 %v2058, 2147483648
        %v2069 = vsel %vm2067, %v2068, %v2059
        %v2070 = vsel %vm2063, %v2066, %v2069
        %v2071 = vsel %vm2060, nan, %v2070
        %v2072 = vand.u32 2147483647, %v1525
        %vm2073 = vcmp.le.f32.partialorder %v2072, 0.7853982
        %vm2074 = vcmp.lt.s32.totalorder %v1525, 0
        %v2075 = vand.u32 %v1525, 2139095040
        %v2076 = vshrl.u32 %v2075, 23
        %v2077 = vsub.s32 %v2076, 127
        %v2078 = vand.u32 2147483647, %v1525
        %v2079 = vand.u32 %v2078, 8388607
        %v2080 = vor.u32 %v2079, 8388608
        %v2081 = vsub.s32 0, %v2080
        %v2082 = vadd.s32 %v2077, 1
        %vm2083 = vcmp.gt.s32.totalorder %v2082, 0
        %v2084 = vsel %vm2083, %v2082, 0
        %v2085 = vshrl.u32 %v2084, 5
        %v2086 = vand.u32 %v2084, 31
        %v2087 = vsub.s32 32, %v2086
        %v2088 = vshrl.u32 683565275, %v2087
        %v2089 = vshll.u32 683565275, %v2086
        %v2090 = vshrl.u32 2475754826, %v2087
        %v2091 = vor.u32 %v2089, %v2090
        %v2092 = vshll.u32 2475754826, %v2086
        %v2093 = vshrl.u32 2131351028, %v2087
        %v2094 = vor.u32 %v2092, %v2093
        %v2095 = vshll.u32 2131351028, %v2086
        %v2096 = vshrl.u32 2102212464, %v2087
        %v2097 = vor.u32 %v2095, %v2096
        %v2098 = vshll.u32 2102212464, %v2086
        %v2099 = vshrl.u32 920167782, %v2087
        %v2100 = vor.u32 %v2098, %v2099
        %v2101 = vshll.u32 920167782, %v2086
        %v2102 = vshrl.u32 1326507024, %v2087
        %v2103 = vor.u32 %v2101, %v2102
        %vm2104 = vcmp.lt.s32.totalorder %v2085, 1
        %vm2105 = vcmp.lt.s32.totalorder %v2085, 2
        %vm2106 = vcmp.lt.s32.totalorder %v2085, 3
        %vm2107 = vcmp.lt.s32.totalorder %v2085, 4
        %v2108 = vsel %vm2104, %v2088, %v2091
        %v2109 = vsel %vm2107, %v2097, 2102212464
        %v2110 = vsel %vm2106, %v2094, %v2109
        %v2111 = vsel %vm2105, %v2108, %v2110
        %v2112 = vsel %vm2104, %v2091, %v2094
        %v2113 = vsel %vm2107, %v2100, 920167782
        %v2114 = vsel %vm2106, %v2097, %v2113
        %v2115 = vsel %vm2105, %v2112, %v2114
        %v2116 = vsel %vm2104, %v2094, %v2097
        %v2117 = vsel %vm2107, %v2103, 1326507024
        %v2118 = vsel %vm2106, %v2100, %v2117
        %v2119 = vsel %vm2105, %v2116, %v2118
        %v2120 = vshll.u32 %v2080, 8
        %v2121 = vmul.u32.u64.compose %v2120, %v2119
        %v2122 = vextract.low.u32 %v2121
        %v2123 = vextract.high.u32 %v2121
        %v2124 = vmul.u32.u64.compose %v2120, %v2115
        %v2125 = vextract.low.u32 %v2124
        %v2126 = vextract.high.u32 %v2124
        %v2127 = vmul.u32 %v2120, %v2111
        %v2128 = vadd.s32 %v2123, %v2125
        %vm2129 = vc.u32 %v2123, %v2125
        %v2130 = vadd.s32 %v2126, 1
        %v2131 = vsel %vm2129, %v2130, %v2126
        %v2132 = vadd.s32 %v2127, %v2131
        %v2133 = vadd.s32 %v2132, 536870912
        %v2134 = vshrl.u32 %v2133, 30
        %v2135 = vshll.u32 %v2134, 30
        %v2136 = vsub.s32 %v2132, %v2135
        %vm2137 = vcmp.lt.s32.totalorder %v2136, 0
        %v2138 = vsub.s32 0, %v2136
        %v2139 = vsel %vm2137, %v2138, %v2136
        %v2140 = vclz %v2139
        %v2141 = vsub.s32 %v2140, 2
        %vm2142 = vcmp.gt.s32.totalorder 0, %v2141
        %v2143 = vsel %vm2142, 0, %v2141
        %v2144 = vsub.s32 32, %v2143
        %v2145 = vshll.u32 %v2136, %v2143
        %v2146 = vshrl.u32 %v2128, %v2144
        %v2147 = vor.u32 %v2145, %v2146
        %v2148 = vsub.s32 4294967266, %v2143
        %v2149 = vadd.s32 %v2148, 127
        %v2150 = vshll.u32 %v2149, 23
        %v2151 = vor.u32 4788187, %v2150
        %v2152 = vand.u32 2147483647, %v2151
        %v2154 = vcvt.s32.f32 %v2147
        %v2155 = vmul.f32 %v2154, %v2152
        %v2156 = vxor.u32 %v2155, 2147483648
        %v2157 = vsel %vm2074, %v2156, %v2155
        %v2158 = vsub.s32 4, %v2134
        %v2159 = vsel %vm2074, %v2158, %v2134
        %v2160 = vsel %vm2073, %v1525, %v2157
        %v2161 = vsel %vm2073, 0, %v2159
        %v2162 = vcosq.f32.pop %v2160
        %v2163 = vsinq.f32.pop %v2160
        %vm2164 = vweird.f32 %v1525
        %v2165 = vadd.s32 %v2161, 3
        %v2166 = vand.u32 %v2165, 3
        %vm2167 = vcmp.lt.s32.totalorder %v2166, 2
        %vm2168 = vcmp.eq.s32.totalorder %v2166, 0
        %v2169 = vxor.u32 %v2163, 2147483648
        %v2170 = vsel %vm2168, %v2162, %v2169
        %vm2171 = vcmp.eq.s32.totalorder %v2166, 2
        %v2172 = vxor.u32 %v2162, 2147483648
        %v2173 = vsel %vm2171, %v2172, %v2163
        %v2174 = vsel %vm2167, %v2170, %v2173
        %v2175 = vsel %vm2164, nan, %v2174
        %v2176 = vand.u32 2147483647, %v1526
        %vm2177 = vcmp.le.f32.partialorder %v2176, 0.7853982
        %vm2178 = vcmp.lt.s32.totalorder %v1526, 0
        %v2179 = vand.u32 %v1526, 2139095040
        %v2180 = vshrl.u32 %v2179, 23
        %v2181 = vsub.s32 %v2180, 127
        %v2182 = vand.u32 2147483647, %v1526
        %v2183 = vand.u32 %v2182, 8388607
        %v2184 = vor.u32 %v2183, 8388608
        %v2185 = vsub.s32 0, %v2184
        %v2186 = vadd.s32 %v2181, 1
        %vm2187 = vcmp.gt.s32.totalorder %v2186, 0
        %v2188 = vsel %vm2187, %v2186, 0
        %v2189 = vshrl.u32 %v2188, 5
        %v2190 = vand.u32 %v2188, 31
        %v2191 = vsub.s32 32, %v2190
        %v2192 = vshrl.u32 683565275, %v2191
        %v2193 = vshll.u32 683565275, %v2190
        %v2194 = vshrl.u32 2475754826, %v2191
        %v2195 = vor.u32 %v2193, %v2194
        %v2196 = vshll.u32 2475754826, %v2190
        %v2197 = vshrl.u32 2131351028, %v2191
        %v2198 = vor.u32 %v2196, %v2197
        %v2199 = vshll.u32 2131351028, %v2190
        %v2200 = vshrl.u32 2102212464, %v2191
        %v2201 = vor.u32 %v2199, %v2200
        %v2202 = vshll.u32 2102212464, %v2190
        %v2203 = vshrl.u32 920167782, %v2191
        %v2204 = vor.u32 %v2202, %v2203
        %v2205 = vshll.u32 920167782, %v2190
        %v2206 = vshrl.u32 1326507024, %v2191
        %v2207 = vor.u32 %v2205, %v2206
        %vm2208 = vcmp.lt.s32.totalorder %v2189, 1
        %vm2209 = vcmp.lt.s32.totalorder %v2189, 2
        %vm2210 = vcmp.lt.s32.totalorder %v2189, 3
        %vm2211 = vcmp.lt.s32.totalorder %v2189, 4
        %v2212 = vsel %vm2208, %v2192, %v2195
        %v2213 = vsel %vm2211, %v2201, 2102212464
        %v2214 = vsel %vm2210, %v2198, %v2213
        %v2215 = vsel %vm2209, %v2212, %v2214
        %v2216 = vsel %vm2208, %v2195, %v2198
        %v2217 = vsel %vm2211, %v2204, 920167782
        %v2218 = vsel %vm2210, %v2201, %v2217
        %v2219 = vsel %vm2209, %v2216, %v2218
        %v2220 = vsel %vm2208, %v2198, %v2201
        %v2221 = vsel %vm2211, %v2207, 1326507024
        %v2222 = vsel %vm2210, %v2204, %v2221
        %v2223 = vsel %vm2209, %v2220, %v2222
        %v2224 = vshll.u32 %v2184, 8
        %v2225 = vmul.u32.u64.compose %v2224, %v2223
        %v2226 = vextract.low.u32 %v2225
        %v2227 = vextract.high.u32 %v2225
        %v2228 = vmul.u32.u64.compose %v2224, %v2219
        %v2229 = vextract.low.u32 %v2228
        %v2230 = vextract.high.u32 %v2228
        %v2231 = vmul.u32 %v2224, %v2215
        %v2232 = vadd.s32 %v2227, %v2229
        %vm2233 = vc.u32 %v2227, %v2229
        %v2234 = vadd.s32 %v2230, 1
        %v2235 = vsel %vm2233, %v2234, %v2230
        %v2236 = vadd.s32 %v2231, %v2235
        %v2237 = vadd.s32 %v2236, 536870912
        %v2238 = vshrl.u32 %v2237, 30
        %v2239 = vshll.u32 %v2238, 30
        %v2240 = vsub.s32 %v2236, %v2239
        %vm2241 = vcmp.lt.s32.totalorder %v2240, 0
        %v2242 = vsub.s32 0, %v2240
        %v2243 = vsel %vm2241, %v2242, %v2240
        %v2244 = vclz %v2243
        %v2245 = vsub.s32 %v2244, 2
        %vm2246 = vcmp.gt.s32.totalorder 0, %v2245
        %v2247 = vsel %vm2246, 0, %v2245
        %v2248 = vsub.s32 32, %v2247
        %v2249 = vshll.u32 %v2240, %v2247
        %v2250 = vshrl.u32 %v2232, %v2248
        %v2251 = vor.u32 %v2249, %v2250
        %v2252 = vsub.s32 4294967266, %v2247
        %v2253 = vadd.s32 %v2252, 127
        %v2254 = vshll.u32 %v2253, 23
        %v2255 = vor.u32 4788187, %v2254
        %v2256 = vand.u32 2147483647, %v2255
        %v2258 = vcvt.s32.f32 %v2251
        %v2259 = vmul.f32 %v2258, %v2256
        %v2260 = vxor.u32 %v2259, 2147483648
        %v2261 = vsel %vm2178, %v2260, %v2259
        %v2262 = vsub.s32 4, %v2238
        %v2263 = vsel %vm2178, %v2262, %v2238
        %v2264 = vsel %vm2177, %v1526, %v2261
        %v2265 = vsel %vm2177, 0, %v2263
        %v2266 = vcosq.f32.pop %v2264
        %v2267 = vsinq.f32.pop %v2264
        %vm2268 = vweird.f32 %v1526
        %v2269 = vadd.s32 %v2265, 3
        %v2270 = vand.u32 %v2269, 3
        %vm2271 = vcmp.lt.s32.totalorder %v2270, 2
        %vm2272 = vcmp.eq.s32.totalorder %v2270, 0
        %v2273 = vxor.u32 %v2267, 2147483648
        %v2274 = vsel %vm2272, %v2266, %v2273
        %vm2275 = vcmp.eq.s32.totalorder %v2270, 2
        %v2276 = vxor.u32 %v2266, 2147483648
        %v2277 = vsel %vm2275, %v2276, %v2267
        %v2278 = vsel %vm2271, %v2274, %v2277
        %v2279 = vsel %vm2268, nan, %v2278
        %v2280 = vand.u32 2147483647, %v1527
        %vm2281 = vcmp.le.f32.partialorder %v2280, 0.7853982
        %vm2282 = vcmp.lt.s32.totalorder %v1527, 0
        %v2283 = vand.u32 %v1527, 2139095040
        %v2284 = vshrl.u32 %v2283, 23
        %v2285 = vsub.s32 %v2284, 127
        %v2286 = vand.u32 2147483647, %v1527
        %v2287 = vand.u32 %v2286, 8388607
        %v2288 = vor.u32 %v2287, 8388608
        %v2289 = vsub.s32 0, %v2288
        %v2290 = vadd.s32 %v2285, 1
        %vm2291 = vcmp.gt.s32.totalorder %v2290, 0
        %v2292 = vsel %vm2291, %v2290, 0
        %v2293 = vshrl.u32 %v2292, 5
        %v2294 = vand.u32 %v2292, 31
        %v2295 = vsub.s32 32, %v2294
        %v2296 = vshrl.u32 683565275, %v2295
        %v2297 = vshll.u32 683565275, %v2294
        %v2298 = vshrl.u32 2475754826, %v2295
        %v2299 = vor.u32 %v2297, %v2298
        %v2300 = vshll.u32 2475754826, %v2294
        %v2301 = vshrl.u32 2131351028, %v2295
        %v2302 = vor.u32 %v2300, %v2301
        %v2303 = vshll.u32 2131351028, %v2294
        %v2304 = vshrl.u32 2102212464, %v2295
        %v2305 = vor.u32 %v2303, %v2304
        %v2306 = vshll.u32 2102212464, %v2294
        %v2307 = vshrl.u32 920167782, %v2295
        %v2308 = vor.u32 %v2306, %v2307
        %v2309 = vshll.u32 920167782, %v2294
        %v2310 = vshrl.u32 1326507024, %v2295
        %v2311 = vor.u32 %v2309, %v2310
        %vm2312 = vcmp.lt.s32.totalorder %v2293, 1
        %vm2313 = vcmp.lt.s32.totalorder %v2293, 2
        %vm2314 = vcmp.lt.s32.totalorder %v2293, 3
        %vm2315 = vcmp.lt.s32.totalorder %v2293, 4
        %v2316 = vsel %vm2312, %v2296, %v2299
        %v2317 = vsel %vm2315, %v2305, 2102212464
        %v2318 = vsel %vm2314, %v2302, %v2317
        %v2319 = vsel %vm2313, %v2316, %v2318
        %v2320 = vsel %vm2312, %v2299, %v2302
        %v2321 = vsel %vm2315, %v2308, 920167782
        %v2322 = vsel %vm2314, %v2305, %v2321
        %v2323 = vsel %vm2313, %v2320, %v2322
        %v2324 = vsel %vm2312, %v2302, %v2305
        %v2325 = vsel %vm2315, %v2311, 1326507024
        %v2326 = vsel %vm2314, %v2308, %v2325
        %v2327 = vsel %vm2313, %v2324, %v2326
        %v2328 = vshll.u32 %v2288, 8
        %v2329 = vmul.u32.u64.compose %v2328, %v2327
        %v2330 = vextract.low.u32 %v2329
        %v2331 = vextract.high.u32 %v2329
        %v2332 = vmul.u32.u64.compose %v2328, %v2323
        %v2333 = vextract.low.u32 %v2332
        %v2334 = vextract.high.u32 %v2332
        %v2335 = vmul.u32 %v2328, %v2319
        %v2336 = vadd.s32 %v2331, %v2333
        %vm2337 = vc.u32 %v2331, %v2333
        %v2338 = vadd.s32 %v2334, 1
        %v2339 = vsel %vm2337, %v2338, %v2334
        %v2340 = vadd.s32 %v2335, %v2339
        %v2341 = vadd.s32 %v2340, 536870912
        %v2342 = vshrl.u32 %v2341, 30
        %v2343 = vshll.u32 %v2342, 30
        %v2344 = vsub.s32 %v2340, %v2343
        %vm2345 = vcmp.lt.s32.totalorder %v2344, 0
        %v2346 = vsub.s32 0, %v2344
        %v2347 = vsel %vm2345, %v2346, %v2344
        %v2348 = vclz %v2347
        %v2349 = vsub.s32 %v2348, 2
        %vm2350 = vcmp.gt.s32.totalorder 0, %v2349
        %v2351 = vsel %vm2350, 0, %v2349
        %v2352 = vsub.s32 32, %v2351
        %v2353 = vshll.u32 %v2344, %v2351
        %v2354 = vshrl.u32 %v2336, %v2352
        %v2355 = vor.u32 %v2353, %v2354
        %v2356 = vsub.s32 4294967266, %v2351
        %v2357 = vadd.s32 %v2356, 127
        %v2358 = vshll.u32 %v2357, 23
        %v2359 = vor.u32 4788187, %v2358
        %v2360 = vand.u32 2147483647, %v2359
        %v2362 = vcvt.s32.f32 %v2355
        %v2363 = vmul.f32 %v2362, %v2360
        %v2364 = vxor.u32 %v2363, 2147483648
        %v2365 = vsel %vm2282, %v2364, %v2363
        %v2366 = vsub.s32 4, %v2342
        %v2367 = vsel %vm2282, %v2366, %v2342
        %v2368 = vsel %vm2281, %v1527, %v2365
        %v2369 = vsel %vm2281, 0, %v2367
        %v2370 = vcosq.f32.pop %v2368
        %v2371 = vsinq.f32.pop %v2368
        %vm2372 = vweird.f32 %v1527
        %v2373 = vadd.s32 %v2369, 3
        %v2374 = vand.u32 %v2373, 3
        %vm2375 = vcmp.lt.s32.totalorder %v2374, 2
        %vm2376 = vcmp.eq.s32.totalorder %v2374, 0
        %v2377 = vxor.u32 %v2371, 2147483648
        %v2378 = vsel %vm2376, %v2370, %v2377
        %vm2379 = vcmp.eq.s32.totalorder %v2374, 2
        %v2380 = vxor.u32 %v2370, 2147483648
        %v2381 = vsel %vm2379, %v2380, %v2371
        %v2382 = vsel %vm2375, %v2378, %v2381
        %v2383 = vsel %vm2372, nan, %v2382
        %v2384 = vand.u32 2147483647, %v1528
        %vm2385 = vcmp.le.f32.partialorder %v2384, 0.7853982
        %vm2386 = vcmp.lt.s32.totalorder %v1528, 0
        %v2387 = vand.u32 %v1528, 2139095040
        %v2388 = vshrl.u32 %v2387, 23
        %v2389 = vsub.s32 %v2388, 127
        %v2390 = vand.u32 2147483647, %v1528
        %v2391 = vand.u32 %v2390, 8388607
        %v2392 = vor.u32 %v2391, 8388608
        %v2393 = vsub.s32 0, %v2392
        %v2394 = vadd.s32 %v2389, 1
        %vm2395 = vcmp.gt.s32.totalorder %v2394, 0
        %v2396 = vsel %vm2395, %v2394, 0
        %v2397 = vshrl.u32 %v2396, 5
        %v2398 = vand.u32 %v2396, 31
        %v2399 = vsub.s32 32, %v2398
        %v2400 = vshrl.u32 683565275, %v2399
        %v2401 = vshll.u32 683565275, %v2398
        %v2402 = vshrl.u32 2475754826, %v2399
        %v2403 = vor.u32 %v2401, %v2402
        %v2404 = vshll.u32 2475754826, %v2398
        %v2405 = vshrl.u32 2131351028, %v2399
        %v2406 = vor.u32 %v2404, %v2405
        %v2407 = vshll.u32 2131351028, %v2398
        %v2408 = vshrl.u32 2102212464, %v2399
        %v2409 = vor.u32 %v2407, %v2408
        %v2410 = vshll.u32 2102212464, %v2398
        %v2411 = vshrl.u32 920167782, %v2399
        %v2412 = vor.u32 %v2410, %v2411
        %v2413 = vshll.u32 920167782, %v2398
        %v2414 = vshrl.u32 1326507024, %v2399
        %v2415 = vor.u32 %v2413, %v2414
        %vm2416 = vcmp.lt.s32.totalorder %v2397, 1
        %vm2417 = vcmp.lt.s32.totalorder %v2397, 2
        %vm2418 = vcmp.lt.s32.totalorder %v2397, 3
        %vm2419 = vcmp.lt.s32.totalorder %v2397, 4
        %v2420 = vsel %vm2416, %v2400, %v2403
        %v2421 = vsel %vm2419, %v2409, 2102212464
        %v2422 = vsel %vm2418, %v2406, %v2421
        %v2423 = vsel %vm2417, %v2420, %v2422
        %v2424 = vsel %vm2416, %v2403, %v2406
        %v2425 = vsel %vm2419, %v2412, 920167782
        %v2426 = vsel %vm2418, %v2409, %v2425
        %v2427 = vsel %vm2417, %v2424, %v2426
        %v2428 = vsel %vm2416, %v2406, %v2409
        %v2429 = vsel %vm2419, %v2415, 1326507024
        %v2430 = vsel %vm2418, %v2412, %v2429
        %v2431 = vsel %vm2417, %v2428, %v2430
        %v2432 = vshll.u32 %v2392, 8
        %v2433 = vmul.u32.u64.compose %v2432, %v2431
        %v2434 = vextract.low.u32 %v2433
        %v2435 = vextract.high.u32 %v2433
        %v2436 = vmul.u32.u64.compose %v2432, %v2427
        %v2437 = vextract.low.u32 %v2436
        %v2438 = vextract.high.u32 %v2436
        %v2439 = vmul.u32 %v2432, %v2423
        %v2440 = vadd.s32 %v2435, %v2437
        %vm2441 = vc.u32 %v2435, %v2437
        %v2442 = vadd.s32 %v2438, 1
        %v2443 = vsel %vm2441, %v2442, %v2438
        %v2444 = vadd.s32 %v2439, %v2443
        %v2445 = vadd.s32 %v2444, 536870912
        %v2446 = vshrl.u32 %v2445, 30
        %v2447 = vshll.u32 %v2446, 30
        %v2448 = vsub.s32 %v2444, %v2447
        %vm2449 = vcmp.lt.s32.totalorder %v2448, 0
        %v2450 = vsub.s32 0, %v2448
        %v2451 = vsel %vm2449, %v2450, %v2448
        %v2452 = vclz %v2451
        %v2453 = vsub.s32 %v2452, 2
        %vm2454 = vcmp.gt.s32.totalorder 0, %v2453
        %v2455 = vsel %vm2454, 0, %v2453
        %v2456 = vsub.s32 32, %v2455
        %v2457 = vshll.u32 %v2448, %v2455
        %v2458 = vshrl.u32 %v2440, %v2456
        %v2459 = vor.u32 %v2457, %v2458
        %v2460 = vsub.s32 4294967266, %v2455
        %v2461 = vadd.s32 %v2460, 127
        %v2462 = vshll.u32 %v2461, 23
        %v2463 = vor.u32 4788187, %v2462
        %v2464 = vand.u32 2147483647, %v2463
        %v2466 = vcvt.s32.f32 %v2459
        %v2467 = vmul.f32 %v2466, %v2464
        %v2468 = vxor.u32 %v2467, 2147483648
        %v2469 = vsel %vm2386, %v2468, %v2467
        %v2470 = vsub.s32 4, %v2446
        %v2471 = vsel %vm2386, %v2470, %v2446
        %v2472 = vsel %vm2385, %v1528, %v2469
        %v2473 = vsel %vm2385, 0, %v2471
        %v2474 = vcosq.f32.pop %v2472
        %v2475 = vsinq.f32.pop %v2472
        %vm2476 = vweird.f32 %v1528
        %v2477 = vadd.s32 %v2473, 3
        %v2478 = vand.u32 %v2477, 3
        %vm2479 = vcmp.lt.s32.totalorder %v2478, 2
        %vm2480 = vcmp.eq.s32.totalorder %v2478, 0
        %v2481 = vxor.u32 %v2475, 2147483648
        %v2482 = vsel %vm2480, %v2474, %v2481
        %vm2483 = vcmp.eq.s32.totalorder %v2478, 2
        %v2484 = vxor.u32 %v2474, 2147483648
        %v2485 = vsel %vm2483, %v2484, %v2475
        %v2486 = vsel %vm2479, %v2482, %v2485
        %v2487 = vsel %vm2476, nan, %v2486
        %v2488 = vand.u32 2147483647, %v1529
        %vm2489 = vcmp.le.f32.partialorder %v2488, 0.7853982
        %vm2490 = vcmp.lt.s32.totalorder %v1529, 0
        %v2491 = vand.u32 %v1529, 2139095040
        %v2492 = vshrl.u32 %v2491, 23
        %v2493 = vsub.s32 %v2492, 127
        %v2494 = vand.u32 2147483647, %v1529
        %v2495 = vand.u32 %v2494, 8388607
        %v2496 = vor.u32 %v2495, 8388608
        %v2497 = vsub.s32 0, %v2496
        %v2498 = vadd.s32 %v2493, 1
        %vm2499 = vcmp.gt.s32.totalorder %v2498, 0
        %v2500 = vsel %vm2499, %v2498, 0
        %v2501 = vshrl.u32 %v2500, 5
        %v2502 = vand.u32 %v2500, 31
        %v2503 = vsub.s32 32, %v2502
        %v2504 = vshrl.u32 683565275, %v2503
        %v2505 = vshll.u32 683565275, %v2502
        %v2506 = vshrl.u32 2475754826, %v2503
        %v2507 = vor.u32 %v2505, %v2506
        %v2508 = vshll.u32 2475754826, %v2502
        %v2509 = vshrl.u32 2131351028, %v2503
        %v2510 = vor.u32 %v2508, %v2509
        %v2511 = vshll.u32 2131351028, %v2502
        %v2512 = vshrl.u32 2102212464, %v2503
        %v2513 = vor.u32 %v2511, %v2512
        %v2514 = vshll.u32 2102212464, %v2502
        %v2515 = vshrl.u32 920167782, %v2503
        %v2516 = vor.u32 %v2514, %v2515
        %v2517 = vshll.u32 920167782, %v2502
        %v2518 = vshrl.u32 1326507024, %v2503
        %v2519 = vor.u32 %v2517, %v2518
        %vm2520 = vcmp.lt.s32.totalorder %v2501, 1
        %vm2521 = vcmp.lt.s32.totalorder %v2501, 2
        %vm2522 = vcmp.lt.s32.totalorder %v2501, 3
        %vm2523 = vcmp.lt.s32.totalorder %v2501, 4
        %v2524 = vsel %vm2520, %v2504, %v2507
        %v2525 = vsel %vm2523, %v2513, 2102212464
        %v2526 = vsel %vm2522, %v2510, %v2525
        %v2527 = vsel %vm2521, %v2524, %v2526
        %v2528 = vsel %vm2520, %v2507, %v2510
        %v2529 = vsel %vm2523, %v2516, 920167782
        %v2530 = vsel %vm2522, %v2513, %v2529
        %v2531 = vsel %vm2521, %v2528, %v2530
        %v2532 = vsel %vm2520, %v2510, %v2513
        %v2533 = vsel %vm2523, %v2519, 1326507024
        %v2534 = vsel %vm2522, %v2516, %v2533
        %v2535 = vsel %vm2521, %v2532, %v2534
        %v2536 = vshll.u32 %v2496, 8
        %v2537 = vmul.u32.u64.compose %v2536, %v2535
        %v2538 = vextract.low.u32 %v2537
        %v2539 = vextract.high.u32 %v2537
        %v2540 = vmul.u32.u64.compose %v2536, %v2531
        %v2541 = vextract.low.u32 %v2540
        %v2542 = vextract.high.u32 %v2540
        %v2543 = vmul.u32 %v2536, %v2527
        %v2544 = vadd.s32 %v2539, %v2541
        %vm2545 = vc.u32 %v2539, %v2541
        %v2546 = vadd.s32 %v2542, 1
        %v2547 = vsel %vm2545, %v2546, %v2542
        %v2548 = vadd.s32 %v2543, %v2547
        %v2549 = vadd.s32 %v2548, 536870912
        %v2550 = vshrl.u32 %v2549, 30
        %v2551 = vshll.u32 %v2550, 30
        %v2552 = vsub.s32 %v2548, %v2551
        %vm2553 = vcmp.lt.s32.totalorder %v2552, 0
        %v2554 = vsub.s32 0, %v2552
        %v2555 = vsel %vm2553, %v2554, %v2552
        %v2556 = vclz %v2555
        %v2557 = vsub.s32 %v2556, 2
        %vm2558 = vcmp.gt.s32.totalorder 0, %v2557
        %v2559 = vsel %vm2558, 0, %v2557
        %v2560 = vsub.s32 32, %v2559
        %v2561 = vshll.u32 %v2552, %v2559
        %v2562 = vshrl.u32 %v2544, %v2560
        %v2563 = vor.u32 %v2561, %v2562
        %v2564 = vsub.s32 4294967266, %v2559
        %v2565 = vadd.s32 %v2564, 127
        %v2566 = vshll.u32 %v2565, 23
        %v2567 = vor.u32 4788187, %v2566
        %v2568 = vand.u32 2147483647, %v2567
        %v2570 = vcvt.s32.f32 %v2563
        %v2571 = vmul.f32 %v2570, %v2568
        %v2572 = vxor.u32 %v2571, 2147483648
        %v2573 = vsel %vm2490, %v2572, %v2571
        %v2574 = vsub.s32 4, %v2550
        %v2575 = vsel %vm2490, %v2574, %v2550
        %v2576 = vsel %vm2489, %v1529, %v2573
        %v2577 = vsel %vm2489, 0, %v2575
        %v2578 = vcosq.f32.pop %v2576
        %v2579 = vsinq.f32.pop %v2576
        %vm2580 = vweird.f32 %v1529
        %v2581 = vadd.s32 %v2577, 3
        %v2582 = vand.u32 %v2581, 3
        %vm2583 = vcmp.lt.s32.totalorder %v2582, 2
        %vm2584 = vcmp.eq.s32.totalorder %v2582, 0
        %v2585 = vxor.u32 %v2579, 2147483648
        %v2586 = vsel %vm2584, %v2578, %v2585
        %vm2587 = vcmp.eq.s32.totalorder %v2582, 2
        %v2588 = vxor.u32 %v2578, 2147483648
        %v2589 = vsel %vm2587, %v2588, %v2579
        %v2590 = vsel %vm2583, %v2586, %v2589
        %v2591 = vsel %vm2580, nan, %v2590
        %v2592 = vand.u32 2147483647, %v1530
        %vm2593 = vcmp.le.f32.partialorder %v2592, 0.7853982
        %vm2594 = vcmp.lt.s32.totalorder %v1530, 0
        %v2595 = vand.u32 %v1530, 2139095040
        %v2596 = vshrl.u32 %v2595, 23
        %v2597 = vsub.s32 %v2596, 127
        %v2598 = vand.u32 2147483647, %v1530
        %v2599 = vand.u32 %v2598, 8388607
        %v2600 = vor.u32 %v2599, 8388608
        %v2601 = vsub.s32 0, %v2600
        %v2602 = vadd.s32 %v2597, 1
        %vm2603 = vcmp.gt.s32.totalorder %v2602, 0
        %v2604 = vsel %vm2603, %v2602, 0
        %v2605 = vshrl.u32 %v2604, 5
        %v2606 = vand.u32 %v2604, 31
        %v2607 = vsub.s32 32, %v2606
        %v2608 = vshrl.u32 683565275, %v2607
        %v2609 = vshll.u32 683565275, %v2606
        %v2610 = vshrl.u32 2475754826, %v2607
        %v2611 = vor.u32 %v2609, %v2610
        %v2612 = vshll.u32 2475754826, %v2606
        %v2613 = vshrl.u32 2131351028, %v2607
        %v2614 = vor.u32 %v2612, %v2613
        %v2615 = vshll.u32 2131351028, %v2606
        %v2616 = vshrl.u32 2102212464, %v2607
        %v2617 = vor.u32 %v2615, %v2616
        %v2618 = vshll.u32 2102212464, %v2606
        %v2619 = vshrl.u32 920167782, %v2607
        %v2620 = vor.u32 %v2618, %v2619
        %v2621 = vshll.u32 920167782, %v2606
        %v2622 = vshrl.u32 1326507024, %v2607
        %v2623 = vor.u32 %v2621, %v2622
        %vm2624 = vcmp.lt.s32.totalorder %v2605, 1
        %vm2625 = vcmp.lt.s32.totalorder %v2605, 2
        %vm2626 = vcmp.lt.s32.totalorder %v2605, 3
        %vm2627 = vcmp.lt.s32.totalorder %v2605, 4
        %v2628 = vsel %vm2624, %v2608, %v2611
        %v2629 = vsel %vm2627, %v2617, 2102212464
        %v2630 = vsel %vm2626, %v2614, %v2629
        %v2631 = vsel %vm2625, %v2628, %v2630
        %v2632 = vsel %vm2624, %v2611, %v2614
        %v2633 = vsel %vm2627, %v2620, 920167782
        %v2634 = vsel %vm2626, %v2617, %v2633
        %v2635 = vsel %vm2625, %v2632, %v2634
        %v2636 = vsel %vm2624, %v2614, %v2617
        %v2637 = vsel %vm2627, %v2623, 1326507024
        %v2638 = vsel %vm2626, %v2620, %v2637
        %v2639 = vsel %vm2625, %v2636, %v2638
        %v2640 = vshll.u32 %v2600, 8
        %v2641 = vmul.u32.u64.compose %v2640, %v2639
        %v2642 = vextract.low.u32 %v2641
        %v2643 = vextract.high.u32 %v2641
        %v2644 = vmul.u32.u64.compose %v2640, %v2635
        %v2645 = vextract.low.u32 %v2644
        %v2646 = vextract.high.u32 %v2644
        %v2647 = vmul.u32 %v2640, %v2631
        %v2648 = vadd.s32 %v2643, %v2645
        %vm2649 = vc.u32 %v2643, %v2645
        %v2650 = vadd.s32 %v2646, 1
        %v2651 = vsel %vm2649, %v2650, %v2646
        %v2652 = vadd.s32 %v2647, %v2651
        %v2653 = vadd.s32 %v2652, 536870912
        %v2654 = vshrl.u32 %v2653, 30
        %v2655 = vshll.u32 %v2654, 30
        %v2656 = vsub.s32 %v2652, %v2655
        %vm2657 = vcmp.lt.s32.totalorder %v2656, 0
        %v2658 = vsub.s32 0, %v2656
        %v2659 = vsel %vm2657, %v2658, %v2656
        %v2660 = vclz %v2659
        %v2661 = vsub.s32 %v2660, 2
        %vm2662 = vcmp.gt.s32.totalorder 0, %v2661
        %v2663 = vsel %vm2662, 0, %v2661
        %v2664 = vsub.s32 32, %v2663
        %v2665 = vshll.u32 %v2656, %v2663
        %v2666 = vshrl.u32 %v2648, %v2664
        %v2667 = vor.u32 %v2665, %v2666
        %v2668 = vsub.s32 4294967266, %v2663
        %v2669 = vadd.s32 %v2668, 127
        %v2670 = vshll.u32 %v2669, 23
        %v2671 = vor.u32 4788187, %v2670
        %v2672 = vand.u32 2147483647, %v2671
        %v2674 = vcvt.s32.f32 %v2667
        %v2675 = vmul.f32 %v2674, %v2672
        %v2676 = vxor.u32 %v2675, 2147483648
        %v2677 = vsel %vm2594, %v2676, %v2675
        %v2678 = vsub.s32 4, %v2654
        %v2679 = vsel %vm2594, %v2678, %v2654
        %v2680 = vsel %vm2593, %v1530, %v2677
        %v2681 = vsel %vm2593, 0, %v2679
        %v2682 = vcosq.f32.pop %v2680
        %v2683 = vsinq.f32.pop %v2680
        %vm2684 = vweird.f32 %v1530
        %v2685 = vadd.s32 %v2681, 3
        %v2686 = vand.u32 %v2685, 3
        %vm2687 = vcmp.lt.s32.totalorder %v2686, 2
        %vm2688 = vcmp.eq.s32.totalorder %v2686, 0
        %v2689 = vxor.u32 %v2683, 2147483648
        %v2690 = vsel %vm2688, %v2682, %v2689
        %vm2691 = vcmp.eq.s32.totalorder %v2686, 2
        %v2692 = vxor.u32 %v2682, 2147483648
        %v2693 = vsel %vm2691, %v2692, %v2683
        %v2694 = vsel %vm2687, %v2690, %v2693
        %v2695 = vsel %vm2684, nan, %v2694
        %v2696 = vand.u32 2147483647, %v1531
        %vm2697 = vcmp.le.f32.partialorder %v2696, 0.7853982
        %vm2698 = vcmp.lt.s32.totalorder %v1531, 0
        %v2699 = vand.u32 %v1531, 2139095040
        %v2700 = vshrl.u32 %v2699, 23
        %v2701 = vsub.s32 %v2700, 127
        %v2702 = vand.u32 2147483647, %v1531
        %v2703 = vand.u32 %v2702, 8388607
        %v2704 = vor.u32 %v2703, 8388608
        %v2705 = vsub.s32 0, %v2704
        %v2706 = vadd.s32 %v2701, 1
        %vm2707 = vcmp.gt.s32.totalorder %v2706, 0
        %v2708 = vsel %vm2707, %v2706, 0
        %v2709 = vshrl.u32 %v2708, 5
        %v2710 = vand.u32 %v2708, 31
        %v2711 = vsub.s32 32, %v2710
        %v2712 = vshrl.u32 683565275, %v2711
        %v2713 = vshll.u32 683565275, %v2710
        %v2714 = vshrl.u32 2475754826, %v2711
        %v2715 = vor.u32 %v2713, %v2714
        %v2716 = vshll.u32 2475754826, %v2710
        %v2717 = vshrl.u32 2131351028, %v2711
        %v2718 = vor.u32 %v2716, %v2717
        %v2719 = vshll.u32 2131351028, %v2710
        %v2720 = vshrl.u32 2102212464, %v2711
        %v2721 = vor.u32 %v2719, %v2720
        %v2722 = vshll.u32 2102212464, %v2710
        %v2723 = vshrl.u32 920167782, %v2711
        %v2724 = vor.u32 %v2722, %v2723
        %v2725 = vshll.u32 920167782, %v2710
        %v2726 = vshrl.u32 1326507024, %v2711
        %v2727 = vor.u32 %v2725, %v2726
        %vm2728 = vcmp.lt.s32.totalorder %v2709, 1
        %vm2729 = vcmp.lt.s32.totalorder %v2709, 2
        %vm2730 = vcmp.lt.s32.totalorder %v2709, 3
        %vm2731 = vcmp.lt.s32.totalorder %v2709, 4
        %v2732 = vsel %vm2728, %v2712, %v2715
        %v2733 = vsel %vm2731, %v2721, 2102212464
        %v2734 = vsel %vm2730, %v2718, %v2733
        %v2735 = vsel %vm2729, %v2732, %v2734
        %v2736 = vsel %vm2728, %v2715, %v2718
        %v2737 = vsel %vm2731, %v2724, 920167782
        %v2738 = vsel %vm2730, %v2721, %v2737
        %v2739 = vsel %vm2729, %v2736, %v2738
        %v2740 = vsel %vm2728, %v2718, %v2721
        %v2741 = vsel %vm2731, %v2727, 1326507024
        %v2742 = vsel %vm2730, %v2724, %v2741
        %v2743 = vsel %vm2729, %v2740, %v2742
        %v2744 = vshll.u32 %v2704, 8
        %v2745 = vmul.u32.u64.compose %v2744, %v2743
        %v2746 = vextract.low.u32 %v2745
        %v2747 = vextract.high.u32 %v2745
        %v2748 = vmul.u32.u64.compose %v2744, %v2739
        %v2749 = vextract.low.u32 %v2748
        %v2750 = vextract.high.u32 %v2748
        %v2751 = vmul.u32 %v2744, %v2735
        %v2752 = vadd.s32 %v2747, %v2749
        %vm2753 = vc.u32 %v2747, %v2749
        %v2754 = vadd.s32 %v2750, 1
        %v2755 = vsel %vm2753, %v2754, %v2750
        %v2756 = vadd.s32 %v2751, %v2755
        %v2757 = vadd.s32 %v2756, 536870912
        %v2758 = vshrl.u32 %v2757, 30
        %v2759 = vshll.u32 %v2758, 30
        %v2760 = vsub.s32 %v2756, %v2759
        %vm2761 = vcmp.lt.s32.totalorder %v2760, 0
        %v2762 = vsub.s32 0, %v2760
        %v2763 = vsel %vm2761, %v2762, %v2760
        %v2764 = vclz %v2763
        %v2765 = vsub.s32 %v2764, 2
        %vm2766 = vcmp.gt.s32.totalorder 0, %v2765
        %v2767 = vsel %vm2766, 0, %v2765
        %v2768 = vsub.s32 32, %v2767
        %v2769 = vshll.u32 %v2760, %v2767
        %v2770 = vshrl.u32 %v2752, %v2768
        %v2771 = vor.u32 %v2769, %v2770
        %v2772 = vsub.s32 4294967266, %v2767
        %v2773 = vadd.s32 %v2772, 127
        %v2774 = vshll.u32 %v2773, 23
        %v2775 = vor.u32 4788187, %v2774
        %v2776 = vand.u32 2147483647, %v2775
        %v2778 = vcvt.s32.f32 %v2771
        %v2779 = vmul.f32 %v2778, %v2776
        %v2780 = vxor.u32 %v2779, 2147483648
        %v2781 = vsel %vm2698, %v2780, %v2779
        %v2782 = vsub.s32 4, %v2758
        %v2783 = vsel %vm2698, %v2782, %v2758
        %v2784 = vsel %vm2697, %v1531, %v2781
        %v2785 = vsel %vm2697, 0, %v2783
        %v2786 = vcosq.f32.pop %v2784
        %v2787 = vsinq.f32.pop %v2784
        %vm2788 = vweird.f32 %v1531
        %v2789 = vadd.s32 %v2785, 3
        %v2790 = vand.u32 %v2789, 3
        %vm2791 = vcmp.lt.s32.totalorder %v2790, 2
        %vm2792 = vcmp.eq.s32.totalorder %v2790, 0
        %v2793 = vxor.u32 %v2787, 2147483648
        %v2794 = vsel %vm2792, %v2786, %v2793
        %vm2795 = vcmp.eq.s32.totalorder %v2790, 2
        %v2796 = vxor.u32 %v2786, 2147483648
        %v2797 = vsel %vm2795, %v2796, %v2787
        %v2798 = vsel %vm2791, %v2794, %v2797
        %v2799 = vsel %vm2788, nan, %v2798
        %v2800 = vand.u32 2147483647, %v1532
        %vm2801 = vcmp.le.f32.partialorder %v2800, 0.7853982
        %vm2802 = vcmp.lt.s32.totalorder %v1532, 0
        %v2803 = vand.u32 %v1532, 2139095040
        %v2804 = vshrl.u32 %v2803, 23
        %v2805 = vsub.s32 %v2804, 127
        %v2806 = vand.u32 2147483647, %v1532
        %v2807 = vand.u32 %v2806, 8388607
        %v2808 = vor.u32 %v2807, 8388608
        %v2809 = vsub.s32 0, %v2808
        %v2810 = vadd.s32 %v2805, 1
        %vm2811 = vcmp.gt.s32.totalorder %v2810, 0
        %v2812 = vsel %vm2811, %v2810, 0
        %v2813 = vshrl.u32 %v2812, 5
        %v2814 = vand.u32 %v2812, 31
        %v2815 = vsub.s32 32, %v2814
        %v2816 = vshrl.u32 683565275, %v2815
        %v2817 = vshll.u32 683565275, %v2814
        %v2818 = vshrl.u32 2475754826, %v2815
        %v2819 = vor.u32 %v2817, %v2818
        %v2820 = vshll.u32 2475754826, %v2814
        %v2821 = vshrl.u32 2131351028, %v2815
        %v2822 = vor.u32 %v2820, %v2821
        %v2823 = vshll.u32 2131351028, %v2814
        %v2824 = vshrl.u32 2102212464, %v2815
        %v2825 = vor.u32 %v2823, %v2824
        %v2826 = vshll.u32 2102212464, %v2814
        %v2827 = vshrl.u32 920167782, %v2815
        %v2828 = vor.u32 %v2826, %v2827
        %v2829 = vshll.u32 920167782, %v2814
        %v2830 = vshrl.u32 1326507024, %v2815
        %v2831 = vor.u32 %v2829, %v2830
        %vm2832 = vcmp.lt.s32.totalorder %v2813, 1
        %vm2833 = vcmp.lt.s32.totalorder %v2813, 2
        %vm2834 = vcmp.lt.s32.totalorder %v2813, 3
        %vm2835 = vcmp.lt.s32.totalorder %v2813, 4
        %v2836 = vsel %vm2832, %v2816, %v2819
        %v2837 = vsel %vm2835, %v2825, 2102212464
        %v2838 = vsel %vm2834, %v2822, %v2837
        %v2839 = vsel %vm2833, %v2836, %v2838
        %v2840 = vsel %vm2832, %v2819, %v2822
        %v2841 = vsel %vm2835, %v2828, 920167782
        %v2842 = vsel %vm2834, %v2825, %v2841
        %v2843 = vsel %vm2833, %v2840, %v2842
        %v2844 = vsel %vm2832, %v2822, %v2825
        %v2845 = vsel %vm2835, %v2831, 1326507024
        %v2846 = vsel %vm2834, %v2828, %v2845
        %v2847 = vsel %vm2833, %v2844, %v2846
        %v2848 = vshll.u32 %v2808, 8
        %v2849 = vmul.u32.u64.compose %v2848, %v2847
        %v2850 = vextract.low.u32 %v2849
        %v2851 = vextract.high.u32 %v2849
        %v2852 = vmul.u32.u64.compose %v2848, %v2843
        %v2853 = vextract.low.u32 %v2852
        %v2854 = vextract.high.u32 %v2852
        %v2855 = vmul.u32 %v2848, %v2839
        %v2856 = vadd.s32 %v2851, %v2853
        %vm2857 = vc.u32 %v2851, %v2853
        %v2858 = vadd.s32 %v2854, 1
        %v2859 = vsel %vm2857, %v2858, %v2854
        %v2860 = vadd.s32 %v2855, %v2859
        %v2861 = vadd.s32 %v2860, 536870912
        %v2862 = vshrl.u32 %v2861, 30
        %v2863 = vshll.u32 %v2862, 30
        %v2864 = vsub.s32 %v2860, %v2863
        %vm2865 = vcmp.lt.s32.totalorder %v2864, 0
        %v2866 = vsub.s32 0, %v2864
        %v2867 = vsel %vm2865, %v2866, %v2864
        %v2868 = vclz %v2867
        %v2869 = vsub.s32 %v2868, 2
        %vm2870 = vcmp.gt.s32.totalorder 0, %v2869
        %v2871 = vsel %vm2870, 0, %v2869
        %v2872 = vsub.s32 32, %v2871
        %v2873 = vshll.u32 %v2864, %v2871
        %v2874 = vshrl.u32 %v2856, %v2872
        %v2875 = vor.u32 %v2873, %v2874
        %v2876 = vsub.s32 4294967266, %v2871
        %v2877 = vadd.s32 %v2876, 127
        %v2878 = vshll.u32 %v2877, 23
        %v2879 = vor.u32 4788187, %v2878
        %v2880 = vand.u32 2147483647, %v2879
        %v2882 = vcvt.s32.f32 %v2875
        %v2883 = vmul.f32 %v2882, %v2880
        %v2884 = vxor.u32 %v2883, 2147483648
        %v2885 = vsel %vm2802, %v2884, %v2883
        %v2886 = vsub.s32 4, %v2862
        %v2887 = vsel %vm2802, %v2886, %v2862
        %v2888 = vsel %vm2801, %v1532, %v2885
        %v2889 = vsel %vm2801, 0, %v2887
        %v2890 = vcosq.f32.pop %v2888
        %v2891 = vsinq.f32.pop %v2888
        %vm2892 = vweird.f32 %v1532
        %v2893 = vadd.s32 %v2889, 3
        %v2894 = vand.u32 %v2893, 3
        %vm2895 = vcmp.lt.s32.totalorder %v2894, 2
        %vm2896 = vcmp.eq.s32.totalorder %v2894, 0
        %v2897 = vxor.u32 %v2891, 2147483648
        %v2898 = vsel %vm2896, %v2890, %v2897
        %vm2899 = vcmp.eq.s32.totalorder %v2894, 2
        %v2900 = vxor.u32 %v2890, 2147483648
        %v2901 = vsel %vm2899, %v2900, %v2891
        %v2902 = vsel %vm2895, %v2898, %v2901
        %v2903 = vsel %vm2892, nan, %v2902
        %v2904 = vand.u32 2147483647, %v1533
        %vm2905 = vcmp.le.f32.partialorder %v2904, 0.7853982
        %vm2906 = vcmp.lt.s32.totalorder %v1533, 0
        %v2907 = vand.u32 %v1533, 2139095040
        %v2908 = vshrl.u32 %v2907, 23
        %v2909 = vsub.s32 %v2908, 127
        %v2910 = vand.u32 2147483647, %v1533
        %v2911 = vand.u32 %v2910, 8388607
        %v2912 = vor.u32 %v2911, 8388608
        %v2913 = vsub.s32 0, %v2912
        %v2914 = vadd.s32 %v2909, 1
        %vm2915 = vcmp.gt.s32.totalorder %v2914, 0
        %v2916 = vsel %vm2915, %v2914, 0
        %v2917 = vshrl.u32 %v2916, 5
        %v2918 = vand.u32 %v2916, 31
        %v2919 = vsub.s32 32, %v2918
        %v2920 = vshrl.u32 683565275, %v2919
        %v2921 = vshll.u32 683565275, %v2918
        %v2922 = vshrl.u32 2475754826, %v2919
        %v2923 = vor.u32 %v2921, %v2922
        %v2924 = vshll.u32 2475754826, %v2918
        %v2925 = vshrl.u32 2131351028, %v2919
        %v2926 = vor.u32 %v2924, %v2925
        %v2927 = vshll.u32 2131351028, %v2918
        %v2928 = vshrl.u32 2102212464, %v2919
        %v2929 = vor.u32 %v2927, %v2928
        %v2930 = vshll.u32 2102212464, %v2918
        %v2931 = vshrl.u32 920167782, %v2919
        %v2932 = vor.u32 %v2930, %v2931
        %v2933 = vshll.u32 920167782, %v2918
        %v2934 = vshrl.u32 1326507024, %v2919
        %v2935 = vor.u32 %v2933, %v2934
        %vm2936 = vcmp.lt.s32.totalorder %v2917, 1
        %vm2937 = vcmp.lt.s32.totalorder %v2917, 2
        %vm2938 = vcmp.lt.s32.totalorder %v2917, 3
        %vm2939 = vcmp.lt.s32.totalorder %v2917, 4
        %v2940 = vsel %vm2936, %v2920, %v2923
        %v2941 = vsel %vm2939, %v2929, 2102212464
        %v2942 = vsel %vm2938, %v2926, %v2941
        %v2943 = vsel %vm2937, %v2940, %v2942
        %v2944 = vsel %vm2936, %v2923, %v2926
        %v2945 = vsel %vm2939, %v2932, 920167782
        %v2946 = vsel %vm2938, %v2929, %v2945
        %v2947 = vsel %vm2937, %v2944, %v2946
        %v2948 = vsel %vm2936, %v2926, %v2929
        %v2949 = vsel %vm2939, %v2935, 1326507024
        %v2950 = vsel %vm2938, %v2932, %v2949
        %v2951 = vsel %vm2937, %v2948, %v2950
        %v2952 = vshll.u32 %v2912, 8
        %v2953 = vmul.u32.u64.compose %v2952, %v2951
        %v2954 = vextract.low.u32 %v2953
        %v2955 = vextract.high.u32 %v2953
        %v2956 = vmul.u32.u64.compose %v2952, %v2947
        %v2957 = vextract.low.u32 %v2956
        %v2958 = vextract.high.u32 %v2956
        %v2959 = vmul.u32 %v2952, %v2943
        %v2960 = vadd.s32 %v2955, %v2957
        %vm2961 = vc.u32 %v2955, %v2957
        %v2962 = vadd.s32 %v2958, 1
        %v2963 = vsel %vm2961, %v2962, %v2958
        %v2964 = vadd.s32 %v2959, %v2963
        %v2965 = vadd.s32 %v2964, 536870912
        %v2966 = vshrl.u32 %v2965, 30
        %v2967 = vshll.u32 %v2966, 30
        %v2968 = vsub.s32 %v2964, %v2967
        %vm2969 = vcmp.lt.s32.totalorder %v2968, 0
        %v2970 = vsub.s32 0, %v2968
        %v2971 = vsel %vm2969, %v2970, %v2968
        %v2972 = vclz %v2971
        %v2973 = vsub.s32 %v2972, 2
        %vm2974 = vcmp.gt.s32.totalorder 0, %v2973
        %v2975 = vsel %vm2974, 0, %v2973
        %v2976 = vsub.s32 32, %v2975
        %v2977 = vshll.u32 %v2968, %v2975
        %v2978 = vshrl.u32 %v2960, %v2976
        %v2979 = vor.u32 %v2977, %v2978
        %v2980 = vsub.s32 4294967266, %v2975
        %v2981 = vadd.s32 %v2980, 127
        %v2982 = vshll.u32 %v2981, 23
        %v2983 = vor.u32 4788187, %v2982
        %v2984 = vand.u32 2147483647, %v2983
        %v2986 = vcvt.s32.f32 %v2979
        %v2987 = vmul.f32 %v2986, %v2984
        %v2988 = vxor.u32 %v2987, 2147483648
        %v2989 = vsel %vm2906, %v2988, %v2987
        %v2990 = vsub.s32 4, %v2966
        %v2991 = vsel %vm2906, %v2990, %v2966
        %v2992 = vsel %vm2905, %v1533, %v2989
        %v2993 = vsel %vm2905, 0, %v2991
        %v2994 = vcosq.f32.pop %v2992
        %v2995 = vsinq.f32.pop %v2992
        %vm2996 = vweird.f32 %v1533
        %v2997 = vadd.s32 %v2993, 3
        %v2998 = vand.u32 %v2997, 3
        %vm2999 = vcmp.lt.s32.totalorder %v2998, 2
        %vm3000 = vcmp.eq.s32.totalorder %v2998, 0
        %v3001 = vxor.u32 %v2995, 2147483648
        %v3002 = vsel %vm3000, %v2994, %v3001
        %vm3003 = vcmp.eq.s32.totalorder %v2998, 2
        %v3004 = vxor.u32 %v2994, 2147483648
        %v3005 = vsel %vm3003, %v3004, %v2995
        %v3006 = vsel %vm2999, %v3002, %v3005
        %v3007 = vsel %vm2996, nan, %v3006
        %v3008 = vand.u32 2147483647, %v1534
        %vm3009 = vcmp.le.f32.partialorder %v3008, 0.7853982
        %vm3010 = vcmp.lt.s32.totalorder %v1534, 0
        %v3011 = vand.u32 %v1534, 2139095040
        %v3012 = vshrl.u32 %v3011, 23
        %v3013 = vsub.s32 %v3012, 127
        %v3014 = vand.u32 2147483647, %v1534
        %v3015 = vand.u32 %v3014, 8388607
        %v3016 = vor.u32 %v3015, 8388608
        %v3017 = vsub.s32 0, %v3016
        %v3018 = vadd.s32 %v3013, 1
        %vm3019 = vcmp.gt.s32.totalorder %v3018, 0
        %v3020 = vsel %vm3019, %v3018, 0
        %v3021 = vshrl.u32 %v3020, 5
        %v3022 = vand.u32 %v3020, 31
        %v3023 = vsub.s32 32, %v3022
        %v3024 = vshrl.u32 683565275, %v3023
        %v3025 = vshll.u32 683565275, %v3022
        %v3026 = vshrl.u32 2475754826, %v3023
        %v3027 = vor.u32 %v3025, %v3026
        %v3028 = vshll.u32 2475754826, %v3022
        %v3029 = vshrl.u32 2131351028, %v3023
        %v3030 = vor.u32 %v3028, %v3029
        %v3031 = vshll.u32 2131351028, %v3022
        %v3032 = vshrl.u32 2102212464, %v3023
        %v3033 = vor.u32 %v3031, %v3032
        %v3034 = vshll.u32 2102212464, %v3022
        %v3035 = vshrl.u32 920167782, %v3023
        %v3036 = vor.u32 %v3034, %v3035
        %v3037 = vshll.u32 920167782, %v3022
        %v3038 = vshrl.u32 1326507024, %v3023
        %v3039 = vor.u32 %v3037, %v3038
        %vm3040 = vcmp.lt.s32.totalorder %v3021, 1
        %vm3041 = vcmp.lt.s32.totalorder %v3021, 2
        %vm3042 = vcmp.lt.s32.totalorder %v3021, 3
        %vm3043 = vcmp.lt.s32.totalorder %v3021, 4
        %v3044 = vsel %vm3040, %v3024, %v3027
        %v3045 = vsel %vm3043, %v3033, 2102212464
        %v3046 = vsel %vm3042, %v3030, %v3045
        %v3047 = vsel %vm3041, %v3044, %v3046
        %v3048 = vsel %vm3040, %v3027, %v3030
        %v3049 = vsel %vm3043, %v3036, 920167782
        %v3050 = vsel %vm3042, %v3033, %v3049
        %v3051 = vsel %vm3041, %v3048, %v3050
        %v3052 = vsel %vm3040, %v3030, %v3033
        %v3053 = vsel %vm3043, %v3039, 1326507024
        %v3054 = vsel %vm3042, %v3036, %v3053
        %v3055 = vsel %vm3041, %v3052, %v3054
        %v3056 = vshll.u32 %v3016, 8
        %v3057 = vmul.u32.u64.compose %v3056, %v3055
        %v3058 = vextract.low.u32 %v3057
        %v3059 = vextract.high.u32 %v3057
        %v3060 = vmul.u32.u64.compose %v3056, %v3051
        %v3061 = vextract.low.u32 %v3060
        %v3062 = vextract.high.u32 %v3060
        %v3063 = vmul.u32 %v3056, %v3047
        %v3064 = vadd.s32 %v3059, %v3061
        %vm3065 = vc.u32 %v3059, %v3061
        %v3066 = vadd.s32 %v3062, 1
        %v3067 = vsel %vm3065, %v3066, %v3062
        %v3068 = vadd.s32 %v3063, %v3067
        %v3069 = vadd.s32 %v3068, 536870912
        %v3070 = vshrl.u32 %v3069, 30
        %v3071 = vshll.u32 %v3070, 30
        %v3072 = vsub.s32 %v3068, %v3071
        %vm3073 = vcmp.lt.s32.totalorder %v3072, 0
        %v3074 = vsub.s32 0, %v3072
        %v3075 = vsel %vm3073, %v3074, %v3072
        %v3076 = vclz %v3075
        %v3077 = vsub.s32 %v3076, 2
        %vm3078 = vcmp.gt.s32.totalorder 0, %v3077
        %v3079 = vsel %vm3078, 0, %v3077
        %v3080 = vsub.s32 32, %v3079
        %v3081 = vshll.u32 %v3072, %v3079
        %v3082 = vshrl.u32 %v3064, %v3080
        %v3083 = vor.u32 %v3081, %v3082
        %v3084 = vsub.s32 4294967266, %v3079
        %v3085 = vadd.s32 %v3084, 127
        %v3086 = vshll.u32 %v3085, 23
        %v3087 = vor.u32 4788187, %v3086
        %v3088 = vand.u32 2147483647, %v3087
        %v3090 = vcvt.s32.f32 %v3083
        %v3091 = vmul.f32 %v3090, %v3088
        %v3092 = vxor.u32 %v3091, 2147483648
        %v3093 = vsel %vm3010, %v3092, %v3091
        %v3094 = vsub.s32 4, %v3070
        %v3095 = vsel %vm3010, %v3094, %v3070
        %v3096 = vsel %vm3009, %v1534, %v3093
        %v3097 = vsel %vm3009, 0, %v3095
        %v3098 = vcosq.f32.pop %v3096
        %v3099 = vsinq.f32.pop %v3096
        %vm3100 = vweird.f32 %v1534
        %v3101 = vadd.s32 %v3097, 3
        %v3102 = vand.u32 %v3101, 3
        %vm3103 = vcmp.lt.s32.totalorder %v3102, 2
        %vm3104 = vcmp.eq.s32.totalorder %v3102, 0
        %v3105 = vxor.u32 %v3099, 2147483648
        %v3106 = vsel %vm3104, %v3098, %v3105
        %vm3107 = vcmp.eq.s32.totalorder %v3102, 2
        %v3108 = vxor.u32 %v3098, 2147483648
        %v3109 = vsel %vm3107, %v3108, %v3099
        %v3110 = vsel %vm3103, %v3106, %v3109
        %v3111 = vsel %vm3100, nan, %v3110
        %v3112 = vand.u32 2147483647, %v1535
        %vm3113 = vcmp.le.f32.partialorder %v3112, 0.7853982
        %vm3114 = vcmp.lt.s32.totalorder %v1535, 0
        %v3115 = vand.u32 %v1535, 2139095040
        %v3116 = vshrl.u32 %v3115, 23
        %v3117 = vsub.s32 %v3116, 127
        %v3118 = vand.u32 2147483647, %v1535
        %v3119 = vand.u32 %v3118, 8388607
        %v3120 = vor.u32 %v3119, 8388608
        %v3121 = vsub.s32 0, %v3120
        %v3122 = vadd.s32 %v3117, 1
        %vm3123 = vcmp.gt.s32.totalorder %v3122, 0
        %v3124 = vsel %vm3123, %v3122, 0
        %v3125 = vshrl.u32 %v3124, 5
        %v3126 = vand.u32 %v3124, 31
        %v3127 = vsub.s32 32, %v3126
        %v3128 = vshrl.u32 683565275, %v3127
        %v3129 = vshll.u32 683565275, %v3126
        %v3130 = vshrl.u32 2475754826, %v3127
        %v3131 = vor.u32 %v3129, %v3130
        %v3132 = vshll.u32 2475754826, %v3126
        %v3133 = vshrl.u32 2131351028, %v3127
        %v3134 = vor.u32 %v3132, %v3133
        %v3135 = vshll.u32 2131351028, %v3126
        %v3136 = vshrl.u32 2102212464, %v3127
        %v3137 = vor.u32 %v3135, %v3136
        %v3138 = vshll.u32 2102212464, %v3126
        %v3139 = vshrl.u32 920167782, %v3127
        %v3140 = vor.u32 %v3138, %v3139
        %v3141 = vshll.u32 920167782, %v3126
        %v3142 = vshrl.u32 1326507024, %v3127
        %v3143 = vor.u32 %v3141, %v3142
        %vm3144 = vcmp.lt.s32.totalorder %v3125, 1
        %vm3145 = vcmp.lt.s32.totalorder %v3125, 2
        %vm3146 = vcmp.lt.s32.totalorder %v3125, 3
        %vm3147 = vcmp.lt.s32.totalorder %v3125, 4
        %v3148 = vsel %vm3144, %v3128, %v3131
        %v3149 = vsel %vm3147, %v3137, 2102212464
        %v3150 = vsel %vm3146, %v3134, %v3149
        %v3151 = vsel %vm3145, %v3148, %v3150
        %v3152 = vsel %vm3144, %v3131, %v3134
        %v3153 = vsel %vm3147, %v3140, 920167782
        %v3154 = vsel %vm3146, %v3137, %v3153
        %v3155 = vsel %vm3145, %v3152, %v3154
        %v3156 = vsel %vm3144, %v3134, %v3137
        %v3157 = vsel %vm3147, %v3143, 1326507024
        %v3158 = vsel %vm3146, %v3140, %v3157
        %v3159 = vsel %vm3145, %v3156, %v3158
        %v3160 = vshll.u32 %v3120, 8
        %v3161 = vmul.u32.u64.compose %v3160, %v3159
        %v3162 = vextract.low.u32 %v3161
        %v3163 = vextract.high.u32 %v3161
        %v3164 = vmul.u32.u64.compose %v3160, %v3155
        %v3165 = vextract.low.u32 %v3164
        %v3166 = vextract.high.u32 %v3164
        %v3167 = vmul.u32 %v3160, %v3151
        %v3168 = vadd.s32 %v3163, %v3165
        %vm3169 = vc.u32 %v3163, %v3165
        %v3170 = vadd.s32 %v3166, 1
        %v3171 = vsel %vm3169, %v3170, %v3166
        %v3172 = vadd.s32 %v3167, %v3171
        %v3173 = vadd.s32 %v3172, 536870912
        %v3174 = vshrl.u32 %v3173, 30
        %v3175 = vshll.u32 %v3174, 30
        %v3176 = vsub.s32 %v3172, %v3175
        %vm3177 = vcmp.lt.s32.totalorder %v3176, 0
        %v3178 = vsub.s32 0, %v3176
        %v3179 = vsel %vm3177, %v3178, %v3176
        %v3180 = vclz %v3179
        %v3181 = vsub.s32 %v3180, 2
        %vm3182 = vcmp.gt.s32.totalorder 0, %v3181
        %v3183 = vsel %vm3182, 0, %v3181
        %v3184 = vsub.s32 32, %v3183
        %v3185 = vshll.u32 %v3176, %v3183
        %v3186 = vshrl.u32 %v3168, %v3184
        %v3187 = vor.u32 %v3185, %v3186
        %v3188 = vsub.s32 4294967266, %v3183
        %v3189 = vadd.s32 %v3188, 127
        %v3190 = vshll.u32 %v3189, 23
        %v3191 = vor.u32 4788187, %v3190
        %v3192 = vand.u32 2147483647, %v3191
        %v3194 = vcvt.s32.f32 %v3187
        %v3195 = vmul.f32 %v3194, %v3192
        %v3196 = vxor.u32 %v3195, 2147483648
        %v3197 = vsel %vm3114, %v3196, %v3195
        %v3198 = vsub.s32 4, %v3174
        %v3199 = vsel %vm3114, %v3198, %v3174
        %v3200 = vsel %vm3113, %v1535, %v3197
        %v3201 = vsel %vm3113, 0, %v3199
        %v3202 = vcosq.f32.pop %v3200
        %v3203 = vsinq.f32.pop %v3200
        %vm3204 = vweird.f32 %v1535
        %v3205 = vadd.s32 %v3201, 3
        %v3206 = vand.u32 %v3205, 3
        %vm3207 = vcmp.lt.s32.totalorder %v3206, 2
        %vm3208 = vcmp.eq.s32.totalorder %v3206, 0
        %v3209 = vxor.u32 %v3203, 2147483648
        %v3210 = vsel %vm3208, %v3202, %v3209
        %vm3211 = vcmp.eq.s32.totalorder %v3206, 2
        %v3212 = vxor.u32 %v3202, 2147483648
        %v3213 = vsel %vm3211, %v3212, %v3203
        %v3214 = vsel %vm3207, %v3210, %v3213
        %v3215 = vsel %vm3204, nan, %v3214
        %v3216 = vand.u32 2147483647, %v1536
        %vm3217 = vcmp.le.f32.partialorder %v3216, 0.7853982
        %vm3218 = vcmp.lt.s32.totalorder %v1536, 0
        %v3219 = vand.u32 %v1536, 2139095040
        %v3220 = vshrl.u32 %v3219, 23
        %v3221 = vsub.s32 %v3220, 127
        %v3222 = vand.u32 2147483647, %v1536
        %v3223 = vand.u32 %v3222, 8388607
        %v3224 = vor.u32 %v3223, 8388608
        %v3225 = vsub.s32 0, %v3224
        %v3226 = vadd.s32 %v3221, 1
        %vm3227 = vcmp.gt.s32.totalorder %v3226, 0
        %v3228 = vsel %vm3227, %v3226, 0
        %v3229 = vshrl.u32 %v3228, 5
        %v3230 = vand.u32 %v3228, 31
        %v3231 = vsub.s32 32, %v3230
        %v3232 = vshrl.u32 683565275, %v3231
        %v3233 = vshll.u32 683565275, %v3230
        %v3234 = vshrl.u32 2475754826, %v3231
        %v3235 = vor.u32 %v3233, %v3234
        %v3236 = vshll.u32 2475754826, %v3230
        %v3237 = vshrl.u32 2131351028, %v3231
        %v3238 = vor.u32 %v3236, %v3237
        %v3239 = vshll.u32 2131351028, %v3230
        %v3240 = vshrl.u32 2102212464, %v3231
        %v3241 = vor.u32 %v3239, %v3240
        %v3242 = vshll.u32 2102212464, %v3230
        %v3243 = vshrl.u32 920167782, %v3231
        %v3244 = vor.u32 %v3242, %v3243
        %v3245 = vshll.u32 920167782, %v3230
        %v3246 = vshrl.u32 1326507024, %v3231
        %v3247 = vor.u32 %v3245, %v3246
        %vm3248 = vcmp.lt.s32.totalorder %v3229, 1
        %vm3249 = vcmp.lt.s32.totalorder %v3229, 2
        %vm3250 = vcmp.lt.s32.totalorder %v3229, 3
        %vm3251 = vcmp.lt.s32.totalorder %v3229, 4
        %v3252 = vsel %vm3248, %v3232, %v3235
        %v3253 = vsel %vm3251, %v3241, 2102212464
        %v3254 = vsel %vm3250, %v3238, %v3253
        %v3255 = vsel %vm3249, %v3252, %v3254
        %v3256 = vsel %vm3248, %v3235, %v3238
        %v3257 = vsel %vm3251, %v3244, 920167782
        %v3258 = vsel %vm3250, %v3241, %v3257
        %v3259 = vsel %vm3249, %v3256, %v3258
        %v3260 = vsel %vm3248, %v3238, %v3241
        %v3261 = vsel %vm3251, %v3247, 1326507024
        %v3262 = vsel %vm3250, %v3244, %v3261
        %v3263 = vsel %vm3249, %v3260, %v3262
        %v3264 = vshll.u32 %v3224, 8
        %v3265 = vmul.u32.u64.compose %v3264, %v3263
        %v3266 = vextract.low.u32 %v3265
        %v3267 = vextract.high.u32 %v3265
        %v3268 = vmul.u32.u64.compose %v3264, %v3259
        %v3269 = vextract.low.u32 %v3268
        %v3270 = vextract.high.u32 %v3268
        %v3271 = vmul.u32 %v3264, %v3255
        %v3272 = vadd.s32 %v3267, %v3269
        %vm3273 = vc.u32 %v3267, %v3269
        %v3274 = vadd.s32 %v3270, 1
        %v3275 = vsel %vm3273, %v3274, %v3270
        %v3276 = vadd.s32 %v3271, %v3275
        %v3277 = vadd.s32 %v3276, 536870912
        %v3278 = vshrl.u32 %v3277, 30
        %v3279 = vshll.u32 %v3278, 30
        %v3280 = vsub.s32 %v3276, %v3279
        %vm3281 = vcmp.lt.s32.totalorder %v3280, 0
        %v3282 = vsub.s32 0, %v3280
        %v3283 = vsel %vm3281, %v3282, %v3280
        %v3284 = vclz %v3283
        %v3285 = vsub.s32 %v3284, 2
        %vm3286 = vcmp.gt.s32.totalorder 0, %v3285
        %v3287 = vsel %vm3286, 0, %v3285
        %v3288 = vsub.s32 32, %v3287
        %v3289 = vshll.u32 %v3280, %v3287
        %v3290 = vshrl.u32 %v3272, %v3288
        %v3291 = vor.u32 %v3289, %v3290
        %v3292 = vsub.s32 4294967266, %v3287
        %v3293 = vadd.s32 %v3292, 127
        %v3294 = vshll.u32 %v3293, 23
        %v3295 = vor.u32 4788187, %v3294
        %v3296 = vand.u32 2147483647, %v3295
        %v3298 = vcvt.s32.f32 %v3291
        %v3299 = vmul.f32 %v3298, %v3296
        %v3300 = vxor.u32 %v3299, 2147483648
        %v3301 = vsel %vm3218, %v3300, %v3299
        %v3302 = vsub.s32 4, %v3278
        %v3303 = vsel %vm3218, %v3302, %v3278
        %v3304 = vsel %vm3217, %v1536, %v3301
        %v3305 = vsel %vm3217, 0, %v3303
        %v3306 = vcosq.f32.pop %v3304
        %v3307 = vsinq.f32.pop %v3304
        %vm3308 = vweird.f32 %v1536
        %v3309 = vadd.s32 %v3305, 3
        %v3310 = vand.u32 %v3309, 3
        %vm3311 = vcmp.lt.s32.totalorder %v3310, 2
        %vm3312 = vcmp.eq.s32.totalorder %v3310, 0
        %v3313 = vxor.u32 %v3307, 2147483648
        %v3314 = vsel %vm3312, %v3306, %v3313
        %vm3315 = vcmp.eq.s32.totalorder %v3310, 2
        %v3316 = vxor.u32 %v3306, 2147483648
        %v3317 = vsel %vm3315, %v3316, %v3307
        %v3318 = vsel %vm3311, %v3314, %v3317
        %v3319 = vsel %vm3308, nan, %v3318
        %v3320 = vand.u32 2147483647, %v1537
        %vm3321 = vcmp.le.f32.partialorder %v3320, 0.7853982
        %vm3322 = vcmp.lt.s32.totalorder %v1537, 0
        %v3323 = vand.u32 %v1537, 2139095040
        %v3324 = vshrl.u32 %v3323, 23
        %v3325 = vsub.s32 %v3324, 127
        %v3326 = vand.u32 2147483647, %v1537
        %v3327 = vand.u32 %v3326, 8388607
        %v3328 = vor.u32 %v3327, 8388608
        %v3329 = vsub.s32 0, %v3328
        %v3330 = vadd.s32 %v3325, 1
        %vm3331 = vcmp.gt.s32.totalorder %v3330, 0
        %v3332 = vsel %vm3331, %v3330, 0
        %v3333 = vshrl.u32 %v3332, 5
        %v3334 = vand.u32 %v3332, 31
        %v3335 = vsub.s32 32, %v3334
        %v3336 = vshrl.u32 683565275, %v3335
        %v3337 = vshll.u32 683565275, %v3334
        %v3338 = vshrl.u32 2475754826, %v3335
        %v3339 = vor.u32 %v3337, %v3338
        %v3340 = vshll.u32 2475754826, %v3334
        %v3341 = vshrl.u32 2131351028, %v3335
        %v3342 = vor.u32 %v3340, %v3341
        %v3343 = vshll.u32 2131351028, %v3334
        %v3344 = vshrl.u32 2102212464, %v3335
        %v3345 = vor.u32 %v3343, %v3344
        %v3346 = vshll.u32 2102212464, %v3334
        %v3347 = vshrl.u32 920167782, %v3335
        %v3348 = vor.u32 %v3346, %v3347
        %v3349 = vshll.u32 920167782, %v3334
        %v3350 = vshrl.u32 1326507024, %v3335
        %v3351 = vor.u32 %v3349, %v3350
        %vm3352 = vcmp.lt.s32.totalorder %v3333, 1
        %vm3353 = vcmp.lt.s32.totalorder %v3333, 2
        %vm3354 = vcmp.lt.s32.totalorder %v3333, 3
        %vm3355 = vcmp.lt.s32.totalorder %v3333, 4
        %v3356 = vsel %vm3352, %v3336, %v3339
        %v3357 = vsel %vm3355, %v3345, 2102212464
        %v3358 = vsel %vm3354, %v3342, %v3357
        %v3359 = vsel %vm3353, %v3356, %v3358
        %v3360 = vsel %vm3352, %v3339, %v3342
        %v3361 = vsel %vm3355, %v3348, 920167782
        %v3362 = vsel %vm3354, %v3345, %v3361
        %v3363 = vsel %vm3353, %v3360, %v3362
        %v3364 = vsel %vm3352, %v3342, %v3345
        %v3365 = vsel %vm3355, %v3351, 1326507024
        %v3366 = vsel %vm3354, %v3348, %v3365
        %v3367 = vsel %vm3353, %v3364, %v3366
        %v3368 = vshll.u32 %v3328, 8
        %v3369 = vmul.u32.u64.compose %v3368, %v3367
        %v3370 = vextract.low.u32 %v3369
        %v3371 = vextract.high.u32 %v3369
        %v3372 = vmul.u32.u64.compose %v3368, %v3363
        %v3373 = vextract.low.u32 %v3372
        %v3374 = vextract.high.u32 %v3372
        %v3375 = vmul.u32 %v3368, %v3359
        %v3376 = vadd.s32 %v3371, %v3373
        %vm3377 = vc.u32 %v3371, %v3373
        %v3378 = vadd.s32 %v3374, 1
        %v3379 = vsel %vm3377, %v3378, %v3374
        %v3380 = vadd.s32 %v3375, %v3379
        %v3381 = vadd.s32 %v3380, 536870912
        %v3382 = vshrl.u32 %v3381, 30
        %v3383 = vshll.u32 %v3382, 30
        %v3384 = vsub.s32 %v3380, %v3383
        %vm3385 = vcmp.lt.s32.totalorder %v3384, 0
        %v3386 = vsub.s32 0, %v3384
        %v3387 = vsel %vm3385, %v3386, %v3384
        %v3388 = vclz %v3387
        %v3389 = vsub.s32 %v3388, 2
        %vm3390 = vcmp.gt.s32.totalorder 0, %v3389
        %v3391 = vsel %vm3390, 0, %v3389
        %v3392 = vsub.s32 32, %v3391
        %v3393 = vshll.u32 %v3384, %v3391
        %v3394 = vshrl.u32 %v3376, %v3392
        %v3395 = vor.u32 %v3393, %v3394
        %v3396 = vsub.s32 4294967266, %v3391
        %v3397 = vadd.s32 %v3396, 127
        %v3398 = vshll.u32 %v3397, 23
        %v3399 = vor.u32 4788187, %v3398
        %v3400 = vand.u32 2147483647, %v3399
        %v3402 = vcvt.s32.f32 %v3395
        %v3403 = vmul.f32 %v3402, %v3400
        %v3404 = vxor.u32 %v3403, 2147483648
        %v3405 = vsel %vm3322, %v3404, %v3403
        %v3406 = vsub.s32 4, %v3382
        %v3407 = vsel %vm3322, %v3406, %v3382
        %v3408 = vsel %vm3321, %v1537, %v3405
        %v3409 = vsel %vm3321, 0, %v3407
        %v3410 = vcosq.f32.pop %v3408
        %v3411 = vsinq.f32.pop %v3408
        %vm3412 = vweird.f32 %v1537
        %v3413 = vadd.s32 %v3409, 3
        %v3414 = vand.u32 %v3413, 3
        %vm3415 = vcmp.lt.s32.totalorder %v3414, 2
        %vm3416 = vcmp.eq.s32.totalorder %v3414, 0
        %v3417 = vxor.u32 %v3411, 2147483648
        %v3418 = vsel %vm3416, %v3410, %v3417
        %vm3419 = vcmp.eq.s32.totalorder %v3414, 2
        %v3420 = vxor.u32 %v3410, 2147483648
        %v3421 = vsel %vm3419, %v3420, %v3411
        %v3422 = vsel %vm3415, %v3418, %v3421
        %v3423 = vsel %vm3412, nan, %v3422
        %v3424 = vand.u32 2147483647, %v1538
        %vm3425 = vcmp.le.f32.partialorder %v3424, 0.7853982
        %vm3426 = vcmp.lt.s32.totalorder %v1538, 0
        %v3427 = vand.u32 %v1538, 2139095040
        %v3428 = vshrl.u32 %v3427, 23
        %v3429 = vsub.s32 %v3428, 127
        %v3430 = vand.u32 2147483647, %v1538
        %v3431 = vand.u32 %v3430, 8388607
        %v3432 = vor.u32 %v3431, 8388608
        %v3433 = vsub.s32 0, %v3432
        %v3434 = vadd.s32 %v3429, 1
        %vm3435 = vcmp.gt.s32.totalorder %v3434, 0
        %v3436 = vsel %vm3435, %v3434, 0
        %v3437 = vshrl.u32 %v3436, 5
        %v3438 = vand.u32 %v3436, 31
        %v3439 = vsub.s32 32, %v3438
        %v3440 = vshrl.u32 683565275, %v3439
        %v3441 = vshll.u32 683565275, %v3438
        %v3442 = vshrl.u32 2475754826, %v3439
        %v3443 = vor.u32 %v3441, %v3442
        %v3444 = vshll.u32 2475754826, %v3438
        %v3445 = vshrl.u32 2131351028, %v3439
        %v3446 = vor.u32 %v3444, %v3445
        %v3447 = vshll.u32 2131351028, %v3438
        %v3448 = vshrl.u32 2102212464, %v3439
        %v3449 = vor.u32 %v3447, %v3448
        %v3450 = vshll.u32 2102212464, %v3438
        %v3451 = vshrl.u32 920167782, %v3439
        %v3452 = vor.u32 %v3450, %v3451
        %v3453 = vshll.u32 920167782, %v3438
        %v3454 = vshrl.u32 1326507024, %v3439
        %v3455 = vor.u32 %v3453, %v3454
        %vm3456 = vcmp.lt.s32.totalorder %v3437, 1
        %vm3457 = vcmp.lt.s32.totalorder %v3437, 2
        %vm3458 = vcmp.lt.s32.totalorder %v3437, 3
        %vm3459 = vcmp.lt.s32.totalorder %v3437, 4
        %v3460 = vsel %vm3456, %v3440, %v3443
        %v3461 = vsel %vm3459, %v3449, 2102212464
        %v3462 = vsel %vm3458, %v3446, %v3461
        %v3463 = vsel %vm3457, %v3460, %v3462
        %v3464 = vsel %vm3456, %v3443, %v3446
        %v3465 = vsel %vm3459, %v3452, 920167782
        %v3466 = vsel %vm3458, %v3449, %v3465
        %v3467 = vsel %vm3457, %v3464, %v3466
        %v3468 = vsel %vm3456, %v3446, %v3449
        %v3469 = vsel %vm3459, %v3455, 1326507024
        %v3470 = vsel %vm3458, %v3452, %v3469
        %v3471 = vsel %vm3457, %v3468, %v3470
        %v3472 = vshll.u32 %v3432, 8
        %v3473 = vmul.u32.u64.compose %v3472, %v3471
        %v3474 = vextract.low.u32 %v3473
        %v3475 = vextract.high.u32 %v3473
        %v3476 = vmul.u32.u64.compose %v3472, %v3467
        %v3477 = vextract.low.u32 %v3476
        %v3478 = vextract.high.u32 %v3476
        %v3479 = vmul.u32 %v3472, %v3463
        %v3480 = vadd.s32 %v3475, %v3477
        %vm3481 = vc.u32 %v3475, %v3477
        %v3482 = vadd.s32 %v3478, 1
        %v3483 = vsel %vm3481, %v3482, %v3478
        %v3484 = vadd.s32 %v3479, %v3483
        %v3485 = vadd.s32 %v3484, 536870912
        %v3486 = vshrl.u32 %v3485, 30
        %v3487 = vshll.u32 %v3486, 30
        %v3488 = vsub.s32 %v3484, %v3487
        %vm3489 = vcmp.lt.s32.totalorder %v3488, 0
        %v3490 = vsub.s32 0, %v3488
        %v3491 = vsel %vm3489, %v3490, %v3488
        %v3492 = vclz %v3491
        %v3493 = vsub.s32 %v3492, 2
        %vm3494 = vcmp.gt.s32.totalorder 0, %v3493
        %v3495 = vsel %vm3494, 0, %v3493
        %v3496 = vsub.s32 32, %v3495
        %v3497 = vshll.u32 %v3488, %v3495
        %v3498 = vshrl.u32 %v3480, %v3496
        %v3499 = vor.u32 %v3497, %v3498
        %v3500 = vsub.s32 4294967266, %v3495
        %v3501 = vadd.s32 %v3500, 127
        %v3502 = vshll.u32 %v3501, 23
        %v3503 = vor.u32 4788187, %v3502
        %v3504 = vand.u32 2147483647, %v3503
        %v3506 = vcvt.s32.f32 %v3499
        %v3507 = vmul.f32 %v3506, %v3504
        %v3508 = vxor.u32 %v3507, 2147483648
        %v3509 = vsel %vm3426, %v3508, %v3507
        %v3510 = vsub.s32 4, %v3486
        %v3511 = vsel %vm3426, %v3510, %v3486
        %v3512 = vsel %vm3425, %v1538, %v3509
        %v3513 = vsel %vm3425, 0, %v3511
        %v3514 = vcosq.f32.pop %v3512
        %v3515 = vsinq.f32.pop %v3512
        %vm3516 = vweird.f32 %v1538
        %v3517 = vadd.s32 %v3513, 3
        %v3518 = vand.u32 %v3517, 3
        %vm3519 = vcmp.lt.s32.totalorder %v3518, 2
        %vm3520 = vcmp.eq.s32.totalorder %v3518, 0
        %v3521 = vxor.u32 %v3515, 2147483648
        %v3522 = vsel %vm3520, %v3514, %v3521
        %vm3523 = vcmp.eq.s32.totalorder %v3518, 2
        %v3524 = vxor.u32 %v3514, 2147483648
        %v3525 = vsel %vm3523, %v3524, %v3515
        %v3526 = vsel %vm3519, %v3522, %v3525
        %v3527 = vsel %vm3516, nan, %v3526
        %v3528 = vand.u32 2147483647, %v1539
        %vm3529 = vcmp.le.f32.partialorder %v3528, 0.7853982
        %vm3530 = vcmp.lt.s32.totalorder %v1539, 0
        %v3531 = vand.u32 %v1539, 2139095040
        %v3532 = vshrl.u32 %v3531, 23
        %v3533 = vsub.s32 %v3532, 127
        %v3534 = vand.u32 2147483647, %v1539
        %v3535 = vand.u32 %v3534, 8388607
        %v3536 = vor.u32 %v3535, 8388608
        %v3537 = vsub.s32 0, %v3536
        %v3538 = vadd.s32 %v3533, 1
        %vm3539 = vcmp.gt.s32.totalorder %v3538, 0
        %v3540 = vsel %vm3539, %v3538, 0
        %v3541 = vshrl.u32 %v3540, 5
        %v3542 = vand.u32 %v3540, 31
        %v3543 = vsub.s32 32, %v3542
        %v3544 = vshrl.u32 683565275, %v3543
        %v3545 = vshll.u32 683565275, %v3542
        %v3546 = vshrl.u32 2475754826, %v3543
        %v3547 = vor.u32 %v3545, %v3546
        %v3548 = vshll.u32 2475754826, %v3542
        %v3549 = vshrl.u32 2131351028, %v3543
        %v3550 = vor.u32 %v3548, %v3549
        %v3551 = vshll.u32 2131351028, %v3542
        %v3552 = vshrl.u32 2102212464, %v3543
        %v3553 = vor.u32 %v3551, %v3552
        %v3554 = vshll.u32 2102212464, %v3542
        %v3555 = vshrl.u32 920167782, %v3543
        %v3556 = vor.u32 %v3554, %v3555
        %v3557 = vshll.u32 920167782, %v3542
        %v3558 = vshrl.u32 1326507024, %v3543
        %v3559 = vor.u32 %v3557, %v3558
        %vm3560 = vcmp.lt.s32.totalorder %v3541, 1
        %vm3561 = vcmp.lt.s32.totalorder %v3541, 2
        %vm3562 = vcmp.lt.s32.totalorder %v3541, 3
        %vm3563 = vcmp.lt.s32.totalorder %v3541, 4
        %v3564 = vsel %vm3560, %v3544, %v3547
        %v3565 = vsel %vm3563, %v3553, 2102212464
        %v3566 = vsel %vm3562, %v3550, %v3565
        %v3567 = vsel %vm3561, %v3564, %v3566
        %v3568 = vsel %vm3560, %v3547, %v3550
        %v3569 = vsel %vm3563, %v3556, 920167782
        %v3570 = vsel %vm3562, %v3553, %v3569
        %v3571 = vsel %vm3561, %v3568, %v3570
        %v3572 = vsel %vm3560, %v3550, %v3553
        %v3573 = vsel %vm3563, %v3559, 1326507024
        %v3574 = vsel %vm3562, %v3556, %v3573
        %v3575 = vsel %vm3561, %v3572, %v3574
        %v3576 = vshll.u32 %v3536, 8
        %v3577 = vmul.u32.u64.compose %v3576, %v3575
        %v3578 = vextract.low.u32 %v3577
        %v3579 = vextract.high.u32 %v3577
        %v3580 = vmul.u32.u64.compose %v3576, %v3571
        %v3581 = vextract.low.u32 %v3580
        %v3582 = vextract.high.u32 %v3580
        %v3583 = vmul.u32 %v3576, %v3567
        %v3584 = vadd.s32 %v3579, %v3581
        %vm3585 = vc.u32 %v3579, %v3581
        %v3586 = vadd.s32 %v3582, 1
        %v3587 = vsel %vm3585, %v3586, %v3582
        %v3588 = vadd.s32 %v3583, %v3587
        %v3589 = vadd.s32 %v3588, 536870912
        %v3590 = vshrl.u32 %v3589, 30
        %v3591 = vshll.u32 %v3590, 30
        %v3592 = vsub.s32 %v3588, %v3591
        %vm3593 = vcmp.lt.s32.totalorder %v3592, 0
        %v3594 = vsub.s32 0, %v3592
        %v3595 = vsel %vm3593, %v3594, %v3592
        %v3596 = vclz %v3595
        %v3597 = vsub.s32 %v3596, 2
        %vm3598 = vcmp.gt.s32.totalorder 0, %v3597
        %v3599 = vsel %vm3598, 0, %v3597
        %v3600 = vsub.s32 32, %v3599
        %v3601 = vshll.u32 %v3592, %v3599
        %v3602 = vshrl.u32 %v3584, %v3600
        %v3603 = vor.u32 %v3601, %v3602
        %v3604 = vsub.s32 4294967266, %v3599
        %v3605 = vadd.s32 %v3604, 127
        %v3606 = vshll.u32 %v3605, 23
        %v3607 = vor.u32 4788187, %v3606
        %v3608 = vand.u32 2147483647, %v3607
        %v3610 = vcvt.s32.f32 %v3603
        %v3611 = vmul.f32 %v3610, %v3608
        %v3612 = vxor.u32 %v3611, 2147483648
        %v3613 = vsel %vm3530, %v3612, %v3611
        %v3614 = vsub.s32 4, %v3590
        %v3615 = vsel %vm3530, %v3614, %v3590
        %v3616 = vsel %vm3529, %v1539, %v3613
        %v3617 = vsel %vm3529, 0, %v3615
        %v3618 = vcosq.f32.pop %v3616
        %v3619 = vsinq.f32.pop %v3616
        %vm3620 = vweird.f32 %v1539
        %v3621 = vadd.s32 %v3617, 3
        %v3622 = vand.u32 %v3621, 3
        %vm3623 = vcmp.lt.s32.totalorder %v3622, 2
        %vm3624 = vcmp.eq.s32.totalorder %v3622, 0
        %v3625 = vxor.u32 %v3619, 2147483648
        %v3626 = vsel %vm3624, %v3618, %v3625
        %vm3627 = vcmp.eq.s32.totalorder %v3622, 2
        %v3628 = vxor.u32 %v3618, 2147483648
        %v3629 = vsel %vm3627, %v3628, %v3619
        %v3630 = vsel %vm3623, %v3626, %v3629
        %v3631 = vsel %vm3620, nan, %v3630
        %v3632 = vand.u32 2147483647, %v1540
        %vm3633 = vcmp.le.f32.partialorder %v3632, 0.7853982
        %vm3634 = vcmp.lt.s32.totalorder %v1540, 0
        %v3635 = vand.u32 %v1540, 2139095040
        %v3636 = vshrl.u32 %v3635, 23
        %v3637 = vsub.s32 %v3636, 127
        %v3638 = vand.u32 2147483647, %v1540
        %v3639 = vand.u32 %v3638, 8388607
        %v3640 = vor.u32 %v3639, 8388608
        %v3641 = vsub.s32 0, %v3640
        %v3642 = vadd.s32 %v3637, 1
        %vm3643 = vcmp.gt.s32.totalorder %v3642, 0
        %v3644 = vsel %vm3643, %v3642, 0
        %v3645 = vshrl.u32 %v3644, 5
        %v3646 = vand.u32 %v3644, 31
        %v3647 = vsub.s32 32, %v3646
        %v3648 = vshrl.u32 683565275, %v3647
        %v3649 = vshll.u32 683565275, %v3646
        %v3650 = vshrl.u32 2475754826, %v3647
        %v3651 = vor.u32 %v3649, %v3650
        %v3652 = vshll.u32 2475754826, %v3646
        %v3653 = vshrl.u32 2131351028, %v3647
        %v3654 = vor.u32 %v3652, %v3653
        %v3655 = vshll.u32 2131351028, %v3646
        %v3656 = vshrl.u32 2102212464, %v3647
        %v3657 = vor.u32 %v3655, %v3656
        %v3658 = vshll.u32 2102212464, %v3646
        %v3659 = vshrl.u32 920167782, %v3647
        %v3660 = vor.u32 %v3658, %v3659
        %v3661 = vshll.u32 920167782, %v3646
        %v3662 = vshrl.u32 1326507024, %v3647
        %v3663 = vor.u32 %v3661, %v3662
        %vm3664 = vcmp.lt.s32.totalorder %v3645, 1
        %vm3665 = vcmp.lt.s32.totalorder %v3645, 2
        %vm3666 = vcmp.lt.s32.totalorder %v3645, 3
        %vm3667 = vcmp.lt.s32.totalorder %v3645, 4
        %v3668 = vsel %vm3664, %v3648, %v3651
        %v3669 = vsel %vm3667, %v3657, 2102212464
        %v3670 = vsel %vm3666, %v3654, %v3669
        %v3671 = vsel %vm3665, %v3668, %v3670
        %v3672 = vsel %vm3664, %v3651, %v3654
        %v3673 = vsel %vm3667, %v3660, 920167782
        %v3674 = vsel %vm3666, %v3657, %v3673
        %v3675 = vsel %vm3665, %v3672, %v3674
        %v3676 = vsel %vm3664, %v3654, %v3657
        %v3677 = vsel %vm3667, %v3663, 1326507024
        %v3678 = vsel %vm3666, %v3660, %v3677
        %v3679 = vsel %vm3665, %v3676, %v3678
        %v3680 = vshll.u32 %v3640, 8
        %v3681 = vmul.u32.u64.compose %v3680, %v3679
        %v3682 = vextract.low.u32 %v3681
        %v3683 = vextract.high.u32 %v3681
        %v3684 = vmul.u32.u64.compose %v3680, %v3675
        %v3685 = vextract.low.u32 %v3684
        %v3686 = vextract.high.u32 %v3684
        %v3687 = vmul.u32 %v3680, %v3671
        %v3688 = vadd.s32 %v3683, %v3685
        %vm3689 = vc.u32 %v3683, %v3685
        %v3690 = vadd.s32 %v3686, 1
        %v3691 = vsel %vm3689, %v3690, %v3686
        %v3692 = vadd.s32 %v3687, %v3691
        %v3693 = vadd.s32 %v3692, 536870912
        %v3694 = vshrl.u32 %v3693, 30
        %v3695 = vshll.u32 %v3694, 30
        %v3696 = vsub.s32 %v3692, %v3695
        %vm3697 = vcmp.lt.s32.totalorder %v3696, 0
        %v3698 = vsub.s32 0, %v3696
        %v3699 = vsel %vm3697, %v3698, %v3696
        %v3700 = vclz %v3699
        %v3701 = vsub.s32 %v3700, 2
        %vm3702 = vcmp.gt.s32.totalorder 0, %v3701
        %v3703 = vsel %vm3702, 0, %v3701
        %v3704 = vsub.s32 32, %v3703
        %v3705 = vshll.u32 %v3696, %v3703
        %v3706 = vshrl.u32 %v3688, %v3704
        %v3707 = vor.u32 %v3705, %v3706
        %v3708 = vsub.s32 4294967266, %v3703
        %v3709 = vadd.s32 %v3708, 127
        %v3710 = vshll.u32 %v3709, 23
        %v3711 = vor.u32 4788187, %v3710
        %v3712 = vand.u32 2147483647, %v3711
        %v3714 = vcvt.s32.f32 %v3707
        %v3715 = vmul.f32 %v3714, %v3712
        %v3716 = vxor.u32 %v3715, 2147483648
        %v3717 = vsel %vm3634, %v3716, %v3715
        %v3718 = vsub.s32 4, %v3694
        %v3719 = vsel %vm3634, %v3718, %v3694
        %v3720 = vsel %vm3633, %v1540, %v3717
        %v3721 = vsel %vm3633, 0, %v3719
        %v3722 = vcosq.f32.pop %v3720
        %v3723 = vsinq.f32.pop %v3720
        %vm3724 = vweird.f32 %v1540
        %v3725 = vadd.s32 %v3721, 3
        %v3726 = vand.u32 %v3725, 3
        %vm3727 = vcmp.lt.s32.totalorder %v3726, 2
        %vm3728 = vcmp.eq.s32.totalorder %v3726, 0
        %v3729 = vxor.u32 %v3723, 2147483648
        %v3730 = vsel %vm3728, %v3722, %v3729
        %vm3731 = vcmp.eq.s32.totalorder %v3726, 2
        %v3732 = vxor.u32 %v3722, 2147483648
        %v3733 = vsel %vm3731, %v3732, %v3723
        %v3734 = vsel %vm3727, %v3730, %v3733
        %v3735 = vsel %vm3724, nan, %v3734
        %v3736 = vand.u32 2147483647, %v1541
        %vm3737 = vcmp.le.f32.partialorder %v3736, 0.7853982
        %vm3738 = vcmp.lt.s32.totalorder %v1541, 0
        %v3739 = vand.u32 %v1541, 2139095040
        %v3740 = vshrl.u32 %v3739, 23
        %v3741 = vsub.s32 %v3740, 127
        %v3742 = vand.u32 2147483647, %v1541
        %v3743 = vand.u32 %v3742, 8388607
        %v3744 = vor.u32 %v3743, 8388608
        %v3745 = vsub.s32 0, %v3744
        %v3746 = vadd.s32 %v3741, 1
        %vm3747 = vcmp.gt.s32.totalorder %v3746, 0
        %v3748 = vsel %vm3747, %v3746, 0
        %v3749 = vshrl.u32 %v3748, 5
        %v3750 = vand.u32 %v3748, 31
        %v3751 = vsub.s32 32, %v3750
        %v3752 = vshrl.u32 683565275, %v3751
        %v3753 = vshll.u32 683565275, %v3750
        %v3754 = vshrl.u32 2475754826, %v3751
        %v3755 = vor.u32 %v3753, %v3754
        %v3756 = vshll.u32 2475754826, %v3750
        %v3757 = vshrl.u32 2131351028, %v3751
        %v3758 = vor.u32 %v3756, %v3757
        %v3759 = vshll.u32 2131351028, %v3750
        %v3760 = vshrl.u32 2102212464, %v3751
        %v3761 = vor.u32 %v3759, %v3760
        %v3762 = vshll.u32 2102212464, %v3750
        %v3763 = vshrl.u32 920167782, %v3751
        %v3764 = vor.u32 %v3762, %v3763
        %v3765 = vshll.u32 920167782, %v3750
        %v3766 = vshrl.u32 1326507024, %v3751
        %v3767 = vor.u32 %v3765, %v3766
        %vm3768 = vcmp.lt.s32.totalorder %v3749, 1
        %vm3769 = vcmp.lt.s32.totalorder %v3749, 2
        %vm3770 = vcmp.lt.s32.totalorder %v3749, 3
        %vm3771 = vcmp.lt.s32.totalorder %v3749, 4
        %v3772 = vsel %vm3768, %v3752, %v3755
        %v3773 = vsel %vm3771, %v3761, 2102212464
        %v3774 = vsel %vm3770, %v3758, %v3773
        %v3775 = vsel %vm3769, %v3772, %v3774
        %v3776 = vsel %vm3768, %v3755, %v3758
        %v3777 = vsel %vm3771, %v3764, 920167782
        %v3778 = vsel %vm3770, %v3761, %v3777
        %v3779 = vsel %vm3769, %v3776, %v3778
        %v3780 = vsel %vm3768, %v3758, %v3761
        %v3781 = vsel %vm3771, %v3767, 1326507024
        %v3782 = vsel %vm3770, %v3764, %v3781
        %v3783 = vsel %vm3769, %v3780, %v3782
        %v3784 = vshll.u32 %v3744, 8
        %v3785 = vmul.u32.u64.compose %v3784, %v3783
        %v3786 = vextract.low.u32 %v3785
        %v3787 = vextract.high.u32 %v3785
        %v3788 = vmul.u32.u64.compose %v3784, %v3779
        %v3789 = vextract.low.u32 %v3788
        %v3790 = vextract.high.u32 %v3788
        %v3791 = vmul.u32 %v3784, %v3775
        %v3792 = vadd.s32 %v3787, %v3789
        %vm3793 = vc.u32 %v3787, %v3789
        %v3794 = vadd.s32 %v3790, 1
        %v3795 = vsel %vm3793, %v3794, %v3790
        %v3796 = vadd.s32 %v3791, %v3795
        %v3797 = vadd.s32 %v3796, 536870912
        %v3798 = vshrl.u32 %v3797, 30
        %v3799 = vshll.u32 %v3798, 30
        %v3800 = vsub.s32 %v3796, %v3799
        %vm3801 = vcmp.lt.s32.totalorder %v3800, 0
        %v3802 = vsub.s32 0, %v3800
        %v3803 = vsel %vm3801, %v3802, %v3800
        %v3804 = vclz %v3803
        %v3805 = vsub.s32 %v3804, 2
        %vm3806 = vcmp.gt.s32.totalorder 0, %v3805
        %v3807 = vsel %vm3806, 0, %v3805
        %v3808 = vsub.s32 32, %v3807
        %v3809 = vshll.u32 %v3800, %v3807
        %v3810 = vshrl.u32 %v3792, %v3808
        %v3811 = vor.u32 %v3809, %v3810
        %v3812 = vsub.s32 4294967266, %v3807
        %v3813 = vadd.s32 %v3812, 127
        %v3814 = vshll.u32 %v3813, 23
        %v3815 = vor.u32 4788187, %v3814
        %v3816 = vand.u32 2147483647, %v3815
        %v3818 = vcvt.s32.f32 %v3811
        %v3819 = vmul.f32 %v3818, %v3816
        %v3820 = vxor.u32 %v3819, 2147483648
        %v3821 = vsel %vm3738, %v3820, %v3819
        %v3822 = vsub.s32 4, %v3798
        %v3823 = vsel %vm3738, %v3822, %v3798
        %v3824 = vsel %vm3737, %v1541, %v3821
        %v3825 = vsel %vm3737, 0, %v3823
        %v3826 = vcosq.f32.pop %v3824
        %v3827 = vsinq.f32.pop %v3824
        %vm3828 = vweird.f32 %v1541
        %v3829 = vadd.s32 %v3825, 3
        %v3830 = vand.u32 %v3829, 3
        %vm3831 = vcmp.lt.s32.totalorder %v3830, 2
        %vm3832 = vcmp.eq.s32.totalorder %v3830, 0
        %v3833 = vxor.u32 %v3827, 2147483648
        %v3834 = vsel %vm3832, %v3826, %v3833
        %vm3835 = vcmp.eq.s32.totalorder %v3830, 2
        %v3836 = vxor.u32 %v3826, 2147483648
        %v3837 = vsel %vm3835, %v3836, %v3827
        %v3838 = vsel %vm3831, %v3834, %v3837
        %v3839 = vsel %vm3828, nan, %v3838
        %v3840 = vand.u32 2147483647, %v1542
        %vm3841 = vcmp.le.f32.partialorder %v3840, 0.7853982
        %vm3842 = vcmp.lt.s32.totalorder %v1542, 0
        %v3843 = vand.u32 %v1542, 2139095040
        %v3844 = vshrl.u32 %v3843, 23
        %v3845 = vsub.s32 %v3844, 127
        %v3846 = vand.u32 2147483647, %v1542
        %v3847 = vand.u32 %v3846, 8388607
        %v3848 = vor.u32 %v3847, 8388608
        %v3849 = vsub.s32 0, %v3848
        %v3850 = vadd.s32 %v3845, 1
        %vm3851 = vcmp.gt.s32.totalorder %v3850, 0
        %v3852 = vsel %vm3851, %v3850, 0
        %v3853 = vshrl.u32 %v3852, 5
        %v3854 = vand.u32 %v3852, 31
        %v3855 = vsub.s32 32, %v3854
        %v3856 = vshrl.u32 683565275, %v3855
        %v3857 = vshll.u32 683565275, %v3854
        %v3858 = vshrl.u32 2475754826, %v3855
        %v3859 = vor.u32 %v3857, %v3858
        %v3860 = vshll.u32 2475754826, %v3854
        %v3861 = vshrl.u32 2131351028, %v3855
        %v3862 = vor.u32 %v3860, %v3861
        %v3863 = vshll.u32 2131351028, %v3854
        %v3864 = vshrl.u32 2102212464, %v3855
        %v3865 = vor.u32 %v3863, %v3864
        %v3866 = vshll.u32 2102212464, %v3854
        %v3867 = vshrl.u32 920167782, %v3855
        %v3868 = vor.u32 %v3866, %v3867
        %v3869 = vshll.u32 920167782, %v3854
        %v3870 = vshrl.u32 1326507024, %v3855
        %v3871 = vor.u32 %v3869, %v3870
        %vm3872 = vcmp.lt.s32.totalorder %v3853, 1
        %vm3873 = vcmp.lt.s32.totalorder %v3853, 2
        %vm3874 = vcmp.lt.s32.totalorder %v3853, 3
        %vm3875 = vcmp.lt.s32.totalorder %v3853, 4
        %v3876 = vsel %vm3872, %v3856, %v3859
        %v3877 = vsel %vm3875, %v3865, 2102212464
        %v3878 = vsel %vm3874, %v3862, %v3877
        %v3879 = vsel %vm3873, %v3876, %v3878
        %v3880 = vsel %vm3872, %v3859, %v3862
        %v3881 = vsel %vm3875, %v3868, 920167782
        %v3882 = vsel %vm3874, %v3865, %v3881
        %v3883 = vsel %vm3873, %v3880, %v3882
        %v3884 = vsel %vm3872, %v3862, %v3865
        %v3885 = vsel %vm3875, %v3871, 1326507024
        %v3886 = vsel %vm3874, %v3868, %v3885
        %v3887 = vsel %vm3873, %v3884, %v3886
        %v3888 = vshll.u32 %v3848, 8
        %v3889 = vmul.u32.u64.compose %v3888, %v3887
        %v3890 = vextract.low.u32 %v3889
        %v3891 = vextract.high.u32 %v3889
        %v3892 = vmul.u32.u64.compose %v3888, %v3883
        %v3893 = vextract.low.u32 %v3892
        %v3894 = vextract.high.u32 %v3892
        %v3895 = vmul.u32 %v3888, %v3879
        %v3896 = vadd.s32 %v3891, %v3893
        %vm3897 = vc.u32 %v3891, %v3893
        %v3898 = vadd.s32 %v3894, 1
        %v3899 = vsel %vm3897, %v3898, %v3894
        %v3900 = vadd.s32 %v3895, %v3899
        %v3901 = vadd.s32 %v3900, 536870912
        %v3902 = vshrl.u32 %v3901, 30
        %v3903 = vshll.u32 %v3902, 30
        %v3904 = vsub.s32 %v3900, %v3903
        %vm3905 = vcmp.lt.s32.totalorder %v3904, 0
        %v3906 = vsub.s32 0, %v3904
        %v3907 = vsel %vm3905, %v3906, %v3904
        %v3908 = vclz %v3907
        %v3909 = vsub.s32 %v3908, 2
        %vm3910 = vcmp.gt.s32.totalorder 0, %v3909
        %v3911 = vsel %vm3910, 0, %v3909
        %v3912 = vsub.s32 32, %v3911
        %v3913 = vshll.u32 %v3904, %v3911
        %v3914 = vshrl.u32 %v3896, %v3912
        %v3915 = vor.u32 %v3913, %v3914
        %v3916 = vsub.s32 4294967266, %v3911
        %v3917 = vadd.s32 %v3916, 127
        %v3918 = vshll.u32 %v3917, 23
        %v3919 = vor.u32 4788187, %v3918
        %v3920 = vand.u32 2147483647, %v3919
        %v3922 = vcvt.s32.f32 %v3915
        %v3923 = vmul.f32 %v3922, %v3920
        %v3924 = vxor.u32 %v3923, 2147483648
        %v3925 = vsel %vm3842, %v3924, %v3923
        %v3926 = vsub.s32 4, %v3902
        %v3927 = vsel %vm3842, %v3926, %v3902
        %v3928 = vsel %vm3841, %v1542, %v3925
        %v3929 = vsel %vm3841, 0, %v3927
        %v3930 = vcosq.f32.pop %v3928
        %v3931 = vsinq.f32.pop %v3928
        %vm3932 = vweird.f32 %v1542
        %v3933 = vadd.s32 %v3929, 3
        %v3934 = vand.u32 %v3933, 3
        %vm3935 = vcmp.lt.s32.totalorder %v3934, 2
        %vm3936 = vcmp.eq.s32.totalorder %v3934, 0
        %v3937 = vxor.u32 %v3931, 2147483648
        %v3938 = vsel %vm3936, %v3930, %v3937
        %vm3939 = vcmp.eq.s32.totalorder %v3934, 2
        %v3940 = vxor.u32 %v3930, 2147483648
        %v3941 = vsel %vm3939, %v3940, %v3931
        %v3942 = vsel %vm3935, %v3938, %v3941
        %v3943 = vsel %vm3932, nan, %v3942
        %v3944 = vand.u32 2147483647, %v1543
        %vm3945 = vcmp.le.f32.partialorder %v3944, 0.7853982
        %vm3946 = vcmp.lt.s32.totalorder %v1543, 0
        %v3947 = vand.u32 %v1543, 2139095040
        %v3948 = vshrl.u32 %v3947, 23
        %v3949 = vsub.s32 %v3948, 127
        %v3950 = vand.u32 2147483647, %v1543
        %v3951 = vand.u32 %v3950, 8388607
        %v3952 = vor.u32 %v3951, 8388608
        %v3953 = vsub.s32 0, %v3952
        %v3954 = vadd.s32 %v3949, 1
        %vm3955 = vcmp.gt.s32.totalorder %v3954, 0
        %v3956 = vsel %vm3955, %v3954, 0
        %v3957 = vshrl.u32 %v3956, 5
        %v3958 = vand.u32 %v3956, 31
        %v3959 = vsub.s32 32, %v3958
        %v3960 = vshrl.u32 683565275, %v3959
        %v3961 = vshll.u32 683565275, %v3958
        %v3962 = vshrl.u32 2475754826, %v3959
        %v3963 = vor.u32 %v3961, %v3962
        %v3964 = vshll.u32 2475754826, %v3958
        %v3965 = vshrl.u32 2131351028, %v3959
        %v3966 = vor.u32 %v3964, %v3965
        %v3967 = vshll.u32 2131351028, %v3958
        %v3968 = vshrl.u32 2102212464, %v3959
        %v3969 = vor.u32 %v3967, %v3968
        %v3970 = vshll.u32 2102212464, %v3958
        %v3971 = vshrl.u32 920167782, %v3959
        %v3972 = vor.u32 %v3970, %v3971
        %v3973 = vshll.u32 920167782, %v3958
        %v3974 = vshrl.u32 1326507024, %v3959
        %v3975 = vor.u32 %v3973, %v3974
        %vm3976 = vcmp.lt.s32.totalorder %v3957, 1
        %vm3977 = vcmp.lt.s32.totalorder %v3957, 2
        %vm3978 = vcmp.lt.s32.totalorder %v3957, 3
        %vm3979 = vcmp.lt.s32.totalorder %v3957, 4
        %v3980 = vsel %vm3976, %v3960, %v3963
        %v3981 = vsel %vm3979, %v3969, 2102212464
        %v3982 = vsel %vm3978, %v3966, %v3981
        %v3983 = vsel %vm3977, %v3980, %v3982
        %v3984 = vsel %vm3976, %v3963, %v3966
        %v3985 = vsel %vm3979, %v3972, 920167782
        %v3986 = vsel %vm3978, %v3969, %v3985
        %v3987 = vsel %vm3977, %v3984, %v3986
        %v3988 = vsel %vm3976, %v3966, %v3969
        %v3989 = vsel %vm3979, %v3975, 1326507024
        %v3990 = vsel %vm3978, %v3972, %v3989
        %v3991 = vsel %vm3977, %v3988, %v3990
        %v3992 = vshll.u32 %v3952, 8
        %v3993 = vmul.u32.u64.compose %v3992, %v3991
        %v3994 = vextract.low.u32 %v3993
        %v3995 = vextract.high.u32 %v3993
        %v3996 = vmul.u32.u64.compose %v3992, %v3987
        %v3997 = vextract.low.u32 %v3996
        %v3998 = vextract.high.u32 %v3996
        %v3999 = vmul.u32 %v3992, %v3983
        %v4000 = vadd.s32 %v3995, %v3997
        %vm4001 = vc.u32 %v3995, %v3997
        %v4002 = vadd.s32 %v3998, 1
        %v4003 = vsel %vm4001, %v4002, %v3998
        %v4004 = vadd.s32 %v3999, %v4003
        %v4005 = vadd.s32 %v4004, 536870912
        %v4006 = vshrl.u32 %v4005, 30
        %v4007 = vshll.u32 %v4006, 30
        %v4008 = vsub.s32 %v4004, %v4007
        %vm4009 = vcmp.lt.s32.totalorder %v4008, 0
        %v4010 = vsub.s32 0, %v4008
        %v4011 = vsel %vm4009, %v4010, %v4008
        %v4012 = vclz %v4011
        %v4013 = vsub.s32 %v4012, 2
        %vm4014 = vcmp.gt.s32.totalorder 0, %v4013
        %v4015 = vsel %vm4014, 0, %v4013
        %v4016 = vsub.s32 32, %v4015
        %v4017 = vshll.u32 %v4008, %v4015
        %v4018 = vshrl.u32 %v4000, %v4016
        %v4019 = vor.u32 %v4017, %v4018
        %v4020 = vsub.s32 4294967266, %v4015
        %v4021 = vadd.s32 %v4020, 127
        %v4022 = vshll.u32 %v4021, 23
        %v4023 = vor.u32 4788187, %v4022
        %v4024 = vand.u32 2147483647, %v4023
        %v4026 = vcvt.s32.f32 %v4019
        %v4027 = vmul.f32 %v4026, %v4024
        %v4028 = vxor.u32 %v4027, 2147483648
        %v4029 = vsel %vm3946, %v4028, %v4027
        %v4030 = vsub.s32 4, %v4006
        %v4031 = vsel %vm3946, %v4030, %v4006
        %v4032 = vsel %vm3945, %v1543, %v4029
        %v4033 = vsel %vm3945, 0, %v4031
        %v4034 = vcosq.f32.pop %v4032
        %v4035 = vsinq.f32.pop %v4032
        %vm4036 = vweird.f32 %v1543
        %v4037 = vadd.s32 %v4033, 3
        %v4038 = vand.u32 %v4037, 3
        %vm4039 = vcmp.lt.s32.totalorder %v4038, 2
        %vm4040 = vcmp.eq.s32.totalorder %v4038, 0
        %v4041 = vxor.u32 %v4035, 2147483648
        %v4042 = vsel %vm4040, %v4034, %v4041
        %vm4043 = vcmp.eq.s32.totalorder %v4038, 2
        %v4044 = vxor.u32 %v4034, 2147483648
        %v4045 = vsel %vm4043, %v4044, %v4035
        %v4046 = vsel %vm4039, %v4042, %v4045
        %v4047 = vsel %vm4036, nan, %v4046
        %v4048 = vand.u32 2147483647, %v1544
        %vm4049 = vcmp.le.f32.partialorder %v4048, 0.7853982
        %vm4050 = vcmp.lt.s32.totalorder %v1544, 0
        %v4051 = vand.u32 %v1544, 2139095040
        %v4052 = vshrl.u32 %v4051, 23
        %v4053 = vsub.s32 %v4052, 127
        %v4054 = vand.u32 2147483647, %v1544
        %v4055 = vand.u32 %v4054, 8388607
        %v4056 = vor.u32 %v4055, 8388608
        %v4057 = vsub.s32 0, %v4056
        %v4058 = vadd.s32 %v4053, 1
        %vm4059 = vcmp.gt.s32.totalorder %v4058, 0
        %v4060 = vsel %vm4059, %v4058, 0
        %v4061 = vshrl.u32 %v4060, 5
        %v4062 = vand.u32 %v4060, 31
        %v4063 = vsub.s32 32, %v4062
        %v4064 = vshrl.u32 683565275, %v4063
        %v4065 = vshll.u32 683565275, %v4062
        %v4066 = vshrl.u32 2475754826, %v4063
        %v4067 = vor.u32 %v4065, %v4066
        %v4068 = vshll.u32 2475754826, %v4062
        %v4069 = vshrl.u32 2131351028, %v4063
        %v4070 = vor.u32 %v4068, %v4069
        %v4071 = vshll.u32 2131351028, %v4062
        %v4072 = vshrl.u32 2102212464, %v4063
        %v4073 = vor.u32 %v4071, %v4072
        %v4074 = vshll.u32 2102212464, %v4062
        %v4075 = vshrl.u32 920167782, %v4063
        %v4076 = vor.u32 %v4074, %v4075
        %v4077 = vshll.u32 920167782, %v4062
        %v4078 = vshrl.u32 1326507024, %v4063
        %v4079 = vor.u32 %v4077, %v4078
        %vm4080 = vcmp.lt.s32.totalorder %v4061, 1
        %vm4081 = vcmp.lt.s32.totalorder %v4061, 2
        %vm4082 = vcmp.lt.s32.totalorder %v4061, 3
        %vm4083 = vcmp.lt.s32.totalorder %v4061, 4
        %v4084 = vsel %vm4080, %v4064, %v4067
        %v4085 = vsel %vm4083, %v4073, 2102212464
        %v4086 = vsel %vm4082, %v4070, %v4085
        %v4087 = vsel %vm4081, %v4084, %v4086
        %v4088 = vsel %vm4080, %v4067, %v4070
        %v4089 = vsel %vm4083, %v4076, 920167782
        %v4090 = vsel %vm4082, %v4073, %v4089
        %v4091 = vsel %vm4081, %v4088, %v4090
        %v4092 = vsel %vm4080, %v4070, %v4073
        %v4093 = vsel %vm4083, %v4079, 1326507024
        %v4094 = vsel %vm4082, %v4076, %v4093
        %v4095 = vsel %vm4081, %v4092, %v4094
        %v4096 = vshll.u32 %v4056, 8
        %v4097 = vmul.u32.u64.compose %v4096, %v4095
        %v4098 = vextract.low.u32 %v4097
        %v4099 = vextract.high.u32 %v4097
        %v4100 = vmul.u32.u64.compose %v4096, %v4091
        %v4101 = vextract.low.u32 %v4100
        %v4102 = vextract.high.u32 %v4100
        %v4103 = vmul.u32 %v4096, %v4087
        %v4104 = vadd.s32 %v4099, %v4101
        %vm4105 = vc.u32 %v4099, %v4101
        %v4106 = vadd.s32 %v4102, 1
        %v4107 = vsel %vm4105, %v4106, %v4102
        %v4108 = vadd.s32 %v4103, %v4107
        %v4109 = vadd.s32 %v4108, 536870912
        %v4110 = vshrl.u32 %v4109, 30
        %v4111 = vshll.u32 %v4110, 30
        %v4112 = vsub.s32 %v4108, %v4111
        %vm4113 = vcmp.lt.s32.totalorder %v4112, 0
        %v4114 = vsub.s32 0, %v4112
        %v4115 = vsel %vm4113, %v4114, %v4112
        %v4116 = vclz %v4115
        %v4117 = vsub.s32 %v4116, 2
        %vm4118 = vcmp.gt.s32.totalorder 0, %v4117
        %v4119 = vsel %vm4118, 0, %v4117
        %v4120 = vsub.s32 32, %v4119
        %v4121 = vshll.u32 %v4112, %v4119
        %v4122 = vshrl.u32 %v4104, %v4120
        %v4123 = vor.u32 %v4121, %v4122
        %v4124 = vsub.s32 4294967266, %v4119
        %v4125 = vadd.s32 %v4124, 127
        %v4126 = vshll.u32 %v4125, 23
        %v4127 = vor.u32 4788187, %v4126
        %v4128 = vand.u32 2147483647, %v4127
        %v4130 = vcvt.s32.f32 %v4123
        %v4131 = vmul.f32 %v4130, %v4128
        %v4132 = vxor.u32 %v4131, 2147483648
        %v4133 = vsel %vm4050, %v4132, %v4131
        %v4134 = vsub.s32 4, %v4110
        %v4135 = vsel %vm4050, %v4134, %v4110
        %v4136 = vsel %vm4049, %v1544, %v4133
        %v4137 = vsel %vm4049, 0, %v4135
        %v4138 = vcosq.f32.pop %v4136
        %v4139 = vsinq.f32.pop %v4136
        %vm4140 = vweird.f32 %v1544
        %v4141 = vadd.s32 %v4137, 3
        %v4142 = vand.u32 %v4141, 3
        %vm4143 = vcmp.lt.s32.totalorder %v4142, 2
        %vm4144 = vcmp.eq.s32.totalorder %v4142, 0
        %v4145 = vxor.u32 %v4139, 2147483648
        %v4146 = vsel %vm4144, %v4138, %v4145
        %vm4147 = vcmp.eq.s32.totalorder %v4142, 2
        %v4148 = vxor.u32 %v4138, 2147483648
        %v4149 = vsel %vm4147, %v4148, %v4139
        %v4150 = vsel %vm4143, %v4146, %v4149
        %v4151 = vsel %vm4140, nan, %v4150
        %v4152 = vand.u32 2147483647, %v1545
        %vm4153 = vcmp.le.f32.partialorder %v4152, 0.7853982
        %vm4154 = vcmp.lt.s32.totalorder %v1545, 0
        %v4155 = vand.u32 %v1545, 2139095040
        %v4156 = vshrl.u32 %v4155, 23
        %v4157 = vsub.s32 %v4156, 127
        %v4158 = vand.u32 2147483647, %v1545
        %v4159 = vand.u32 %v4158, 8388607
        %v4160 = vor.u32 %v4159, 8388608
        %v4161 = vsub.s32 0, %v4160
        %v4162 = vadd.s32 %v4157, 1
        %vm4163 = vcmp.gt.s32.totalorder %v4162, 0
        %v4164 = vsel %vm4163, %v4162, 0
        %v4165 = vshrl.u32 %v4164, 5
        %v4166 = vand.u32 %v4164, 31
        %v4167 = vsub.s32 32, %v4166
        %v4168 = vshrl.u32 683565275, %v4167
        %v4169 = vshll.u32 683565275, %v4166
        %v4170 = vshrl.u32 2475754826, %v4167
        %v4171 = vor.u32 %v4169, %v4170
        %v4172 = vshll.u32 2475754826, %v4166
        %v4173 = vshrl.u32 2131351028, %v4167
        %v4174 = vor.u32 %v4172, %v4173
        %v4175 = vshll.u32 2131351028, %v4166
        %v4176 = vshrl.u32 2102212464, %v4167
        %v4177 = vor.u32 %v4175, %v4176
        %v4178 = vshll.u32 2102212464, %v4166
        %v4179 = vshrl.u32 920167782, %v4167
        %v4180 = vor.u32 %v4178, %v4179
        %v4181 = vshll.u32 920167782, %v4166
        %v4182 = vshrl.u32 1326507024, %v4167
        %v4183 = vor.u32 %v4181, %v4182
        %vm4184 = vcmp.lt.s32.totalorder %v4165, 1
        %vm4185 = vcmp.lt.s32.totalorder %v4165, 2
        %vm4186 = vcmp.lt.s32.totalorder %v4165, 3
        %vm4187 = vcmp.lt.s32.totalorder %v4165, 4
        %v4188 = vsel %vm4184, %v4168, %v4171
        %v4189 = vsel %vm4187, %v4177, 2102212464
        %v4190 = vsel %vm4186, %v4174, %v4189
        %v4191 = vsel %vm4185, %v4188, %v4190
        %v4192 = vsel %vm4184, %v4171, %v4174
        %v4193 = vsel %vm4187, %v4180, 920167782
        %v4194 = vsel %vm4186, %v4177, %v4193
        %v4195 = vsel %vm4185, %v4192, %v4194
        %v4196 = vsel %vm4184, %v4174, %v4177
        %v4197 = vsel %vm4187, %v4183, 1326507024
        %v4198 = vsel %vm4186, %v4180, %v4197
        %v4199 = vsel %vm4185, %v4196, %v4198
        %v4200 = vshll.u32 %v4160, 8
        %v4201 = vmul.u32.u64.compose %v4200, %v4199
        %v4202 = vextract.low.u32 %v4201
        %v4203 = vextract.high.u32 %v4201
        %v4204 = vmul.u32.u64.compose %v4200, %v4195
        %v4205 = vextract.low.u32 %v4204
        %v4206 = vextract.high.u32 %v4204
        %v4207 = vmul.u32 %v4200, %v4191
        %v4208 = vadd.s32 %v4203, %v4205
        %vm4209 = vc.u32 %v4203, %v4205
        %v4210 = vadd.s32 %v4206, 1
        %v4211 = vsel %vm4209, %v4210, %v4206
        %v4212 = vadd.s32 %v4207, %v4211
        %v4213 = vadd.s32 %v4212, 536870912
        %v4214 = vshrl.u32 %v4213, 30
        %v4215 = vshll.u32 %v4214, 30
        %v4216 = vsub.s32 %v4212, %v4215
        %vm4217 = vcmp.lt.s32.totalorder %v4216, 0
        %v4218 = vsub.s32 0, %v4216
        %v4219 = vsel %vm4217, %v4218, %v4216
        %v4220 = vclz %v4219
        %v4221 = vsub.s32 %v4220, 2
        %vm4222 = vcmp.gt.s32.totalorder 0, %v4221
        %v4223 = vsel %vm4222, 0, %v4221
        %v4224 = vsub.s32 32, %v4223
        %v4225 = vshll.u32 %v4216, %v4223
        %v4226 = vshrl.u32 %v4208, %v4224
        %v4227 = vor.u32 %v4225, %v4226
        %v4228 = vsub.s32 4294967266, %v4223
        %v4229 = vadd.s32 %v4228, 127
        %v4230 = vshll.u32 %v4229, 23
        %v4231 = vor.u32 4788187, %v4230
        %v4232 = vand.u32 2147483647, %v4231
        %v4234 = vcvt.s32.f32 %v4227
        %v4235 = vmul.f32 %v4234, %v4232
        %v4236 = vxor.u32 %v4235, 2147483648
        %v4237 = vsel %vm4154, %v4236, %v4235
        %v4238 = vsub.s32 4, %v4214
        %v4239 = vsel %vm4154, %v4238, %v4214
        %v4240 = vsel %vm4153, %v1545, %v4237
        %v4241 = vsel %vm4153, 0, %v4239
        %v4242 = vcosq.f32.pop %v4240
        %v4243 = vsinq.f32.pop %v4240
        %vm4244 = vweird.f32 %v1545
        %v4245 = vadd.s32 %v4241, 3
        %v4246 = vand.u32 %v4245, 3
        %vm4247 = vcmp.lt.s32.totalorder %v4246, 2
        %vm4248 = vcmp.eq.s32.totalorder %v4246, 0
        %v4249 = vxor.u32 %v4243, 2147483648
        %v4250 = vsel %vm4248, %v4242, %v4249
        %vm4251 = vcmp.eq.s32.totalorder %v4246, 2
        %v4252 = vxor.u32 %v4242, 2147483648
        %v4253 = vsel %vm4251, %v4252, %v4243
        %v4254 = vsel %vm4247, %v4250, %v4253
        %v4255 = vsel %vm4244, nan, %v4254
        %v4256 = vand.u32 2147483647, %v1546
        %vm4257 = vcmp.le.f32.partialorder %v4256, 0.7853982
        %vm4258 = vcmp.lt.s32.totalorder %v1546, 0
        %v4259 = vand.u32 %v1546, 2139095040
        %v4260 = vshrl.u32 %v4259, 23
        %v4261 = vsub.s32 %v4260, 127
        %v4262 = vand.u32 2147483647, %v1546
        %v4263 = vand.u32 %v4262, 8388607
        %v4264 = vor.u32 %v4263, 8388608
        %v4265 = vsub.s32 0, %v4264
        %v4266 = vadd.s32 %v4261, 1
        %vm4267 = vcmp.gt.s32.totalorder %v4266, 0
        %v4268 = vsel %vm4267, %v4266, 0
        %v4269 = vshrl.u32 %v4268, 5
        %v4270 = vand.u32 %v4268, 31
        %v4271 = vsub.s32 32, %v4270
        %v4272 = vshrl.u32 683565275, %v4271
        %v4273 = vshll.u32 683565275, %v4270
        %v4274 = vshrl.u32 2475754826, %v4271
        %v4275 = vor.u32 %v4273, %v4274
        %v4276 = vshll.u32 2475754826, %v4270
        %v4277 = vshrl.u32 2131351028, %v4271
        %v4278 = vor.u32 %v4276, %v4277
        %v4279 = vshll.u32 2131351028, %v4270
        %v4280 = vshrl.u32 2102212464, %v4271
        %v4281 = vor.u32 %v4279, %v4280
        %v4282 = vshll.u32 2102212464, %v4270
        %v4283 = vshrl.u32 920167782, %v4271
        %v4284 = vor.u32 %v4282, %v4283
        %v4285 = vshll.u32 920167782, %v4270
        %v4286 = vshrl.u32 1326507024, %v4271
        %v4287 = vor.u32 %v4285, %v4286
        %vm4288 = vcmp.lt.s32.totalorder %v4269, 1
        %vm4289 = vcmp.lt.s32.totalorder %v4269, 2
        %vm4290 = vcmp.lt.s32.totalorder %v4269, 3
        %vm4291 = vcmp.lt.s32.totalorder %v4269, 4
        %v4292 = vsel %vm4288, %v4272, %v4275
        %v4293 = vsel %vm4291, %v4281, 2102212464
        %v4294 = vsel %vm4290, %v4278, %v4293
        %v4295 = vsel %vm4289, %v4292, %v4294
        %v4296 = vsel %vm4288, %v4275, %v4278
        %v4297 = vsel %vm4291, %v4284, 920167782
        %v4298 = vsel %vm4290, %v4281, %v4297
        %v4299 = vsel %vm4289, %v4296, %v4298
        %v4300 = vsel %vm4288, %v4278, %v4281
        %v4301 = vsel %vm4291, %v4287, 1326507024
        %v4302 = vsel %vm4290, %v4284, %v4301
        %v4303 = vsel %vm4289, %v4300, %v4302
        %v4304 = vshll.u32 %v4264, 8
        %v4305 = vmul.u32.u64.compose %v4304, %v4303
        %v4306 = vextract.low.u32 %v4305
        %v4307 = vextract.high.u32 %v4305
        %v4308 = vmul.u32.u64.compose %v4304, %v4299
        %v4309 = vextract.low.u32 %v4308
        %v4310 = vextract.high.u32 %v4308
        %v4311 = vmul.u32 %v4304, %v4295
        %v4312 = vadd.s32 %v4307, %v4309
        %vm4313 = vc.u32 %v4307, %v4309
        %v4314 = vadd.s32 %v4310, 1
        %v4315 = vsel %vm4313, %v4314, %v4310
        %v4316 = vadd.s32 %v4311, %v4315
        %v4317 = vadd.s32 %v4316, 536870912
        %v4318 = vshrl.u32 %v4317, 30
        %v4319 = vshll.u32 %v4318, 30
        %v4320 = vsub.s32 %v4316, %v4319
        %vm4321 = vcmp.lt.s32.totalorder %v4320, 0
        %v4322 = vsub.s32 0, %v4320
        %v4323 = vsel %vm4321, %v4322, %v4320
        %v4324 = vclz %v4323
        %v4325 = vsub.s32 %v4324, 2
        %vm4326 = vcmp.gt.s32.totalorder 0, %v4325
        %v4327 = vsel %vm4326, 0, %v4325
        %v4328 = vsub.s32 32, %v4327
        %v4329 = vshll.u32 %v4320, %v4327
        %v4330 = vshrl.u32 %v4312, %v4328
        %v4331 = vor.u32 %v4329, %v4330
        %v4332 = vsub.s32 4294967266, %v4327
        %v4333 = vadd.s32 %v4332, 127
        %v4334 = vshll.u32 %v4333, 23
        %v4335 = vor.u32 4788187, %v4334
        %v4336 = vand.u32 2147483647, %v4335
        %v4338 = vcvt.s32.f32 %v4331
        %v4339 = vmul.f32 %v4338, %v4336
        %v4340 = vxor.u32 %v4339, 2147483648
        %v4341 = vsel %vm4258, %v4340, %v4339
        %v4342 = vsub.s32 4, %v4318
        %v4343 = vsel %vm4258, %v4342, %v4318
        %v4344 = vsel %vm4257, %v1546, %v4341
        %v4345 = vsel %vm4257, 0, %v4343
        %v4346 = vcosq.f32.pop %v4344
        %v4347 = vsinq.f32.pop %v4344
        %vm4348 = vweird.f32 %v1546
        %v4349 = vadd.s32 %v4345, 3
        %v4350 = vand.u32 %v4349, 3
        %vm4351 = vcmp.lt.s32.totalorder %v4350, 2
        %vm4352 = vcmp.eq.s32.totalorder %v4350, 0
        %v4353 = vxor.u32 %v4347, 2147483648
        %v4354 = vsel %vm4352, %v4346, %v4353
        %vm4355 = vcmp.eq.s32.totalorder %v4350, 2
        %v4356 = vxor.u32 %v4346, 2147483648
        %v4357 = vsel %vm4355, %v4356, %v4347
        %v4358 = vsel %vm4351, %v4354, %v4357
        %v4359 = vsel %vm4348, nan, %v4358
        %v4360 = vand.u32 2147483647, %v1547
        %vm4361 = vcmp.le.f32.partialorder %v4360, 0.7853982
        %vm4362 = vcmp.lt.s32.totalorder %v1547, 0
        %v4363 = vand.u32 %v1547, 2139095040
        %v4364 = vshrl.u32 %v4363, 23
        %v4365 = vsub.s32 %v4364, 127
        %v4366 = vand.u32 2147483647, %v1547
        %v4367 = vand.u32 %v4366, 8388607
        %v4368 = vor.u32 %v4367, 8388608
        %v4369 = vsub.s32 0, %v4368
        %v4370 = vadd.s32 %v4365, 1
        %vm4371 = vcmp.gt.s32.totalorder %v4370, 0
        %v4372 = vsel %vm4371, %v4370, 0
        %v4373 = vshrl.u32 %v4372, 5
        %v4374 = vand.u32 %v4372, 31
        %v4375 = vsub.s32 32, %v4374
        %v4376 = vshrl.u32 683565275, %v4375
        %v4377 = vshll.u32 683565275, %v4374
        %v4378 = vshrl.u32 2475754826, %v4375
        %v4379 = vor.u32 %v4377, %v4378
        %v4380 = vshll.u32 2475754826, %v4374
        %v4381 = vshrl.u32 2131351028, %v4375
        %v4382 = vor.u32 %v4380, %v4381
        %v4383 = vshll.u32 2131351028, %v4374
        %v4384 = vshrl.u32 2102212464, %v4375
        %v4385 = vor.u32 %v4383, %v4384
        %v4386 = vshll.u32 2102212464, %v4374
        %v4387 = vshrl.u32 920167782, %v4375
        %v4388 = vor.u32 %v4386, %v4387
        %v4389 = vshll.u32 920167782, %v4374
        %v4390 = vshrl.u32 1326507024, %v4375
        %v4391 = vor.u32 %v4389, %v4390
        %vm4392 = vcmp.lt.s32.totalorder %v4373, 1
        %vm4393 = vcmp.lt.s32.totalorder %v4373, 2
        %vm4394 = vcmp.lt.s32.totalorder %v4373, 3
        %vm4395 = vcmp.lt.s32.totalorder %v4373, 4
        %v4396 = vsel %vm4392, %v4376, %v4379
        %v4397 = vsel %vm4395, %v4385, 2102212464
        %v4398 = vsel %vm4394, %v4382, %v4397
        %v4399 = vsel %vm4393, %v4396, %v4398
        %v4400 = vsel %vm4392, %v4379, %v4382
        %v4401 = vsel %vm4395, %v4388, 920167782
        %v4402 = vsel %vm4394, %v4385, %v4401
        %v4403 = vsel %vm4393, %v4400, %v4402
        %v4404 = vsel %vm4392, %v4382, %v4385
        %v4405 = vsel %vm4395, %v4391, 1326507024
        %v4406 = vsel %vm4394, %v4388, %v4405
        %v4407 = vsel %vm4393, %v4404, %v4406
        %v4408 = vshll.u32 %v4368, 8
        %v4409 = vmul.u32.u64.compose %v4408, %v4407
        %v4410 = vextract.low.u32 %v4409
        %v4411 = vextract.high.u32 %v4409
        %v4412 = vmul.u32.u64.compose %v4408, %v4403
        %v4413 = vextract.low.u32 %v4412
        %v4414 = vextract.high.u32 %v4412
        %v4415 = vmul.u32 %v4408, %v4399
        %v4416 = vadd.s32 %v4411, %v4413
        %vm4417 = vc.u32 %v4411, %v4413
        %v4418 = vadd.s32 %v4414, 1
        %v4419 = vsel %vm4417, %v4418, %v4414
        %v4420 = vadd.s32 %v4415, %v4419
        %v4421 = vadd.s32 %v4420, 536870912
        %v4422 = vshrl.u32 %v4421, 30
        %v4423 = vshll.u32 %v4422, 30
        %v4424 = vsub.s32 %v4420, %v4423
        %vm4425 = vcmp.lt.s32.totalorder %v4424, 0
        %v4426 = vsub.s32 0, %v4424
        %v4427 = vsel %vm4425, %v4426, %v4424
        %v4428 = vclz %v4427
        %v4429 = vsub.s32 %v4428, 2
        %vm4430 = vcmp.gt.s32.totalorder 0, %v4429
        %v4431 = vsel %vm4430, 0, %v4429
        %v4432 = vsub.s32 32, %v4431
        %v4433 = vshll.u32 %v4424, %v4431
        %v4434 = vshrl.u32 %v4416, %v4432
        %v4435 = vor.u32 %v4433, %v4434
        %v4436 = vsub.s32 4294967266, %v4431
        %v4437 = vadd.s32 %v4436, 127
        %v4438 = vshll.u32 %v4437, 23
        %v4439 = vor.u32 4788187, %v4438
        %v4440 = vand.u32 2147483647, %v4439
        %v4442 = vcvt.s32.f32 %v4435
        %v4443 = vmul.f32 %v4442, %v4440
        %v4444 = vxor.u32 %v4443, 2147483648
        %v4445 = vsel %vm4362, %v4444, %v4443
        %v4446 = vsub.s32 4, %v4422
        %v4447 = vsel %vm4362, %v4446, %v4422
        %v4448 = vsel %vm4361, %v1547, %v4445
        %v4449 = vsel %vm4361, 0, %v4447
        %v4450 = vcosq.f32.pop %v4448
        %v4451 = vsinq.f32.pop %v4448
        %vm4452 = vweird.f32 %v1547
        %v4453 = vadd.s32 %v4449, 3
        %v4454 = vand.u32 %v4453, 3
        %vm4455 = vcmp.lt.s32.totalorder %v4454, 2
        %vm4456 = vcmp.eq.s32.totalorder %v4454, 0
        %v4457 = vxor.u32 %v4451, 2147483648
        %v4458 = vsel %vm4456, %v4450, %v4457
        %vm4459 = vcmp.eq.s32.totalorder %v4454, 2
        %v4460 = vxor.u32 %v4450, 2147483648
        %v4461 = vsel %vm4459, %v4460, %v4451
        %v4462 = vsel %vm4455, %v4458, %v4461
        %v4463 = vsel %vm4452, nan, %v4462
        %v4464 = vand.u32 2147483647, %v1548
        %vm4465 = vcmp.le.f32.partialorder %v4464, 0.7853982
        %vm4466 = vcmp.lt.s32.totalorder %v1548, 0
        %v4467 = vand.u32 %v1548, 2139095040
        %v4468 = vshrl.u32 %v4467, 23
        %v4469 = vsub.s32 %v4468, 127
        %v4470 = vand.u32 2147483647, %v1548
        %v4471 = vand.u32 %v4470, 8388607
        %v4472 = vor.u32 %v4471, 8388608
        %v4473 = vsub.s32 0, %v4472
        %v4474 = vadd.s32 %v4469, 1
        %vm4475 = vcmp.gt.s32.totalorder %v4474, 0
        %v4476 = vsel %vm4475, %v4474, 0
        %v4477 = vshrl.u32 %v4476, 5
        %v4478 = vand.u32 %v4476, 31
        %v4479 = vsub.s32 32, %v4478
        %v4480 = vshrl.u32 683565275, %v4479
        %v4481 = vshll.u32 683565275, %v4478
        %v4482 = vshrl.u32 2475754826, %v4479
        %v4483 = vor.u32 %v4481, %v4482
        %v4484 = vshll.u32 2475754826, %v4478
        %v4485 = vshrl.u32 2131351028, %v4479
        %v4486 = vor.u32 %v4484, %v4485
        %v4487 = vshll.u32 2131351028, %v4478
        %v4488 = vshrl.u32 2102212464, %v4479
        %v4489 = vor.u32 %v4487, %v4488
        %v4490 = vshll.u32 2102212464, %v4478
        %v4491 = vshrl.u32 920167782, %v4479
        %v4492 = vor.u32 %v4490, %v4491
        %v4493 = vshll.u32 920167782, %v4478
        %v4494 = vshrl.u32 1326507024, %v4479
        %v4495 = vor.u32 %v4493, %v4494
        %vm4496 = vcmp.lt.s32.totalorder %v4477, 1
        %vm4497 = vcmp.lt.s32.totalorder %v4477, 2
        %vm4498 = vcmp.lt.s32.totalorder %v4477, 3
        %vm4499 = vcmp.lt.s32.totalorder %v4477, 4
        %v4500 = vsel %vm4496, %v4480, %v4483
        %v4501 = vsel %vm4499, %v4489, 2102212464
        %v4502 = vsel %vm4498, %v4486, %v4501
        %v4503 = vsel %vm4497, %v4500, %v4502
        %v4504 = vsel %vm4496, %v4483, %v4486
        %v4505 = vsel %vm4499, %v4492, 920167782
        %v4506 = vsel %vm4498, %v4489, %v4505
        %v4507 = vsel %vm4497, %v4504, %v4506
        %v4508 = vsel %vm4496, %v4486, %v4489
        %v4509 = vsel %vm4499, %v4495, 1326507024
        %v4510 = vsel %vm4498, %v4492, %v4509
        %v4511 = vsel %vm4497, %v4508, %v4510
        %v4512 = vshll.u32 %v4472, 8
        %v4513 = vmul.u32.u64.compose %v4512, %v4511
        %v4514 = vextract.low.u32 %v4513
        %v4515 = vextract.high.u32 %v4513
        %v4516 = vmul.u32.u64.compose %v4512, %v4507
        %v4517 = vextract.low.u32 %v4516
        %v4518 = vextract.high.u32 %v4516
        %v4519 = vmul.u32 %v4512, %v4503
        %v4520 = vadd.s32 %v4515, %v4517
        %vm4521 = vc.u32 %v4515, %v4517
        %v4522 = vadd.s32 %v4518, 1
        %v4523 = vsel %vm4521, %v4522, %v4518
        %v4524 = vadd.s32 %v4519, %v4523
        %v4525 = vadd.s32 %v4524, 536870912
        %v4526 = vshrl.u32 %v4525, 30
        %v4527 = vshll.u32 %v4526, 30
        %v4528 = vsub.s32 %v4524, %v4527
        %vm4529 = vcmp.lt.s32.totalorder %v4528, 0
        %v4530 = vsub.s32 0, %v4528
        %v4531 = vsel %vm4529, %v4530, %v4528
        %v4532 = vclz %v4531
        %v4533 = vsub.s32 %v4532, 2
        %vm4534 = vcmp.gt.s32.totalorder 0, %v4533
        %v4535 = vsel %vm4534, 0, %v4533
        %v4536 = vsub.s32 32, %v4535
        %v4537 = vshll.u32 %v4528, %v4535
        %v4538 = vshrl.u32 %v4520, %v4536
        %v4539 = vor.u32 %v4537, %v4538
        %v4540 = vsub.s32 4294967266, %v4535
        %v4541 = vadd.s32 %v4540, 127
        %v4542 = vshll.u32 %v4541, 23
        %v4543 = vor.u32 4788187, %v4542
        %v4544 = vand.u32 2147483647, %v4543
        %v4546 = vcvt.s32.f32 %v4539
        %v4547 = vmul.f32 %v4546, %v4544
        %v4548 = vxor.u32 %v4547, 2147483648
        %v4549 = vsel %vm4466, %v4548, %v4547
        %v4550 = vsub.s32 4, %v4526
        %v4551 = vsel %vm4466, %v4550, %v4526
        %v4552 = vsel %vm4465, %v1548, %v4549
        %v4553 = vsel %vm4465, 0, %v4551
        %v4554 = vcosq.f32.pop %v4552
        %v4555 = vsinq.f32.pop %v4552
        %vm4556 = vweird.f32 %v1548
        %v4557 = vadd.s32 %v4553, 3
        %v4558 = vand.u32 %v4557, 3
        %vm4559 = vcmp.lt.s32.totalorder %v4558, 2
        %vm4560 = vcmp.eq.s32.totalorder %v4558, 0
        %v4561 = vxor.u32 %v4555, 2147483648
        %v4562 = vsel %vm4560, %v4554, %v4561
        %vm4563 = vcmp.eq.s32.totalorder %v4558, 2
        %v4564 = vxor.u32 %v4554, 2147483648
        %v4565 = vsel %vm4563, %v4564, %v4555
        %v4566 = vsel %vm4559, %v4562, %v4565
        %v4567 = vsel %vm4556, nan, %v4566
        %v4568 = vand.u32 2147483647, %v1549
        %vm4569 = vcmp.le.f32.partialorder %v4568, 0.7853982
        %vm4570 = vcmp.lt.s32.totalorder %v1549, 0
        %v4571 = vand.u32 %v1549, 2139095040
        %v4572 = vshrl.u32 %v4571, 23
        %v4573 = vsub.s32 %v4572, 127
        %v4574 = vand.u32 2147483647, %v1549
        %v4575 = vand.u32 %v4574, 8388607
        %v4576 = vor.u32 %v4575, 8388608
        %v4577 = vsub.s32 0, %v4576
        %v4578 = vadd.s32 %v4573, 1
        %vm4579 = vcmp.gt.s32.totalorder %v4578, 0
        %v4580 = vsel %vm4579, %v4578, 0
        %v4581 = vshrl.u32 %v4580, 5
        %v4582 = vand.u32 %v4580, 31
        %v4583 = vsub.s32 32, %v4582
        %v4584 = vshrl.u32 683565275, %v4583
        %v4585 = vshll.u32 683565275, %v4582
        %v4586 = vshrl.u32 2475754826, %v4583
        %v4587 = vor.u32 %v4585, %v4586
        %v4588 = vshll.u32 2475754826, %v4582
        %v4589 = vshrl.u32 2131351028, %v4583
        %v4590 = vor.u32 %v4588, %v4589
        %v4591 = vshll.u32 2131351028, %v4582
        %v4592 = vshrl.u32 2102212464, %v4583
        %v4593 = vor.u32 %v4591, %v4592
        %v4594 = vshll.u32 2102212464, %v4582
        %v4595 = vshrl.u32 920167782, %v4583
        %v4596 = vor.u32 %v4594, %v4595
        %v4597 = vshll.u32 920167782, %v4582
        %v4598 = vshrl.u32 1326507024, %v4583
        %v4599 = vor.u32 %v4597, %v4598
        %vm4600 = vcmp.lt.s32.totalorder %v4581, 1
        %vm4601 = vcmp.lt.s32.totalorder %v4581, 2
        %vm4602 = vcmp.lt.s32.totalorder %v4581, 3
        %vm4603 = vcmp.lt.s32.totalorder %v4581, 4
        %v4604 = vsel %vm4600, %v4584, %v4587
        %v4605 = vsel %vm4603, %v4593, 2102212464
        %v4606 = vsel %vm4602, %v4590, %v4605
        %v4607 = vsel %vm4601, %v4604, %v4606
        %v4608 = vsel %vm4600, %v4587, %v4590
        %v4609 = vsel %vm4603, %v4596, 920167782
        %v4610 = vsel %vm4602, %v4593, %v4609
        %v4611 = vsel %vm4601, %v4608, %v4610
        %v4612 = vsel %vm4600, %v4590, %v4593
        %v4613 = vsel %vm4603, %v4599, 1326507024
        %v4614 = vsel %vm4602, %v4596, %v4613
        %v4615 = vsel %vm4601, %v4612, %v4614
        %v4616 = vshll.u32 %v4576, 8
        %v4617 = vmul.u32.u64.compose %v4616, %v4615
        %v4618 = vextract.low.u32 %v4617
        %v4619 = vextract.high.u32 %v4617
        %v4620 = vmul.u32.u64.compose %v4616, %v4611
        %v4621 = vextract.low.u32 %v4620
        %v4622 = vextract.high.u32 %v4620
        %v4623 = vmul.u32 %v4616, %v4607
        %v4624 = vadd.s32 %v4619, %v4621
        %vm4625 = vc.u32 %v4619, %v4621
        %v4626 = vadd.s32 %v4622, 1
        %v4627 = vsel %vm4625, %v4626, %v4622
        %v4628 = vadd.s32 %v4623, %v4627
        %v4629 = vadd.s32 %v4628, 536870912
        %v4630 = vshrl.u32 %v4629, 30
        %v4631 = vshll.u32 %v4630, 30
        %v4632 = vsub.s32 %v4628, %v4631
        %vm4633 = vcmp.lt.s32.totalorder %v4632, 0
        %v4634 = vsub.s32 0, %v4632
        %v4635 = vsel %vm4633, %v4634, %v4632
        %v4636 = vclz %v4635
        %v4637 = vsub.s32 %v4636, 2
        %vm4638 = vcmp.gt.s32.totalorder 0, %v4637
        %v4639 = vsel %vm4638, 0, %v4637
        %v4640 = vsub.s32 32, %v4639
        %v4641 = vshll.u32 %v4632, %v4639
        %v4642 = vshrl.u32 %v4624, %v4640
        %v4643 = vor.u32 %v4641, %v4642
        %v4644 = vsub.s32 4294967266, %v4639
        %v4645 = vadd.s32 %v4644, 127
        %v4646 = vshll.u32 %v4645, 23
        %v4647 = vor.u32 4788187, %v4646
        %v4648 = vand.u32 2147483647, %v4647
        %v4650 = vcvt.s32.f32 %v4643
        %v4651 = vmul.f32 %v4650, %v4648
        %v4652 = vxor.u32 %v4651, 2147483648
        %v4653 = vsel %vm4570, %v4652, %v4651
        %v4654 = vsub.s32 4, %v4630
        %v4655 = vsel %vm4570, %v4654, %v4630
        %v4656 = vsel %vm4569, %v1549, %v4653
        %v4657 = vsel %vm4569, 0, %v4655
        %v4658 = vcosq.f32.pop %v4656
        %v4659 = vsinq.f32.pop %v4656
        %vm4660 = vweird.f32 %v1549
        %v4661 = vadd.s32 %v4657, 3
        %v4662 = vand.u32 %v4661, 3
        %vm4663 = vcmp.lt.s32.totalorder %v4662, 2
        %vm4664 = vcmp.eq.s32.totalorder %v4662, 0
        %v4665 = vxor.u32 %v4659, 2147483648
        %v4666 = vsel %vm4664, %v4658, %v4665
        %vm4667 = vcmp.eq.s32.totalorder %v4662, 2
        %v4668 = vxor.u32 %v4658, 2147483648
        %v4669 = vsel %vm4667, %v4668, %v4659
        %v4670 = vsel %vm4663, %v4666, %v4669
        %v4671 = vsel %vm4660, nan, %v4670
        %v4672 = vand.u32 2147483647, %v1550
        %vm4673 = vcmp.le.f32.partialorder %v4672, 0.7853982
        %vm4674 = vcmp.lt.s32.totalorder %v1550, 0
        %v4675 = vand.u32 %v1550, 2139095040
        %v4676 = vshrl.u32 %v4675, 23
        %v4677 = vsub.s32 %v4676, 127
        %v4678 = vand.u32 2147483647, %v1550
        %v4679 = vand.u32 %v4678, 8388607
        %v4680 = vor.u32 %v4679, 8388608
        %v4681 = vsub.s32 0, %v4680
        %v4682 = vadd.s32 %v4677, 1
        %vm4683 = vcmp.gt.s32.totalorder %v4682, 0
        %v4684 = vsel %vm4683, %v4682, 0
        %v4685 = vshrl.u32 %v4684, 5
        %v4686 = vand.u32 %v4684, 31
        %v4687 = vsub.s32 32, %v4686
        %v4688 = vshrl.u32 683565275, %v4687
        %v4689 = vshll.u32 683565275, %v4686
        %v4690 = vshrl.u32 2475754826, %v4687
        %v4691 = vor.u32 %v4689, %v4690
        %v4692 = vshll.u32 2475754826, %v4686
        %v4693 = vshrl.u32 2131351028, %v4687
        %v4694 = vor.u32 %v4692, %v4693
        %v4695 = vshll.u32 2131351028, %v4686
        %v4696 = vshrl.u32 2102212464, %v4687
        %v4697 = vor.u32 %v4695, %v4696
        %v4698 = vshll.u32 2102212464, %v4686
        %v4699 = vshrl.u32 920167782, %v4687
        %v4700 = vor.u32 %v4698, %v4699
        %v4701 = vshll.u32 920167782, %v4686
        %v4702 = vshrl.u32 1326507024, %v4687
        %v4703 = vor.u32 %v4701, %v4702
        %vm4704 = vcmp.lt.s32.totalorder %v4685, 1
        %vm4705 = vcmp.lt.s32.totalorder %v4685, 2
        %vm4706 = vcmp.lt.s32.totalorder %v4685, 3
        %vm4707 = vcmp.lt.s32.totalorder %v4685, 4
        %v4708 = vsel %vm4704, %v4688, %v4691
        %v4709 = vsel %vm4707, %v4697, 2102212464
        %v4710 = vsel %vm4706, %v4694, %v4709
        %v4711 = vsel %vm4705, %v4708, %v4710
        %v4712 = vsel %vm4704, %v4691, %v4694
        %v4713 = vsel %vm4707, %v4700, 920167782
        %v4714 = vsel %vm4706, %v4697, %v4713
        %v4715 = vsel %vm4705, %v4712, %v4714
        %v4716 = vsel %vm4704, %v4694, %v4697
        %v4717 = vsel %vm4707, %v4703, 1326507024
        %v4718 = vsel %vm4706, %v4700, %v4717
        %v4719 = vsel %vm4705, %v4716, %v4718
        %v4720 = vshll.u32 %v4680, 8
        %v4721 = vmul.u32.u64.compose %v4720, %v4719
        %v4722 = vextract.low.u32 %v4721
        %v4723 = vextract.high.u32 %v4721
        %v4724 = vmul.u32.u64.compose %v4720, %v4715
        %v4725 = vextract.low.u32 %v4724
        %v4726 = vextract.high.u32 %v4724
        %v4727 = vmul.u32 %v4720, %v4711
        %v4728 = vadd.s32 %v4723, %v4725
        %vm4729 = vc.u32 %v4723, %v4725
        %v4730 = vadd.s32 %v4726, 1
        %v4731 = vsel %vm4729, %v4730, %v4726
        %v4732 = vadd.s32 %v4727, %v4731
        %v4733 = vadd.s32 %v4732, 536870912
        %v4734 = vshrl.u32 %v4733, 30
        %v4735 = vshll.u32 %v4734, 30
        %v4736 = vsub.s32 %v4732, %v4735
        %vm4737 = vcmp.lt.s32.totalorder %v4736, 0
        %v4738 = vsub.s32 0, %v4736
        %v4739 = vsel %vm4737, %v4738, %v4736
        %v4740 = vclz %v4739
        %v4741 = vsub.s32 %v4740, 2
        %vm4742 = vcmp.gt.s32.totalorder 0, %v4741
        %v4743 = vsel %vm4742, 0, %v4741
        %v4744 = vsub.s32 32, %v4743
        %v4745 = vshll.u32 %v4736, %v4743
        %v4746 = vshrl.u32 %v4728, %v4744
        %v4747 = vor.u32 %v4745, %v4746
        %v4748 = vsub.s32 4294967266, %v4743
        %v4749 = vadd.s32 %v4748, 127
        %v4750 = vshll.u32 %v4749, 23
        %v4751 = vor.u32 4788187, %v4750
        %v4752 = vand.u32 2147483647, %v4751
        %v4754 = vcvt.s32.f32 %v4747
        %v4755 = vmul.f32 %v4754, %v4752
        %v4756 = vxor.u32 %v4755, 2147483648
        %v4757 = vsel %vm4674, %v4756, %v4755
        %v4758 = vsub.s32 4, %v4734
        %v4759 = vsel %vm4674, %v4758, %v4734
        %v4760 = vsel %vm4673, %v1550, %v4757
        %v4761 = vsel %vm4673, 0, %v4759
        %v4762 = vcosq.f32.pop %v4760
        %v4763 = vsinq.f32.pop %v4760
        %vm4764 = vweird.f32 %v1550
        %v4765 = vadd.s32 %v4761, 3
        %v4766 = vand.u32 %v4765, 3
        %vm4767 = vcmp.lt.s32.totalorder %v4766, 2
        %vm4768 = vcmp.eq.s32.totalorder %v4766, 0
        %v4769 = vxor.u32 %v4763, 2147483648
        %v4770 = vsel %vm4768, %v4762, %v4769
        %vm4771 = vcmp.eq.s32.totalorder %v4766, 2
        %v4772 = vxor.u32 %v4762, 2147483648
        %v4773 = vsel %vm4771, %v4772, %v4763
        %v4774 = vsel %vm4767, %v4770, %v4773
        %v4775 = vsel %vm4764, nan, %v4774
        %v4776 = vand.u32 2147483647, %v1551
        %vm4777 = vcmp.le.f32.partialorder %v4776, 0.7853982
        %vm4778 = vcmp.lt.s32.totalorder %v1551, 0
        %v4779 = vand.u32 %v1551, 2139095040
        %v4780 = vshrl.u32 %v4779, 23
        %v4781 = vsub.s32 %v4780, 127
        %v4782 = vand.u32 2147483647, %v1551
        %v4783 = vand.u32 %v4782, 8388607
        %v4784 = vor.u32 %v4783, 8388608
        %v4785 = vsub.s32 0, %v4784
        %v4786 = vadd.s32 %v4781, 1
        %vm4787 = vcmp.gt.s32.totalorder %v4786, 0
        %v4788 = vsel %vm4787, %v4786, 0
        %v4789 = vshrl.u32 %v4788, 5
        %v4790 = vand.u32 %v4788, 31
        %v4791 = vsub.s32 32, %v4790
        %v4792 = vshrl.u32 683565275, %v4791
        %v4793 = vshll.u32 683565275, %v4790
        %v4794 = vshrl.u32 2475754826, %v4791
        %v4795 = vor.u32 %v4793, %v4794
        %v4796 = vshll.u32 2475754826, %v4790
        %v4797 = vshrl.u32 2131351028, %v4791
        %v4798 = vor.u32 %v4796, %v4797
        %v4799 = vshll.u32 2131351028, %v4790
        %v4800 = vshrl.u32 2102212464, %v4791
        %v4801 = vor.u32 %v4799, %v4800
        %v4802 = vshll.u32 2102212464, %v4790
        %v4803 = vshrl.u32 920167782, %v4791
        %v4804 = vor.u32 %v4802, %v4803
        %v4805 = vshll.u32 920167782, %v4790
        %v4806 = vshrl.u32 1326507024, %v4791
        %v4807 = vor.u32 %v4805, %v4806
        %vm4808 = vcmp.lt.s32.totalorder %v4789, 1
        %vm4809 = vcmp.lt.s32.totalorder %v4789, 2
        %vm4810 = vcmp.lt.s32.totalorder %v4789, 3
        %vm4811 = vcmp.lt.s32.totalorder %v4789, 4
        %v4812 = vsel %vm4808, %v4792, %v4795
        %v4813 = vsel %vm4811, %v4801, 2102212464
        %v4814 = vsel %vm4810, %v4798, %v4813
        %v4815 = vsel %vm4809, %v4812, %v4814
        %v4816 = vsel %vm4808, %v4795, %v4798
        %v4817 = vsel %vm4811, %v4804, 920167782
        %v4818 = vsel %vm4810, %v4801, %v4817
        %v4819 = vsel %vm4809, %v4816, %v4818
        %v4820 = vsel %vm4808, %v4798, %v4801
        %v4821 = vsel %vm4811, %v4807, 1326507024
        %v4822 = vsel %vm4810, %v4804, %v4821
        %v4823 = vsel %vm4809, %v4820, %v4822
        %v4824 = vshll.u32 %v4784, 8
        %v4825 = vmul.u32.u64.compose %v4824, %v4823
        %v4826 = vextract.low.u32 %v4825
        %v4827 = vextract.high.u32 %v4825
        %v4828 = vmul.u32.u64.compose %v4824, %v4819
        %v4829 = vextract.low.u32 %v4828
        %v4830 = vextract.high.u32 %v4828
        %v4831 = vmul.u32 %v4824, %v4815
        %v4832 = vadd.s32 %v4827, %v4829
        %vm4833 = vc.u32 %v4827, %v4829
        %v4834 = vadd.s32 %v4830, 1
        %v4835 = vsel %vm4833, %v4834, %v4830
        %v4836 = vadd.s32 %v4831, %v4835
        %v4837 = vadd.s32 %v4836, 536870912
        %v4838 = vshrl.u32 %v4837, 30
        %v4839 = vshll.u32 %v4838, 30
        %v4840 = vsub.s32 %v4836, %v4839
        %vm4841 = vcmp.lt.s32.totalorder %v4840, 0
        %v4842 = vsub.s32 0, %v4840
        %v4843 = vsel %vm4841, %v4842, %v4840
        %v4844 = vclz %v4843
        %v4845 = vsub.s32 %v4844, 2
        %vm4846 = vcmp.gt.s32.totalorder 0, %v4845
        %v4847 = vsel %vm4846, 0, %v4845
        %v4848 = vsub.s32 32, %v4847
        %v4849 = vshll.u32 %v4840, %v4847
        %v4850 = vshrl.u32 %v4832, %v4848
        %v4851 = vor.u32 %v4849, %v4850
        %v4852 = vsub.s32 4294967266, %v4847
        %v4853 = vadd.s32 %v4852, 127
        %v4854 = vshll.u32 %v4853, 23
        %v4855 = vor.u32 4788187, %v4854
        %v4856 = vand.u32 2147483647, %v4855
        %v4858 = vcvt.s32.f32 %v4851
        %v4859 = vmul.f32 %v4858, %v4856
        %v4860 = vxor.u32 %v4859, 2147483648
        %v4861 = vsel %vm4778, %v4860, %v4859
        %v4862 = vsub.s32 4, %v4838
        %v4863 = vsel %vm4778, %v4862, %v4838
        %v4864 = vsel %vm4777, %v1551, %v4861
        %v4865 = vsel %vm4777, 0, %v4863
        %v4866 = vcosq.f32.pop %v4864
        %v4867 = vsinq.f32.pop %v4864
        %vm4868 = vweird.f32 %v1551
        %v4869 = vadd.s32 %v4865, 3
        %v4870 = vand.u32 %v4869, 3
        %vm4871 = vcmp.lt.s32.totalorder %v4870, 2
        %vm4872 = vcmp.eq.s32.totalorder %v4870, 0
        %v4873 = vxor.u32 %v4867, 2147483648
        %v4874 = vsel %vm4872, %v4866, %v4873
        %vm4875 = vcmp.eq.s32.totalorder %v4870, 2
        %v4876 = vxor.u32 %v4866, 2147483648
        %v4877 = vsel %vm4875, %v4876, %v4867
        %v4878 = vsel %vm4871, %v4874, %v4877
        %v4879 = vsel %vm4868, nan, %v4878
        %4880 = vst [vmem:[%s161] sm:$0xff] %v1655
        %4881 = vst [vmem:[%s161 + $0x8] sm:$0xff] %v1759
        %4882 = vst [vmem:[%s161 + $0x10] sm:$0xff] %v1863
        %4883 = vst [vmem:[%s161 + $0x18] sm:$0xff] %v1967
        %4884 = vst [vmem:[%s161 + $0x20] sm:$0xff] %v2071
        %4885 = vst [vmem:[%s161 + $0x28] sm:$0xff] %v2175
        %4886 = vst [vmem:[%s161 + $0x30] sm:$0xff] %v2279
        %4887 = vst [vmem:[%s161 + $0x38] sm:$0xff] %v2383
        %4888 = vst [vmem:[%s161 + $0x40] sm:$0xff] %v2487
        %4889 = vst [vmem:[%s161 + $0x48] sm:$0xff] %v2591
        %4890 = vst [vmem:[%s161 + $0x50] sm:$0xff] %v2695
        %4891 = vst [vmem:[%s161 + $0x58] sm:$0xff] %v2799
        %4892 = vst [vmem:[%s161 + $0x60] sm:$0xff] %v2903
        %4893 = vst [vmem:[%s161 + $0x68] sm:$0xff] %v3007
        %4894 = vst [vmem:[%s161 + $0x70] sm:$0xff] %v3111
        %4895 = vst [vmem:[%s161 + $0x78] sm:$0xff] %v3215
        %4896 = vst [vmem:[%s161 + $0x80] sm:$0xff] %v3319
        %4897 = vst [vmem:[%s161 + $0x88] sm:$0xff] %v3423
        %4898 = vst [vmem:[%s161 + $0x90] sm:$0xff] %v3527
        %4899 = vst [vmem:[%s161 + $0x98] sm:$0xff] %v3631
        %4900 = vst [vmem:[%s161 + $0xa0] sm:$0xff] %v3735
        %4901 = vst [vmem:[%s161 + $0xa8] sm:$0xff] %v3839
        %4902 = vst [vmem:[%s161 + $0xb0] sm:$0xff] %v3943
        %4903 = vst [vmem:[%s161 + $0xb8] sm:$0xff] %v4047
        %4904 = vst [vmem:[%s161 + $0xc0] sm:$0xff] %v4151
        %4905 = vst [vmem:[%s161 + $0xc8] sm:$0xff] %v4255
        %4906 = vst [vmem:[%s161 + $0xd0] sm:$0xff] %v4359
        %4907 = vst [vmem:[%s161 + $0xd8] sm:$0xff] %v4463
        %4908 = vst [vmem:[%s161 + $0xe0] sm:$0xff] %v4567
        %4909 = vst [vmem:[%s161 + $0xe8] sm:$0xff] %v4671
        %4910 = vst [vmem:[%s161 + $0xf0] sm:$0xff] %v4775
        %4911 = vst [vmem:[%s161 + $0xf8] sm:$0xff] %v4879
        %s4912 = sand.u32 %s93, 1
        %s4913 = scalar_lea.sflag [#allocation3], %s4912
        %s4914 = sand.u32 %s93, 1
        %s4915 = smul.addr %s4914, 256
        %s4916 = scalar_lea.vmem [#allocation2], %s4915
        // Predicated region
        $region33: #{tpu_custom_call.1} parent=31 // pred_check
          %p4917 = pneg %p103
        $region34: #{tpu_custom_call.1} parent=31 // pred_check_branch
          %4919 = sbr.rel (%p4917) target = $region36
        $region35: #{tpu_custom_call.1} parent=31 // pred_region
          %s4921 = ssub.s32 4096, 4096
          %4922 = vsyncadd %s4913, %s4921
          %s4923 = smul.addr %s17, 32
          %s4924 = smul.addr %s4923, 128
          %s4925 = scalar_lea.hbm %s3, %s4924
          %s4926 = sshll.u32 %s4916, 4
          %s4927 = int_to_ptr.vmem [resolvable:$true] %s4926
          %4932 = dma.vmem_to_hbm [thread:$0]  %s4927, 4096, %s4925, %s4913, 256, 256, 16
        $region36: #{tpu_custom_call.1} parent=31 // pred_fallthru
          _
      $region32: #{tpu_custom_call.1} parent=5 // pred_fallthru
        _
      %p4933 = scmp.le.s32.totalorder 2, %s12
      // Predicated region
      $region37: #{tpu_custom_call.1} parent=5 // pred_check
        %p4934 = pneg %p4933
      $region38: #{tpu_custom_call.1} parent=5 // pred_check_branch
        %4936 = sbr.rel (%p4934) target = $region40
      $region39: #{tpu_custom_call.1} parent=5 // pred_region
        %s4937 = ssub.s32 %s12, 2
        // Predicated region
        $region41: #{tpu_custom_call.1} parent=39 // pred_check
          %p4938 = pneg %p109
        $region42: #{tpu_custom_call.1} parent=39 // pred_check_branch
          %4940 = sbr.rel (%p4938) target = $region44
        $region43: #{tpu_custom_call.1} parent=39 // pred_region
          %s4941 = sand.u32 %s94, 1
          %s4942 = scalar_lea.sflag [#allocation3], %s4941
          %s4943 = sand.u32 %s94, 1
          %s4944 = smul.addr %s4943, 256
          %s4945 = scalar_lea.vmem [#allocation2], %s4944
          %4946 = dma.done %s4942, 4096
        $region44: #{tpu_custom_call.1} parent=39 // pred_fallthru
          _
      $region40: #{tpu_custom_call.1} parent=5 // pred_fallthru
        _
    $region6: #{tpu_custom_call.1} parent=1 // loop_footer
      %s16 = sadd.s32 1, %s12
    $region7: #{tpu_custom_call.1} parent=1 // loop_footer_branch
      %11 = sbr.rel target = $region3
    $region8: #{tpu_custom_call.1} parent=1 // loop_exit
      _
    %4947 = vsyncpa [#allocation3], 1
    %s4948 = scalar_lea.sflag [#allocation3], 1
    %4949 = vsyncpa %s4948, 1

</llo_original>
